<compile_context>
chip_gen: v5e
topology: v5e:2x2
jax: 0.10.0
libtpu: 0.0.40
codegen_flags: <defaults>
</compile_context>

<pallas_src>
import functools

import jax
import jax.numpy as jnp
import numpy as np
from jax.experimental import pallas as pl
from jax.experimental.pallas import tpu as pltpu


# ----------------------------------------------------------------------------
# In-kernel helper: 3x3 "same" conv of a padded tile as ONE im2col MXU matmul
# ----------------------------------------------------------------------------
def _conv3x3_bias(xpad, w, b):
    """xpad: (H+2, W+2, Cin) value (f32 or bf16).
       w   : (9*Cin, Cout) bf16 (tap order dy-major, dx, cin — matches
             HWIO.reshape(9*Cin, Cout)).
       b   : (1, Cout) f32.
    Returns conv3x3(xpad)[interior] + b as (H, W, Cout) f32."""
    Hp, Wp, Cin = xpad.shape
    H, W = Hp - 2, Wp - 2
    Cout = w.shape[-1]

    x16 = xpad.astype(jnp.bfloat16)
    # im2col: concatenate the 9 shifted views along channels -> K = 9*Cin,
    # then a single (H*W, 9*Cin) x (9*Cin, Cout) matmul with f32 accumulation.
    cols = jnp.concatenate(
        [x16[dy:dy + H, dx:dx + W, :] for dy in range(3) for dx in range(3)],
        axis=-1).reshape(H * W, 9 * Cin)
    acc = jnp.dot(cols, w, preferred_element_type=jnp.float32)   # (H*W, Cout)
    acc = acc + b                                                 # broadcast
    return acc.reshape(H, W, Cout)


# ----------------------------------------------------------------------------
# Pallas kernels
# ----------------------------------------------------------------------------
def _conv_first_kernel(x_ref, w_ref, b_ref, o_ref):
    """feat = lrelu(conv_first(x)); output written in padded layout."""
    Hp, Wp = o_ref.shape[1], o_ref.shape[2]
    H, W = Hp - 2, Wp - 2
    acc = _conv3x3_bias(x_ref[0], w_ref[...], b_ref[...])
    acc = jnp.where(acc > 0, acc, 0.1 * acc)              # LeakyReLU(0.1)
    o_ref[...] = jnp.zeros_like(o_ref)                    # zero border
    o_ref[0, 1:H + 1, 1:W + 1, :] = acc.astype(o_ref.dtype)


def _resblock_kernel(feat_ref, w1_ref, b1_ref, w2_ref, b2_ref, o_ref, t_ref):
    """Fused ResidualBlockNoBN: feat + conv2(relu(conv1(feat))); padded I/O."""
    Hp, Wp = o_ref.shape[1], o_ref.shape[2]
    H, W = Hp - 2, Wp - 2

    feat = feat_ref[0]                                    # (Hp, Wp, C) f32

    # conv1 + ReLU -> bf16 VMEM scratch (padded; border stays zero).
    t = jnp.maximum(_conv3x3_bias(feat, w1_ref[...], b1_ref[...]), 0.0)

    @pl.when(pl.program_id(0) == 0)
    def _():                                              # zero border once
        t_ref[...] = jnp.zeros_like(t_ref)

    t_ref[0, 1:H + 1, 1:W + 1, :] = t.astype(t_ref.dtype)

    # conv2 + residual add (residual in f32).
    out = _conv3x3_bias(t_ref[0], w2_ref[...], b2_ref[...]) \
        + feat[1:H + 1, 1:W + 1, :]

    o_ref[...] = jnp.zeros_like(o_ref)                    # zero border
    o_ref[0, 1:H + 1, 1:W + 1, :] = out.astype(o_ref.dtype)


def _conv_last_kernel(feat_ref, xres_ref, w_ref, b_ref, o_ref):
    """out = conv_last(feat) + x; output written unpadded."""
    H, W, Cout = o_ref.shape[1], o_ref.shape[2], o_ref.shape[3]
    acc = _conv3x3_bias(feat_ref[0], w_ref[...], b_ref[...])
    out = acc + xres_ref[0, 1:H + 1, 1:W + 1, :]
    o_ref[...] = out.reshape(1, H, W, Cout).astype(o_ref.dtype)


# ----------------------------------------------------------------------------
# pallas_call wrappers (padded NHWC layout between layers)
# ----------------------------------------------------------------------------
_PARALLEL = pltpu.CompilerParams(dimension_semantics=("parallel",))


def _grid_spec(n_batch, in_specs, out_specs, scratch_shapes=()):
    return pltpu.PrefetchScalarGridSpec(
        num_scalar_prefetch=0,
        grid=(n_batch,),
        in_specs=in_specs,
        out_specs=out_specs,
        scratch_shapes=list(scratch_shapes),
    )


def _prep_wb(w, b):
    """HWIO (3,3,Cin,Cout) -> (9*Cin, Cout) bf16;  bias -> (1, Cout) f32."""
    cin, cout = w.shape[2], w.shape[3]
    return (w.reshape(9 * cin, cout).astype(jnp.bfloat16),
            b.reshape(1, cout).astype(jnp.float32))


def conv_first(x_pad, w, b):
    N, Hp, Wp, Cin = x_pad.shape
    Cf = w.shape[-1]
    w9, b2 = _prep_wb(w, b)
    return pl.pallas_call(
        _conv_first_kernel,
        out_shape=jax.ShapeDtypeStruct((N, Hp, Wp, Cf), jnp.float32),
        grid_spec=_grid_spec(
            N,
            in_specs=[
                pl.BlockSpec((1, Hp, Wp, Cin), lambda n: (n, 0, 0, 0)),
                pl.BlockSpec((9 * Cin, Cf), lambda n: (0, 0)),
                pl.BlockSpec((1, Cf), lambda n: (0, 0)),
            ],
            out_specs=pl.BlockSpec((1, Hp, Wp, Cf), lambda n: (n, 0, 0, 0)),
        ),
        compiler_params=_PARALLEL,
    )(x_pad, w9, b2)


def res_block(feat_pad, w1, b1, w2, b2):
    N, Hp, Wp, C = feat_pad.shape
    w1r, b1r = _prep_wb(w1, b1)
    w2r, b2r = _prep_wb(w2, b2)
    feat_spec = pl.BlockSpec((1, Hp, Wp, C), lambda n: (n, 0, 0, 0))
    w_spec = pl.BlockSpec((9 * C, C), lambda n: (0, 0))
    b_spec = pl.BlockSpec((1, C), lambda n: (0, 0))
    return pl.pallas_call(
        _resblock_kernel,
        out_shape=jax.ShapeDtypeStruct((N, Hp, Wp, C), jnp.float32),
        grid_spec=_grid_spec(
            N,
            in_specs=[feat_spec, w_spec, b_spec, w_spec, b_spec],
            out_specs=feat_spec,
            scratch_shapes=[pltpu.VMEM((1, Hp, Wp, C), jnp.bfloat16)],
        ),
        compiler_params=_PARALLEL,
    )(feat_pad, w1r, b1r, w2r, b2r)


def conv_last(feat_pad, x_pad, w, b):
    N, Hp, Wp, C = feat_pad.shape
    Cin_x = x_pad.shape[-1]
    Cout = w.shape[-1]
    H, W = Hp - 2, Wp - 2
    w9, b2 = _prep_wb(w, b)
    return pl.pallas_call(
        _conv_last_kernel,
        out_shape=jax.ShapeDtypeStruct((N, H, W, Cout), jnp.float32),
        grid_spec=_grid_spec(
            N,
            in_specs=[
                pl.BlockSpec((1, Hp, Wp, C), lambda n: (n, 0, 0, 0)),
                pl.BlockSpec((1, Hp, Wp, Cin_x), lambda n: (n, 0, 0, 0)),
                pl.BlockSpec((9 * C, Cout), lambda n: (0, 0)),
                pl.BlockSpec((1, Cout), lambda n: (0, 0)),
            ],
            out_specs=pl.BlockSpec((1, H, W, Cout), lambda n: (n, 0, 0, 0)),
        ),
        compiler_params=_PARALLEL,
    )(feat_pad, x_pad, w9, b2)


# ----------------------------------------------------------------------------
# PrecodingResNet forward (glue in plain JAX, hot path in Pallas)
# ----------------------------------------------------------------------------
def precoding_resnet_forward(x_nchw, params):
    """Exact semantics of PrecodingResNet.forward (res_scale = 1)."""
    x = jnp.transpose(x_nchw, (0, 2, 3, 1))                 # NCHW -> NHWC
    x_pad = jnp.pad(x, ((0, 0), (1, 1), (1, 1), (0, 0)))    # pad ONCE

    # feat = lrelu(conv_first(x))
    feat = conv_first(x_pad, params["conv_first_w"], params["conv_first_b"])

    # body: num_block x fused ResidualBlockNoBN
    for (w1, b1, w2, b2) in params["body"]:
        feat = res_block(feat, w1, b1, w2, b2)

    # out = conv_last(feat) + x
    out = conv_last(feat, x_pad, params["conv_last_w"], params["conv_last_b"])
    return jnp.transpose(out, (0, 3, 1, 2))                 # NHWC -> NCHW


# ----------------------------------------------------------------------------
# Reference (plain JAX, f32) for correctness check
# ----------------------------------------------------------------------------
def _conv3x3_ref(x, w, b):
    y = jax.lax.conv_general_dilated(
        x, w, window_strides=(1, 1), padding="SAME",
        dimension_numbers=("NHWC", "HWIO", "NHWC"))
    return y + b.reshape(1, 1, 1, -1)


def precoding_resnet_ref(x_nchw, params):
    x = jnp.transpose(x_nchw, (0, 2, 3, 1))
    feat = _conv3x3_ref(x, params["conv_first_w"], params["conv_first_b"])
    feat = jnp.where(feat > 0, feat, 0.1 * feat)
    for (w1, b1, w2, b2) in params["body"]:
        t = jnp.maximum(_conv3x3_ref(feat, w1, b1), 0.0)
        feat = feat + _conv3x3_ref(t, w2, b2)
    out = _conv3x3_ref(feat, params["conv_last_w"], params["conv_last_b"]) + x
    return jnp.transpose(out, (0, 3, 1, 2))


# ----------------------------------------------------------------------------
# Deterministic synthetic parameter init (mimics default_init_weights scale=0.1)
# ----------------------------------------------------------------------------
def init_params(key, num_in_ch, num_out_ch, num_feat, num_block):
    def conv_init(k, cin, cout, scale):
        kw, _ = jax.random.split(k)
        fan_in = 3 * 3 * cin
        std = scale * np.sqrt(2.0 / fan_in)          # kaiming_normal * scale
        w = std * jax.random.normal(kw, (3, 3, cin, cout), jnp.float32)
        b = jnp.zeros((cout,), jnp.float32)
        return w, b

    keys = jax.random.split(key, 2 + 2 * num_block)
    params = {}
    params["conv_first_w"], params["conv_first_b"] = conv_init(
        keys[0], num_in_ch, num_feat, 0.1)
    params["conv_last_w"], params["conv_last_b"] = conv_init(
        keys[1], num_feat, num_out_ch, 0.1)
    body = []
    for i in range(num_block):
        w1, b1 = conv_init(keys[2 + 2 * i], num_feat, num_feat, 0.1)
        w2, b2 = conv_init(keys[3 + 2 * i], num_feat, num_feat, 0.1)
        body.append((w1, b1, w2, b2))
    params["body"] = body
    return params


# ----------------------------------------------------------------------------
if __name__ == "__main__":
    # Small shapes consistent with the module (NCHW input).
    batch, num_in_ch, num_out_ch = 2, 3, 3
    num_feat, num_block = 32, 2
    H = W = 16

    key = jax.random.PRNGKey(0)
    k_x, k_p = jax.random.split(key)
    x = jax.random.normal(k_x, (batch, num_in_ch, H, W), jnp.float32)
    params = init_params(k_p, num_in_ch, num_out_ch, num_feat, num_block)

    fwd = jax.jit(functools.partial(precoding_resnet_forward, params=params))
    out = fwd(x)
    jax.block_until_ready(out)

    assert out.shape == (batch, num_out_ch, H, W)

    # Correctness check against a plain-JAX f32 reference of the same network.
    # Tolerance loosened vs. the pure-f32 kernel because MXU operands are bf16
    # (accumulation stays f32).
    ref = precoding_resnet_ref(x, params)
    np.testing.assert_allclose(np.asarray(out), np.asarray(ref),
                               rtol=2e-2, atol=2e-2)

    print("KERNEL_OK")
</pallas_src>

<mosaic_0001>
module attributes {stable_mosaic.version = 11 : i64} {
  func.func @_conv_first_kernel(%arg0: i32, %arg1: memref<1x18x18x3xf32, #tpu.memory_space<vmem>>, %arg2: memref<27x32xbf16, #tpu.memory_space<vmem>>, %arg3: memref<1x32xf32, #tpu.memory_space<vmem>>, %arg4: memref<1x18x18x32xf32, #tpu.memory_space<vmem>>) attributes {dimension_semantics = [#tpu.dimension_semantics<parallel>], iteration_bounds = array<i64: 2>, scalar_prefetch = 0 : i64, scratch_operands = 0 : i64, tpu.core_type = #tpu.core_type<tc>, window_params = [{transform_indices = @transform_0, window_bounds = array<i64: 1, 18, 18, 3>}, {pipeline_mode = #tpu.pipeline_mode<synchronous>, transform_indices = @transform_1, window_bounds = array<i64: 27, 32>}, {pipeline_mode = #tpu.pipeline_mode<synchronous>, transform_indices = @transform_2, window_bounds = array<i64: 1, 32>}, {transform_indices = @transform_3, window_bounds = array<i64: 1, 18, 18, 32>}]} {
    %c0 = arith.constant 0 : index
    %c0_0 = arith.constant 0 : index
    %c0_1 = arith.constant 0 : index
    %c0_2 = arith.constant 0 : index
    %0 = vector.load %arg1[%c0, %c0_0, %c0_1, %c0_2] : memref<1x18x18x3xf32, #tpu.memory_space<vmem>>, vector<1x18x18x3xf32>
    %1 = vector.shape_cast %0 : vector<1x18x18x3xf32> to vector<18x18x3xf32>
    %c0_3 = arith.constant 0 : index
    %c0_4 = arith.constant 0 : index
    %2 = vector.load %arg2[%c0_3, %c0_4] : memref<27x32xbf16, #tpu.memory_space<vmem>>, vector<27x32xbf16>
    %c0_5 = arith.constant 0 : index
    %c0_6 = arith.constant 0 : index
    %3 = vector.load %arg3[%c0_5, %c0_6] : memref<1x32xf32, #tpu.memory_space<vmem>>, vector<1x32xf32>
    %4 = arith.truncf %1 : vector<18x18x3xf32> to vector<18x18x3xbf16>
    %5 = vector.extract_strided_slice %4 {offsets = [0, 0, 0], sizes = [16, 16, 3], strides = [1, 1, 1]} : vector<18x18x3xbf16> to vector<16x16x3xbf16>
    %6 = vector.extract_strided_slice %4 {offsets = [0, 1, 0], sizes = [16, 16, 3], strides = [1, 1, 1]} : vector<18x18x3xbf16> to vector<16x16x3xbf16>
    %7 = vector.extract_strided_slice %4 {offsets = [0, 2, 0], sizes = [16, 16, 3], strides = [1, 1, 1]} : vector<18x18x3xbf16> to vector<16x16x3xbf16>
    %8 = vector.extract_strided_slice %4 {offsets = [1, 0, 0], sizes = [16, 16, 3], strides = [1, 1, 1]} : vector<18x18x3xbf16> to vector<16x16x3xbf16>
    %9 = vector.extract_strided_slice %4 {offsets = [1, 1, 0], sizes = [16, 16, 3], strides = [1, 1, 1]} : vector<18x18x3xbf16> to vector<16x16x3xbf16>
    %10 = vector.extract_strided_slice %4 {offsets = [1, 2, 0], sizes = [16, 16, 3], strides = [1, 1, 1]} : vector<18x18x3xbf16> to vector<16x16x3xbf16>
    %11 = vector.extract_strided_slice %4 {offsets = [2, 0, 0], sizes = [16, 16, 3], strides = [1, 1, 1]} : vector<18x18x3xbf16> to vector<16x16x3xbf16>
    %12 = vector.extract_strided_slice %4 {offsets = [2, 1, 0], sizes = [16, 16, 3], strides = [1, 1, 1]} : vector<18x18x3xbf16> to vector<16x16x3xbf16>
    %13 = vector.extract_strided_slice %4 {offsets = [2, 2, 0], sizes = [16, 16, 3], strides = [1, 1, 1]} : vector<18x18x3xbf16> to vector<16x16x3xbf16>
    %14 = tpu.concatenate %5, %6, %7, %8, %9, %10, %11, %12, %13 in 2 : vector<16x16x3xbf16>, vector<16x16x3xbf16>, vector<16x16x3xbf16>, vector<16x16x3xbf16>, vector<16x16x3xbf16>, vector<16x16x3xbf16>, vector<16x16x3xbf16>, vector<16x16x3xbf16>, vector<16x16x3xbf16> -> vector<16x16x27xbf16>
    %15 = vector.shape_cast %14 : vector<16x16x27xbf16> to vector<256x27xbf16>
    %cst = arith.constant dense<0.000000e+00> : vector<256x32xf32>
    %16 = tpu.matmul %15, %2, %cst {dimension_numbers = #tpu.dot_dimension_numbers<[1], [0], [0], [1], [0, 0, 1, 1], [], []>} : vector<256x27xbf16>, vector<27x32xbf16>, vector<256x32xf32> -> vector<256x32xf32>
    %17 = vector.broadcast %3 : vector<1x32xf32> to vector<256x32xf32>
    %18 = arith.addf %16, %17 : vector<256x32xf32>
    %19 = vector.shape_cast %18 : vector<256x32xf32> to vector<16x16x32xf32>
    %cst_7 = arith.constant 0.000000e+00 : f32
    %20 = vector.broadcast %cst_7 : f32 to vector<16x16x32xf32>
    %21 = arith.cmpf ogt, %19, %20 : vector<16x16x32xf32>
    %cst_8 = arith.constant 1.000000e-01 : f32
    %22 = vector.broadcast %cst_8 : f32 to vector<16x16x32xf32>
    %23 = arith.mulf %22, %19 : vector<16x16x32xf32>
    %24 = arith.select %21, %19, %23 : vector<16x16x32xi1>, vector<16x16x32xf32>
    %cst_9 = arith.constant 0.000000e+00 : f32
    %25 = vector.broadcast %cst_9 : f32 to vector<1x18x18x32xf32>
    %c0_10 = arith.constant 0 : index
    %c0_11 = arith.constant 0 : index
    %c0_12 = arith.constant 0 : index
    %c0_13 = arith.constant 0 : index
    %26 = vector.load %arg4[%c0_10, %c0_11, %c0_12, %c0_13] : memref<1x18x18x32xf32, #tpu.memory_space<vmem>>, vector<1x18x18x32xf32>
    tpu.vector_store %arg4[%c0_10, %c0_11, %c0_12, %c0_13], %25 {strides = array<i32>} : memref<1x18x18x32xf32, #tpu.memory_space<vmem>>, vector<1x18x18x32xf32>,
    %c0_14 = arith.constant 0 : index
    %c1 = arith.constant 1 : index
    %c1_15 = arith.constant 1 : index
    %c0_16 = arith.constant 0 : index
    %27 = vector.load %arg4[%c0_14, %c1, %c1_15, %c0_16] : memref<1x18x18x32xf32, #tpu.memory_space<vmem>>, vector<1x16x16x32xf32>
    %28 = vector.shape_cast %27 : vector<1x16x16x32xf32> to vector<16x16x32xf32>
    %29 = vector.shape_cast %24 : vector<16x16x32xf32> to vector<1x16x16x32xf32>
    tpu.vector_store %arg4[%c0_14, %c1, %c1_15, %c0_16], %29 {strides = array<i32>} : memref<1x18x18x32xf32, #tpu.memory_space<vmem>>, vector<1x16x16x32xf32>,
    return
  }
  func.func @transform_0(%arg0: i32) -> (i32, i32, i32, i32) {
    %c0_i32 = arith.constant 0 : i32
    %c0_i32_0 = arith.constant 0 : i32
    %c0_i32_1 = arith.constant 0 : i32
    %c0_i32_2 = arith.constant 0 : i32
    return %arg0, %c0_i32, %c0_i32_0, %c0_i32_1 : i32, i32, i32, i32
  }
  func.func @transform_1(%arg0: i32) -> (i32, i32) {
    %c0_i32 = arith.constant 0 : i32
    %c0_i32_0 = arith.constant 0 : i32
    %c0_i32_1 = arith.constant 0 : i32
    return %c0_i32, %c0_i32_0 : i32, i32
  }
  func.func @transform_2(%arg0: i32) -> (i32, i32) {
    %c0_i32 = arith.constant 0 : i32
    %c0_i32_0 = arith.constant 0 : i32
    %c0_i32_1 = arith.constant 0 : i32
    return %c0_i32, %c0_i32_0 : i32, i32
  }
  func.func @transform_3(%arg0: i32) -> (i32, i32, i32, i32) {
    %c0_i32 = arith.constant 0 : i32
    %c0_i32_0 = arith.constant 0 : i32
    %c0_i32_1 = arith.constant 0 : i32
    %c0_i32_2 = arith.constant 0 : i32
    return %arg0, %c0_i32, %c0_i32_0, %c0_i32_1 : i32, i32, i32, i32
  }
}

module attributes {stable_mosaic.version = 11 : i64} {
  func.func @_conv_last_kernel(%arg0: i32, %arg1: memref<1x18x18x32xf32, #tpu.memory_space<vmem>>, %arg2: memref<1x18x18x3xf32, #tpu.memory_space<vmem>>, %arg3: memref<288x3xbf16, #tpu.memory_space<vmem>>, %arg4: memref<1x3xf32, #tpu.memory_space<vmem>>, %arg5: memref<1x16x16x3xf32, #tpu.memory_space<vmem>>) attributes {dimension_semantics = [#tpu.dimension_semantics<parallel>], iteration_bounds = array<i64: 2>, scalar_prefetch = 0 : i64, scratch_operands = 0 : i64, tpu.core_type = #tpu.core_type<tc>, window_params = [{transform_indices = @transform_0, window_bounds = array<i64: 1, 18, 18, 32>}, {transform_indices = @transform_1, window_bounds = array<i64: 1, 18, 18, 3>}, {pipeline_mode = #tpu.pipeline_mode<synchronous>, transform_indices = @transform_2, window_bounds = array<i64: 288, 3>}, {pipeline_mode = #tpu.pipeline_mode<synchronous>, transform_indices = @transform_3, window_bounds = array<i64: 1, 3>}, {transform_indices = @transform_4, window_bounds = array<i64: 1, 16, 16, 3>}]} {
    %c0 = arith.constant 0 : index
    %c0_0 = arith.constant 0 : index
    %c0_1 = arith.constant 0 : index
    %c0_2 = arith.constant 0 : index
    %0 = vector.load %arg1[%c0, %c0_0, %c0_1, %c0_2] : memref<1x18x18x32xf32, #tpu.memory_space<vmem>>, vector<1x18x18x32xf32>
    %1 = vector.shape_cast %0 : vector<1x18x18x32xf32> to vector<18x18x32xf32>
    %c0_3 = arith.constant 0 : index
    %c0_4 = arith.constant 0 : index
    %2 = vector.load %arg3[%c0_3, %c0_4] : memref<288x3xbf16, #tpu.memory_space<vmem>>, vector<288x3xbf16>
    %c0_5 = arith.constant 0 : index
    %c0_6 = arith.constant 0 : index
    %3 = vector.load %arg4[%c0_5, %c0_6] : memref<1x3xf32, #tpu.memory_space<vmem>>, vector<1x3xf32>
    %4 = arith.truncf %1 : vector<18x18x32xf32> to vector<18x18x32xbf16>
    %5 = vector.extract_strided_slice %4 {offsets = [0, 0, 0], sizes = [16, 16, 32], strides = [1, 1, 1]} : vector<18x18x32xbf16> to vector<16x16x32xbf16>
    %6 = vector.extract_strided_slice %4 {offsets = [0, 1, 0], sizes = [16, 16, 32], strides = [1, 1, 1]} : vector<18x18x32xbf16> to vector<16x16x32xbf16>
    %7 = vector.extract_strided_slice %4 {offsets = [0, 2, 0], sizes = [16, 16, 32], strides = [1, 1, 1]} : vector<18x18x32xbf16> to vector<16x16x32xbf16>
    %8 = vector.extract_strided_slice %4 {offsets = [1, 0, 0], sizes = [16, 16, 32], strides = [1, 1, 1]} : vector<18x18x32xbf16> to vector<16x16x32xbf16>
    %9 = vector.extract_strided_slice %4 {offsets = [1, 1, 0], sizes = [16, 16, 32], strides = [1, 1, 1]} : vector<18x18x32xbf16> to vector<16x16x32xbf16>
    %10 = vector.extract_strided_slice %4 {offsets = [1, 2, 0], sizes = [16, 16, 32], strides = [1, 1, 1]} : vector<18x18x32xbf16> to vector<16x16x32xbf16>
    %11 = vector.extract_strided_slice %4 {offsets = [2, 0, 0], sizes = [16, 16, 32], strides = [1, 1, 1]} : vector<18x18x32xbf16> to vector<16x16x32xbf16>
    %12 = vector.extract_strided_slice %4 {offsets = [2, 1, 0], sizes = [16, 16, 32], strides = [1, 1, 1]} : vector<18x18x32xbf16> to vector<16x16x32xbf16>
    %13 = vector.extract_strided_slice %4 {offsets = [2, 2, 0], sizes = [16, 16, 32], strides = [1, 1, 1]} : vector<18x18x32xbf16> to vector<16x16x32xbf16>
    %14 = tpu.concatenate %5, %6, %7, %8, %9, %10, %11, %12, %13 in 2 : vector<16x16x32xbf16>, vector<16x16x32xbf16>, vector<16x16x32xbf16>, vector<16x16x32xbf16>, vector<16x16x32xbf16>, vector<16x16x32xbf16>, vector<16x16x32xbf16>, vector<16x16x32xbf16>, vector<16x16x32xbf16> -> vector<16x16x288xbf16>
    %15 = vector.shape_cast %14 : vector<16x16x288xbf16> to vector<256x288xbf16>
    %cst = arith.constant dense<0.000000e+00> : vector<256x3xf32>
    %16 = tpu.matmul %15, %2, %cst {dimension_numbers = #tpu.dot_dimension_numbers<[1], [0], [0], [1], [0, 0, 1, 1], [], []>} : vector<256x288xbf16>, vector<288x3xbf16>, vector<256x3xf32> -> vector<256x3xf32>
    %17 = vector.broadcast %3 : vector<1x3xf32> to vector<256x3xf32>
    %18 = arith.addf %16, %17 : vector<256x3xf32>
    %19 = vector.shape_cast %18 : vector<256x3xf32> to vector<16x16x3xf32>
    %c0_7 = arith.constant 0 : index
    %c1 = arith.constant 1 : index
    %c1_8 = arith.constant 1 : index
    %c0_9 = arith.constant 0 : index
    %20 = vector.load %arg2[%c0_7, %c1, %c1_8, %c0_9] : memref<1x18x18x3xf32, #tpu.memory_space<vmem>>, vector<1x16x16x3xf32>
    %21 = vector.shape_cast %20 : vector<1x16x16x3xf32> to vector<16x16x3xf32>
    %22 = arith.addf %19, %21 : vector<16x16x3xf32>
    %23 = vector.shape_cast %22 : vector<16x16x3xf32> to vector<1x16x16x3xf32>
    %c0_10 = arith.constant 0 : index
    %c0_11 = arith.constant 0 : index
    %c0_12 = arith.constant 0 : index
    %c0_13 = arith.constant 0 : index
    %24 = vector.load %arg5[%c0_10, %c0_11, %c0_12, %c0_13] : memref<1x16x16x3xf32, #tpu.memory_space<vmem>>, vector<1x16x16x3xf32>
    tpu.vector_store %arg5[%c0_10, %c0_11, %c0_12, %c0_13], %23 {strides = array<i32>} : memref<1x16x16x3xf32, #tpu.memory_space<vmem>>, vector<1x16x16x3xf32>,
    return
  }
  func.func @transform_0(%arg0: i32) -> (i32, i32, i32, i32) {
    %c0_i32 = arith.constant 0 : i32
    %c0_i32_0 = arith.constant 0 : i32
    %c0_i32_1 = arith.constant 0 : i32
    %c0_i32_2 = arith.constant 0 : i32
    return %arg0, %c0_i32, %c0_i32_0, %c0_i32_1 : i32, i32, i32, i32
  }
  func.func @transform_1(%arg0: i32) -> (i32, i32, i32, i32) {
    %c0_i32 = arith.constant 0 : i32
    %c0_i32_0 = arith.constant 0 : i32
    %c0_i32_1 = arith.constant 0 : i32
    %c0_i32_2 = arith.constant 0 : i32
    return %arg0, %c0_i32, %c0_i32_0, %c0_i32_1 : i32, i32, i32, i32
  }
  func.func @transform_2(%arg0: i32) -> (i32, i32) {
    %c0_i32 = arith.constant 0 : i32
    %c0_i32_0 = arith.constant 0 : i32
    %c0_i32_1 = arith.constant 0 : i32
    return %c0_i32, %c0_i32_0 : i32, i32
  }
  func.func @transform_3(%arg0: i32) -> (i32, i32) {
    %c0_i32 = arith.constant 0 : i32
    %c0_i32_0 = arith.constant 0 : i32
    %c0_i32_1 = arith.constant 0 : i32
    return %c0_i32, %c0_i32_0 : i32, i32
  }
  func.func @transform_4(%arg0: i32) -> (i32, i32, i32, i32) {
    %c0_i32 = arith.constant 0 : i32
    %c0_i32_0 = arith.constant 0 : i32
    %c0_i32_1 = arith.constant 0 : i32
    %c0_i32_2 = arith.constant 0 : i32
    return %arg0, %c0_i32, %c0_i32_0, %c0_i32_1 : i32, i32, i32, i32
  }
}

module attributes {stable_mosaic.version = 11 : i64} {
  func.func @_resblock_kernel(%arg0: i32, %arg1: memref<1x18x18x32xf32, #tpu.memory_space<vmem>>, %arg2: memref<288x32xbf16, #tpu.memory_space<vmem>>, %arg3: memref<1x32xf32, #tpu.memory_space<vmem>>, %arg4: memref<288x32xbf16, #tpu.memory_space<vmem>>, %arg5: memref<1x32xf32, #tpu.memory_space<vmem>>, %arg6: memref<1x18x18x32xf32, #tpu.memory_space<vmem>>, %arg7: memref<1x18x18x32xbf16, #tpu.memory_space<vmem>>) attributes {dimension_semantics = [#tpu.dimension_semantics<parallel>], iteration_bounds = array<i64: 2>, scalar_prefetch = 0 : i64, scratch_operands = 1 : i64, tpu.core_type = #tpu.core_type<tc>, window_params = [{transform_indices = @transform_0, window_bounds = array<i64: 1, 18, 18, 32>}, {pipeline_mode = #tpu.pipeline_mode<synchronous>, transform_indices = @transform_1, window_bounds = array<i64: 288, 32>}, {pipeline_mode = #tpu.pipeline_mode<synchronous>, transform_indices = @transform_2, window_bounds = array<i64: 1, 32>}, {pipeline_mode = #tpu.pipeline_mode<synchronous>, transform_indices = @transform_3, window_bounds = array<i64: 288, 32>}, {pipeline_mode = #tpu.pipeline_mode<synchronous>, transform_indices = @transform_4, window_bounds = array<i64: 1, 32>}, {transform_indices = @transform_5, window_bounds = array<i64: 1, 18, 18, 32>}]} {
    %c0 = arith.constant 0 : index
    %c0_0 = arith.constant 0 : index
    %c0_1 = arith.constant 0 : index
    %c0_2 = arith.constant 0 : index
    %0 = vector.load %arg1[%c0, %c0_0, %c0_1, %c0_2] : memref<1x18x18x32xf32, #tpu.memory_space<vmem>>, vector<1x18x18x32xf32>
    %1 = vector.shape_cast %0 : vector<1x18x18x32xf32> to vector<18x18x32xf32>
    %c0_3 = arith.constant 0 : index
    %c0_4 = arith.constant 0 : index
    %2 = vector.load %arg2[%c0_3, %c0_4] : memref<288x32xbf16, #tpu.memory_space<vmem>>, vector<288x32xbf16>
    %c0_5 = arith.constant 0 : index
    %c0_6 = arith.constant 0 : index
    %3 = vector.load %arg3[%c0_5, %c0_6] : memref<1x32xf32, #tpu.memory_space<vmem>>, vector<1x32xf32>
    %4 = arith.truncf %1 : vector<18x18x32xf32> to vector<18x18x32xbf16>
    %5 = vector.extract_strided_slice %4 {offsets = [0, 0, 0], sizes = [16, 16, 32], strides = [1, 1, 1]} : vector<18x18x32xbf16> to vector<16x16x32xbf16>
    %6 = vector.extract_strided_slice %4 {offsets = [0, 1, 0], sizes = [16, 16, 32], strides = [1, 1, 1]} : vector<18x18x32xbf16> to vector<16x16x32xbf16>
    %7 = vector.extract_strided_slice %4 {offsets = [0, 2, 0], sizes = [16, 16, 32], strides = [1, 1, 1]} : vector<18x18x32xbf16> to vector<16x16x32xbf16>
    %8 = vector.extract_strided_slice %4 {offsets = [1, 0, 0], sizes = [16, 16, 32], strides = [1, 1, 1]} : vector<18x18x32xbf16> to vector<16x16x32xbf16>
    %9 = vector.extract_strided_slice %4 {offsets = [1, 1, 0], sizes = [16, 16, 32], strides = [1, 1, 1]} : vector<18x18x32xbf16> to vector<16x16x32xbf16>
    %10 = vector.extract_strided_slice %4 {offsets = [1, 2, 0], sizes = [16, 16, 32], strides = [1, 1, 1]} : vector<18x18x32xbf16> to vector<16x16x32xbf16>
    %11 = vector.extract_strided_slice %4 {offsets = [2, 0, 0], sizes = [16, 16, 32], strides = [1, 1, 1]} : vector<18x18x32xbf16> to vector<16x16x32xbf16>
    %12 = vector.extract_strided_slice %4 {offsets = [2, 1, 0], sizes = [16, 16, 32], strides = [1, 1, 1]} : vector<18x18x32xbf16> to vector<16x16x32xbf16>
    %13 = vector.extract_strided_slice %4 {offsets = [2, 2, 0], sizes = [16, 16, 32], strides = [1, 1, 1]} : vector<18x18x32xbf16> to vector<16x16x32xbf16>
    %14 = tpu.concatenate %5, %6, %7, %8, %9, %10, %11, %12, %13 in 2 : vector<16x16x32xbf16>, vector<16x16x32xbf16>, vector<16x16x32xbf16>, vector<16x16x32xbf16>, vector<16x16x32xbf16>, vector<16x16x32xbf16>, vector<16x16x32xbf16>, vector<16x16x32xbf16>, vector<16x16x32xbf16> -> vector<16x16x288xbf16>
    %15 = vector.shape_cast %14 : vector<16x16x288xbf16> to vector<256x288xbf16>
    %cst = arith.constant dense<0.000000e+00> : vector<256x32xf32>
    %16 = tpu.matmul %15, %2, %cst {dimension_numbers = #tpu.dot_dimension_numbers<[1], [0], [0], [1], [0, 0, 1, 1], [], []>} : vector<256x288xbf16>, vector<288x32xbf16>, vector<256x32xf32> -> vector<256x32xf32>
    %17 = vector.broadcast %3 : vector<1x32xf32> to vector<256x32xf32>
    %18 = arith.addf %16, %17 : vector<256x32xf32>
    %19 = vector.shape_cast %18 : vector<256x32xf32> to vector<16x16x32xf32>
    %cst_7 = arith.constant 0.000000e+00 : f32
    %20 = vector.broadcast %cst_7 : f32 to vector<16x16x32xf32>
    %21 = arith.maximumf %19, %20 : vector<16x16x32xf32>
    %c0_i32 = arith.constant 0 : i32
    %22 = arith.cmpi eq, %arg0, %c0_i32 : i32
    %23 = arith.extui %22 : i1 to i32
    %c0_i32_8 = arith.constant 0 : i32
    %24 = arith.cmpi ne, %23, %c0_i32_8 : i32
    scf.if %24 {
      %cst_30 = arith.constant 0.000000e+00 : bf16
      %55 = vector.broadcast %cst_30 : bf16 to vector<1x18x18x32xbf16>
      %c0_31 = arith.constant 0 : index
      %c0_32 = arith.constant 0 : index
      %c0_33 = arith.constant 0 : index
      %c0_34 = arith.constant 0 : index
      %56 = vector.load %arg7[%c0_31, %c0_32, %c0_33, %c0_34] : memref<1x18x18x32xbf16, #tpu.memory_space<vmem>>, vector<1x18x18x32xbf16>
      tpu.vector_store %arg7[%c0_31, %c0_32, %c0_33, %c0_34], %55 {strides = array<i32>} : memref<1x18x18x32xbf16, #tpu.memory_space<vmem>>, vector<1x18x18x32xbf16>,
    } else {
    }
    %25 = arith.truncf %21 : vector<16x16x32xf32> to vector<16x16x32xbf16>
    %c0_9 = arith.constant 0 : index
    %c1 = arith.constant 1 : index
    %c1_10 = arith.constant 1 : index
    %c0_11 = arith.constant 0 : index
    %26 = vector.load %arg7[%c0_9, %c1, %c1_10, %c0_11] : memref<1x18x18x32xbf16, #tpu.memory_space<vmem>>, vector<1x16x16x32xbf16>
    %27 = vector.shape_cast %26 : vector<1x16x16x32xbf16> to vector<16x16x32xbf16>
    %28 = vector.shape_cast %25 : vector<16x16x32xbf16> to vector<1x16x16x32xbf16>
    tpu.vector_store %arg7[%c0_9, %c1, %c1_10, %c0_11], %28 {strides = array<i32>} : memref<1x18x18x32xbf16, #tpu.memory_space<vmem>>, vector<1x16x16x32xbf16>,
    %c0_12 = arith.constant 0 : index
    %c0_13 = arith.constant 0 : index
    %c0_14 = arith.constant 0 : index
    %c0_15 = arith.constant 0 : index
    %29 = vector.load %arg7[%c0_12, %c0_13, %c0_14, %c0_15] : memref<1x18x18x32xbf16, #tpu.memory_space<vmem>>, vector<1x18x18x32xbf16>
    %30 = vector.shape_cast %29 : vector<1x18x18x32xbf16> to vector<18x18x32xbf16>
    %c0_16 = arith.constant 0 : index
    %c0_17 = arith.constant 0 : index
    %31 = vector.load %arg4[%c0_16, %c0_17] : memref<288x32xbf16, #tpu.memory_space<vmem>>, vector<288x32xbf16>
    %c0_18 = arith.constant 0 : index
    %c0_19 = arith.constant 0 : index
    %32 = vector.load %arg5[%c0_18, %c0_19] : memref<1x32xf32, #tpu.memory_space<vmem>>, vector<1x32xf32>
    %33 = vector.extract_strided_slice %30 {offsets = [0, 0, 0], sizes = [16, 16, 32], strides = [1, 1, 1]} : vector<18x18x32xbf16> to vector<16x16x32xbf16>
    %34 = vector.extract_strided_slice %30 {offsets = [0, 1, 0], sizes = [16, 16, 32], strides = [1, 1, 1]} : vector<18x18x32xbf16> to vector<16x16x32xbf16>
    %35 = vector.extract_strided_slice %30 {offsets = [0, 2, 0], sizes = [16, 16, 32], strides = [1, 1, 1]} : vector<18x18x32xbf16> to vector<16x16x32xbf16>
    %36 = vector.extract_strided_slice %30 {offsets = [1, 0, 0], sizes = [16, 16, 32], strides = [1, 1, 1]} : vector<18x18x32xbf16> to vector<16x16x32xbf16>
    %37 = vector.extract_strided_slice %30 {offsets = [1, 1, 0], sizes = [16, 16, 32], strides = [1, 1, 1]} : vector<18x18x32xbf16> to vector<16x16x32xbf16>
    %38 = vector.extract_strided_slice %30 {offsets = [1, 2, 0], sizes = [16, 16, 32], strides = [1, 1, 1]} : vector<18x18x32xbf16> to vector<16x16x32xbf16>
    %39 = vector.extract_strided_slice %30 {offsets = [2, 0, 0], sizes = [16, 16, 32], strides = [1, 1, 1]} : vector<18x18x32xbf16> to vector<16x16x32xbf16>
    %40 = vector.extract_strided_slice %30 {offsets = [2, 1, 0], sizes = [16, 16, 32], strides = [1, 1, 1]} : vector<18x18x32xbf16> to vector<16x16x32xbf16>
    %41 = vector.extract_strided_slice %30 {offsets = [2, 2, 0], sizes = [16, 16, 32], strides = [1, 1, 1]} : vector<18x18x32xbf16> to vector<16x16x32xbf16>
    %42 = tpu.concatenate %33, %34, %35, %36, %37, %38, %39, %40, %41 in 2 : vector<16x16x32xbf16>, vector<16x16x32xbf16>, vector<16x16x32xbf16>, vector<16x16x32xbf16>, vector<16x16x32xbf16>, vector<16x16x32xbf16>, vector<16x16x32xbf16>, vector<16x16x32xbf16>, vector<16x16x32xbf16> -> vector<16x16x288xbf16>
    %43 = vector.shape_cast %42 : vector<16x16x288xbf16> to vector<256x288xbf16>
    %cst_20 = arith.constant dense<0.000000e+00> : vector<256x32xf32>
    %44 = tpu.matmul %43, %31, %cst_20 {dimension_numbers = #tpu.dot_dimension_numbers<[1], [0], [0], [1], [0, 0, 1, 1], [], []>} : vector<256x288xbf16>, vector<288x32xbf16>, vector<256x32xf32> -> vector<256x32xf32>
    %45 = vector.broadcast %32 : vector<1x32xf32> to vector<256x32xf32>
    %46 = arith.addf %44, %45 : vector<256x32xf32>
    %47 = vector.shape_cast %46 : vector<256x32xf32> to vector<16x16x32xf32>
    %48 = vector.extract_strided_slice %1 {offsets = [1, 1, 0], sizes = [16, 16, 32], strides = [1, 1, 1]} : vector<18x18x32xf32> to vector<16x16x32xf32>
    %49 = arith.addf %47, %48 : vector<16x16x32xf32>
    %cst_21 = arith.constant 0.000000e+00 : f32
    %50 = vector.broadcast %cst_21 : f32 to vector<1x18x18x32xf32>
    %c0_22 = arith.constant 0 : index
    %c0_23 = arith.constant 0 : index
    %c0_24 = arith.constant 0 : index
    %c0_25 = arith.constant 0 : index
    %51 = vector.load %arg6[%c0_22, %c0_23, %c0_24, %c0_25] : memref<1x18x18x32xf32, #tpu.memory_space<vmem>>, vector<1x18x18x32xf32>
    tpu.vector_store %arg6[%c0_22, %c0_23, %c0_24, %c0_25], %50 {strides = array<i32>} : memref<1x18x18x32xf32, #tpu.memory_space<vmem>>, vector<1x18x18x32xf32>,
    %c0_26 = arith.constant 0 : index
    %c1_27 = arith.constant 1 : index
    %c1_28 = arith.constant 1 : index
    %c0_29 = arith.constant 0 : index
    %52 = vector.load %arg6[%c0_26, %c1_27, %c1_28, %c0_29] : memref<1x18x18x32xf32, #tpu.memory_space<vmem>>, vector<1x16x16x32xf32>
    %53 = vector.shape_cast %52 : vector<1x16x16x32xf32> to vector<16x16x32xf32>
    %54 = vector.shape_cast %49 : vector<16x16x32xf32> to vector<1x16x16x32xf32>
    tpu.vector_store %arg6[%c0_26, %c1_27, %c1_28, %c0_29], %54 {strides = array<i32>} : memref<1x18x18x32xf32, #tpu.memory_space<vmem>>, vector<1x16x16x32xf32>,
    return
  }
  func.func @transform_0(%arg0: i32) -> (i32, i32, i32, i32) {
    %c0_i32 = arith.constant 0 : i32
    %c0_i32_0 = arith.constant 0 : i32
    %c0_i32_1 = arith.constant 0 : i32
    %c0_i32_2 = arith.constant 0 : i32
    return %arg0, %c0_i32, %c0_i32_0, %c0_i32_1 : i32, i32, i32, i32
  }
  func.func @transform_1(%arg0: i32) -> (i32, i32) {
    %c0_i32 = arith.constant 0 : i32
    %c0_i32_0 = arith.constant 0 : i32
    %c0_i32_1 = arith.constant 0 : i32
    return %c0_i32, %c0_i32_0 : i32, i32
  }
  func.func @transform_2(%arg0: i32) -> (i32, i32) {
    %c0_i32 = arith.constant 0 : i32
    %c0_i32_0 = arith.constant 0 : i32
    %c0_i32_1 = arith.constant 0 : i32
    return %c0_i32, %c0_i32_0 : i32, i32
  }
  func.func @transform_3(%arg0: i32) -> (i32, i32) {
    %c0_i32 = arith.constant 0 : i32
    %c0_i32_0 = arith.constant 0 : i32
    %c0_i32_1 = arith.constant 0 : i32
    return %c0_i32, %c0_i32_0 : i32, i32
  }
  func.func @transform_4(%arg0: i32) -> (i32, i32) {
    %c0_i32 = arith.constant 0 : i32
    %c0_i32_0 = arith.constant 0 : i32
    %c0_i32_1 = arith.constant 0 : i32
    return %c0_i32, %c0_i32_0 : i32, i32
  }
  func.func @transform_5(%arg0: i32) -> (i32, i32, i32, i32) {
    %c0_i32 = arith.constant 0 : i32
    %c0_i32_0 = arith.constant 0 : i32
    %c0_i32_1 = arith.constant 0 : i32
    %c0_i32_2 = arith.constant 0 : i32
    return %arg0, %c0_i32, %c0_i32_0, %c0_i32_1 : i32, i32, i32, i32
  }
}

</mosaic_0001>

<llo_original>
// kernel: precoding_resnet_forward.7
$region0: #{precoding_resnet_forward.7}
  #allocation0 [shape = 'u32[]', space=smem, size = 0x4, offset = 0x4, fixed_abs, tag = 'smem constant byte address 0x4 - core index']
  #allocation1 [shape = 'u32[72,128]{1,0:T(1,128)}', space=vmem, size = 0x9000, scoped, tag = 'internal scratch']
  %s0 = inlined_call_operand.vmem [shape: f32[2,18,18,32], index: 0, kind: input, shape index: {}]
  %s1 = inlined_call_operand.vmem [shape: f32[2,18,18,3], index: 1, kind: input, shape index: {}]
  %s2 = inlined_call_operand.vmem [shape: bf16[288,3], index: 2, kind: input, shape index: {}]
  %s3 = inlined_call_operand.vmem [shape: f32[1,3], index: 3, kind: input, shape index: {}]
  %s4 = inlined_call_operand.vmem [shape: f32[2,16,16,3], index: 4, kind: output, shape index: {}]
  %s5 = sld [smem:[#allocation0]]
  $region49: #{precoding_resnet_forward.7} parent=0
    _
  %s7 = ssub.s32 1, %s5
  %s8 = scalar_select 0, %s7, %s5
  loop: start=0, step=1, limit=4
  $region2: #{precoding_resnet_forward.7} parent=0 // loop_pre_header
    _
  $region3: #{precoding_resnet_forward.7} parent=0 // loop_header
    %s10 = sphi 0, %s14
    %p11 = scmp.ge.s32.totalorder %s10, 4
    %s20 = sphi 0, %s22
    %s23 = sphi 0, %s20
    %s24 = sphi 0, %s23
    %s40 = sphi 0, %s24
    %s46 = sphi 0, %s48
    %s49 = sphi 0, %s46
    %s50 = sphi 0, %s49
    %s66 = sphi 0, %s50
    %s70 = sphi 0, %s70
    %s72 = sphi 0, %s70
    %s73 = sphi 0, %s72
    %s87 = sphi 0, %s73
    %s91 = sphi 0, %s91
    %s93 = sphi 0, %s91
    %s94 = sphi 0, %s93
    %s108 = sphi 0, %s94
    %s114 = sphi 0, %s116
    %s117 = sphi 0, %s114
    %s118 = sphi 0, %s117
    %s134 = sphi 0, %s118
  $region4: #{precoding_resnet_forward.7} parent=0 // loop_header_branch
    %13 = sbr.rel (%p11) target = $region8
  $region5: #{precoding_resnet_forward.7} parent=0 // loop_body
    %s15 = ssub.s32 %s10, 1
    %s16 = ssub.s32 %s10, 2
    %s17 = sadd.s32 %s10, 1
    %s18 = ssub.s32 %s10, %s17
    %p19 = scmp.eq.s32.totalorder %s18, 0
    %s21 = sadd.s32 %s20, 1
    %s22 = scalar_select %p19, %s20, %s21
    %p25 = pneg %p19
    %p26 = scmp.eq.s32.totalorder %s10, 1
    %p27 = por %p25, %p26
    %p28 = scmp.ne.s32.totalorder %s20, %s23
    %p29 = scmp.eq.s32.totalorder %s10, 0
    %p30 = por %p28, %p29
    %p31 = scmp.ne.s32.totalorder %s20, %s23
    %p32 = scmp.eq.s32.totalorder %s15, 1
    %p33 = por %p31, %p32
    %p34 = scmp.ne.s32.totalorder %s23, %s24
    %p35 = scmp.eq.s32.totalorder %s15, 0
    %p36 = por %p34, %p35
    %p37 = scmp.ne.s32.totalorder %s23, %s24
    %p38 = scmp.eq.s32.totalorder %s16, 1
    %p39 = por %p37, %p38
    %p41 = scmp.ne.s32.totalorder %s24, %s40
    %p42 = scmp.eq.s32.totalorder %s16, 0
    %p43 = por %p41, %p42
    %s44 = ssub.s32 %s10, %s17
    %p45 = scmp.eq.s32.totalorder %s44, 0
    %s47 = sadd.s32 %s46, 1
    %s48 = scalar_select %p45, %s46, %s47
    %p51 = pneg %p45
    %p52 = scmp.eq.s32.totalorder %s10, 1
    %p53 = por %p51, %p52
    %p54 = scmp.ne.s32.totalorder %s46, %s49
    %p55 = scmp.eq.s32.totalorder %s10, 0
    %p56 = por %p54, %p55
    %p57 = scmp.ne.s32.totalorder %s46, %s49
    %p58 = scmp.eq.s32.totalorder %s15, 1
    %p59 = por %p57, %p58
    %p60 = scmp.ne.s32.totalorder %s49, %s50
    %p61 = scmp.eq.s32.totalorder %s15, 0
    %p62 = por %p60, %p61
    %p63 = scmp.ne.s32.totalorder %s49, %s50
    %p64 = scmp.eq.s32.totalorder %s16, 1
    %p65 = por %p63, %p64
    %p67 = scmp.ne.s32.totalorder %s50, %s66
    %p68 = scmp.eq.s32.totalorder %s16, 0
    %p69 = por %p67, %p68
    %s71 = sadd.s32 %s70, 1
    %p74 = scmp.eq.s32.totalorder %s10, 1
    %p75 = scmp.ne.s32.totalorder %s70, %s72
    %p76 = scmp.eq.s32.totalorder %s10, 0
    %p77 = por %p75, %p76
    %p78 = scmp.ne.s32.totalorder %s70, %s72
    %p79 = scmp.eq.s32.totalorder %s15, 1
    %p80 = por %p78, %p79
    %p81 = scmp.ne.s32.totalorder %s72, %s73
    %p82 = scmp.eq.s32.totalorder %s15, 0
    %p83 = por %p81, %p82
    %p84 = scmp.ne.s32.totalorder %s72, %s73
    %p85 = scmp.eq.s32.totalorder %s16, 1
    %p86 = por %p84, %p85
    %p88 = scmp.ne.s32.totalorder %s73, %s87
    %p89 = scmp.eq.s32.totalorder %s16, 0
    %p90 = por %p88, %p89
    %s92 = sadd.s32 %s91, 1
    %p95 = scmp.eq.s32.totalorder %s10, 1
    %p96 = scmp.ne.s32.totalorder %s91, %s93
    %p97 = scmp.eq.s32.totalorder %s10, 0
    %p98 = por %p96, %p97
    %p99 = scmp.ne.s32.totalorder %s91, %s93
    %p100 = scmp.eq.s32.totalorder %s15, 1
    %p101 = por %p99, %p100
    %p102 = scmp.ne.s32.totalorder %s93, %s94
    %p103 = scmp.eq.s32.totalorder %s15, 0
    %p104 = por %p102, %p103
    %p105 = scmp.ne.s32.totalorder %s93, %s94
    %p106 = scmp.eq.s32.totalorder %s16, 1
    %p107 = por %p105, %p106
    %p109 = scmp.ne.s32.totalorder %s94, %s108
    %p110 = scmp.eq.s32.totalorder %s16, 0
    %p111 = por %p109, %p110
    %s112 = ssub.s32 %s10, %s17
    %p113 = scmp.eq.s32.totalorder %s112, 0
    %s115 = sadd.s32 %s114, 1
    %s116 = scalar_select %p113, %s114, %s115
    %p119 = pneg %p113
    %p120 = scmp.eq.s32.totalorder %s10, 1
    %p121 = por %p119, %p120
    %p122 = scmp.ne.s32.totalorder %s114, %s117
    %p123 = scmp.eq.s32.totalorder %s10, 0
    %p124 = por %p122, %p123
    %p125 = scmp.ne.s32.totalorder %s114, %s117
    %p126 = scmp.eq.s32.totalorder %s15, 1
    %p127 = por %p125, %p126
    %p128 = scmp.ne.s32.totalorder %s117, %s118
    %p129 = scmp.eq.s32.totalorder %s15, 0
    %p130 = por %p128, %p129
    %p131 = scmp.ne.s32.totalorder %s117, %s118
    %p132 = scmp.eq.s32.totalorder %s16, 1
    %p133 = por %p131, %p132
    %p135 = scmp.ne.s32.totalorder %s118, %s134
    %p136 = scmp.eq.s32.totalorder %s16, 0
    %p137 = por %p135, %p136
    %p138 = scmp.le.s32.totalorder 1, %s10
    %p139 = scmp.lt.s32.totalorder %s10, 3
    %p140 = pnand %p138, %p139
    %p141 = pneg %p140
    // Predicated region
    $region9: #{precoding_resnet_forward.7} parent=5 // pred_check
      _
    $region10: #{precoding_resnet_forward.7} parent=5 // pred_check_branch
      %143 = sbr.rel (%p140) target = $region12
    $region11: #{precoding_resnet_forward.7} parent=5 // pred_region
      %s144 = ssub.s32 %s10, 1
      // Predicated region
      $region13: #{precoding_resnet_forward.7} parent=11 // pred_check
        %p145 = pneg %p83
      $region14: #{precoding_resnet_forward.7} parent=11 // pred_check_branch
        %147 = sbr.rel (%p145) target = $region16
      $region15: #{precoding_resnet_forward.7} parent=11 // pred_region
        _
      $region16: #{precoding_resnet_forward.7} parent=11 // pred_fallthru
        _
      // Predicated region
      $region17: #{precoding_resnet_forward.7} parent=11 // pred_check
        %p148 = pneg %p104
      $region18: #{precoding_resnet_forward.7} parent=11 // pred_check_branch
        %150 = sbr.rel (%p148) target = $region20
      $region19: #{precoding_resnet_forward.7} parent=11 // pred_region
        _
      $region20: #{precoding_resnet_forward.7} parent=11 // pred_fallthru
        _
    $region12: #{precoding_resnet_forward.7} parent=5 // pred_fallthru
      _
    %p151 = scmp.lt.s32.totalorder %s10, 2
    // Predicated region
    $region21: #{precoding_resnet_forward.7} parent=5 // pred_check
      %p152 = pneg %p151
    $region22: #{precoding_resnet_forward.7} parent=5 // pred_check_branch
      %154 = sbr.rel (%p152) target = $region24
    $region23: #{precoding_resnet_forward.7} parent=5 // pred_region
      // Predicated region
      $region25: #{precoding_resnet_forward.7} parent=23 // pred_check
        %p155 = pneg %p30
      $region26: #{precoding_resnet_forward.7} parent=23 // pred_check_branch
        %157 = sbr.rel (%p155) target = $region28
      $region27: #{precoding_resnet_forward.7} parent=23 // pred_region
        %p158 = scmp.lt.s32.totalorder %s10, 1
        %s159 = scalar_select %p158, %s10, 1
        %s160 = smul.addr %s159, 54
        %s161 = smul.addr %s160, 8
        %s162 = scalar_lea.vmem %s0, %s161
      $region28: #{precoding_resnet_forward.7} parent=23 // pred_fallthru
        _
      // Predicated region
      $region29: #{precoding_resnet_forward.7} parent=23 // pred_check
        %p163 = pneg %p56
      $region30: #{precoding_resnet_forward.7} parent=23 // pred_check_branch
        %165 = sbr.rel (%p163) target = $region32
      $region31: #{precoding_resnet_forward.7} parent=23 // pred_region
        %p166 = scmp.lt.s32.totalorder %s10, 1
        %s167 = scalar_select %p166, %s10, 1
        %s168 = smul.addr %s167, 54
        %s169 = smul.addr %s168, 8
        %s170 = scalar_lea.vmem %s1, %s169
      $region32: #{precoding_resnet_forward.7} parent=23 // pred_fallthru
        _
    $region24: #{precoding_resnet_forward.7} parent=5 // pred_fallthru
      _
    %p171 = scmp.le.s32.totalorder 1, %s10
    %p172 = scmp.lt.s32.totalorder %s10, 3
    %p173 = pnand %p171, %p172
    %p174 = pneg %p173
    // Predicated region
    $region33: #{precoding_resnet_forward.7} parent=5 // pred_check
      _
    $region34: #{precoding_resnet_forward.7} parent=5 // pred_check_branch
      %176 = sbr.rel (%p173) target = $region36
    $region35: #{precoding_resnet_forward.7} parent=5 // pred_region
      %s177 = ssub.s32 %s10, 1
      %p178 = scmp.lt.s32.totalorder %s15, 1
      %s179 = scalar_select %p178, %s15, 1
      %s180 = smul.addr %s179, 54
      %s181 = smul.addr %s180, 8
      %s182 = scalar_lea.vmem %s0, %s181
      %p183 = pneg %p36
      %p184 = pneg %p33
      %p185 = scmp.lt.s32.totalorder %s15, 1
      %s186 = scalar_select %p185, %s15, 1
      %s187 = smul.addr %s186, 54
      %s188 = smul.addr %s187, 8
      %s189 = scalar_lea.vmem %s1, %s188
      %p190 = pneg %p62
      %p191 = pneg %p59
      %p192 = pneg %p83
      %p193 = pneg %p80
      %p194 = pneg %p104
      %p195 = pneg %p101
      %p196 = pneg %p130
      %p197 = pneg %p127
      %p198 = scmp.lt.s32.totalorder %s15, 1
      %s199 = scalar_select %p198, %s15, 1
      %s200 = smul.addr %s199, 32
      %s201 = smul.addr %s200, 8
      %s202 = scalar_lea.vmem %s4, %s201
      %p203 = scmp.lt.s32.totalorder %s15, 1
      %s204 = scalar_select %p203, %s15, 1
      %s205 = smul.addr %s204, 54
      %s206 = smul.addr %s205, 8
      %s207 = scalar_lea.vmem %s0, %s206
      %p208 = scmp.lt.s32.totalorder %s15, 1
      %s209 = scalar_select %p208, %s15, 1
      %s210 = smul.addr %s209, 54
      %s211 = smul.addr %s210, 8
      %s212 = scalar_lea.vmem %s1, %s211
      %p213 = scmp.lt.s32.totalorder %s15, 1
      %s214 = scalar_select %p213, %s15, 1
      %s215 = smul.addr %s214, 32
      %s216 = smul.addr %s215, 8
      %s217 = scalar_lea.vmem %s4, %s216
      %v219 = vld [vmem:[%s207] sm:$0xff]
      %v220 = vld [vmem:[%s207 + $0x8] sm:$0xff]
      %v221 = vld [vmem:[%s207 + $0x10] sm:$0x3]
      %v222 = vld [vmem:[%s207 + $0x18] sm:$0xff]
      %v223 = vld [vmem:[%s207 + $0x20] sm:$0xff]
      %v224 = vld [vmem:[%s207 + $0x28] sm:$0x3]
      %v225 = vld [vmem:[%s207 + $0x30] sm:$0xff]
      %v226 = vld [vmem:[%s207 + $0x38] sm:$0xff]
      %v227 = vld [vmem:[%s207 + $0x40] sm:$0x3]
      %v228 = vld [vmem:[%s207 + $0x48] sm:$0xff]
      %v229 = vld [vmem:[%s207 + $0x50] sm:$0xff]
      %v230 = vld [vmem:[%s207 + $0x58] sm:$0x3]
      %v231 = vld [vmem:[%s207 + $0x60] sm:$0xff]
      %v232 = vld [vmem:[%s207 + $0x68] sm:$0xff]
      %v233 = vld [vmem:[%s207 + $0x70] sm:$0x3]
      %v234 = vld [vmem:[%s207 + $0x78] sm:$0xff]
      %v235 = vld [vmem:[%s207 + $0x80] sm:$0xff]
      %v236 = vld [vmem:[%s207 + $0x88] sm:$0x3]
      %v237 = vld [vmem:[%s207 + $0x90] sm:$0xff]
      %v238 = vld [vmem:[%s207 + $0x98] sm:$0xff]
      %v239 = vld [vmem:[%s207 + $0xa0] sm:$0x3]
      %v240 = vld [vmem:[%s207 + $0xa8] sm:$0xff]
      %v241 = vld [vmem:[%s207 + $0xb0] sm:$0xff]
      %v242 = vld [vmem:[%s207 + $0xb8] sm:$0x3]
      %v243 = vld [vmem:[%s207 + $0xc0] sm:$0xff]
      %v244 = vld [vmem:[%s207 + $0xc8] sm:$0xff]
      %v245 = vld [vmem:[%s207 + $0xd0] sm:$0x3]
      %v246 = vld [vmem:[%s207 + $0xd8] sm:$0xff]
      %v247 = vld [vmem:[%s207 + $0xe0] sm:$0xff]
      %v248 = vld [vmem:[%s207 + $0xe8] sm:$0x3]
      %v249 = vld [vmem:[%s207 + $0xf0] sm:$0xff]
      %v250 = vld [vmem:[%s207 + $0xf8] sm:$0xff]
      %v251 = vld [vmem:[%s207 + $0x100] sm:$0x3]
      %v252 = vld [vmem:[%s207 + $0x108] sm:$0xff]
      %v253 = vld [vmem:[%s207 + $0x110] sm:$0xff]
      %v254 = vld [vmem:[%s207 + $0x118] sm:$0x3]
      %v255 = vld [vmem:[%s207 + $0x120] sm:$0xff]
      %v256 = vld [vmem:[%s207 + $0x128] sm:$0xff]
      %v257 = vld [vmem:[%s207 + $0x130] sm:$0x3]
      %v258 = vld [vmem:[%s207 + $0x138] sm:$0xff]
      %v259 = vld [vmem:[%s207 + $0x140] sm:$0xff]
      %v260 = vld [vmem:[%s207 + $0x148] sm:$0x3]
      %v261 = vld [vmem:[%s207 + $0x150] sm:$0xff]
      %v262 = vld [vmem:[%s207 + $0x158] sm:$0xff]
      %v263 = vld [vmem:[%s207 + $0x160] sm:$0x3]
      %v264 = vld [vmem:[%s207 + $0x168] sm:$0xff]
      %v265 = vld [vmem:[%s207 + $0x170] sm:$0xff]
      %v266 = vld [vmem:[%s207 + $0x178] sm:$0x3]
      %v267 = vld [vmem:[%s207 + $0x180] sm:$0xff]
      %v268 = vld [vmem:[%s207 + $0x188] sm:$0xff]
      %v269 = vld [vmem:[%s207 + $0x190] sm:$0x3]
      %v270 = vld [vmem:[%s207 + $0x198] sm:$0xff]
      %v271 = vld [vmem:[%s207 + $0x1a0] sm:$0xff]
      %v272 = vld [vmem:[%s207 + $0x1a8] sm:$0x3]
      %v273 = vld [vmem:[%s2] sm:$0xf]
      %v274 = vld [vmem:[%s2 + $0x4] sm:$0xf]
      %v275 = vld [vmem:[%s2 + $0x8] sm:$0xf]
      %v276 = vld [vmem:[%s2 + $0xc] sm:$0xf]
      %v277 = vld [vmem:[%s2 + $0x10] sm:$0xf]
      %v278 = vld [vmem:[%s2 + $0x14] sm:$0xf]
      %v279 = vld [vmem:[%s2 + $0x18] sm:$0xf]
      %v280 = vld [vmem:[%s2 + $0x1c] sm:$0xf]
      %v281 = vld [vmem:[%s2 + $0x20] sm:$0xf]
      %v282 = vld [vmem:[%s2 + $0x24] sm:$0xf]
      %v283 = vld [vmem:[%s2 + $0x28] sm:$0xf]
      %v284 = vld [vmem:[%s2 + $0x2c] sm:$0xf]
      %v285 = vld [vmem:[%s2 + $0x30] sm:$0xf]
      %v286 = vld [vmem:[%s2 + $0x34] sm:$0xf]
      %v287 = vld [vmem:[%s2 + $0x38] sm:$0xf]
      %v288 = vld [vmem:[%s2 + $0x3c] sm:$0xf]
      %v289 = vld [vmem:[%s2 + $0x40] sm:$0xf]
      %v290 = vld [vmem:[%s2 + $0x44] sm:$0xf]
      %v291 = vld [vmem:[%s2 + $0x48] sm:$0xf]
      %v292 = vld [vmem:[%s2 + $0x4c] sm:$0xf]
      %v293 = vld [vmem:[%s2 + $0x50] sm:$0xf]
      %v294 = vld [vmem:[%s2 + $0x54] sm:$0xf]
      %v295 = vld [vmem:[%s2 + $0x58] sm:$0xf]
      %v296 = vld [vmem:[%s2 + $0x5c] sm:$0xf]
      %v297 = vld [vmem:[%s2 + $0x60] sm:$0xf]
      %v298 = vld [vmem:[%s2 + $0x64] sm:$0xf]
      %v299 = vld [vmem:[%s2 + $0x68] sm:$0xf]
      %v300 = vld [vmem:[%s2 + $0x6c] sm:$0xf]
      %v301 = vld [vmem:[%s2 + $0x70] sm:$0xf]
      %v302 = vld [vmem:[%s2 + $0x74] sm:$0xf]
      %v303 = vld [vmem:[%s2 + $0x78] sm:$0xf]
      %v304 = vld [vmem:[%s2 + $0x7c] sm:$0xf]
      %v305 = vld [vmem:[%s2 + $0x80] sm:$0xf]
      %v306 = vld [vmem:[%s2 + $0x84] sm:$0xf]
      %v307 = vld [vmem:[%s2 + $0x88] sm:$0xf]
      %v308 = vld [vmem:[%s2 + $0x8c] sm:$0xf]
      %v309 = vld [vmem:[%s3] sm:$0x1]
      %v310 = vpack.c.bf16 %v219, %v219
      %v311 = vpack.c.bf16 %v220, %v220
      %v312 = vpack.c.bf16 %v221, %v221
      %v313 = vpack.c.bf16 %v222, %v222
      %v314 = vpack.c.bf16 %v223, %v223
      %v315 = vpack.c.bf16 %v224, %v224
      %v316 = vpack.c.bf16 %v225, %v225
      %v317 = vpack.c.bf16 %v226, %v226
      %v318 = vpack.c.bf16 %v227, %v227
      %v319 = vpack.c.bf16 %v228, %v228
      %v320 = vpack.c.bf16 %v229, %v229
      %v321 = vpack.c.bf16 %v230, %v230
      %v322 = vpack.c.bf16 %v231, %v231
      %v323 = vpack.c.bf16 %v232, %v232
      %v324 = vpack.c.bf16 %v233, %v233
      %v325 = vpack.c.bf16 %v234, %v234
      %v326 = vpack.c.bf16 %v235, %v235
      %v327 = vpack.c.bf16 %v236, %v236
      %v328 = vpack.c.bf16 %v237, %v237
      %v329 = vpack.c.bf16 %v238, %v238
      %v330 = vpack.c.bf16 %v239, %v239
      %v331 = vpack.c.bf16 %v240, %v240
      %v332 = vpack.c.bf16 %v241, %v241
      %v333 = vpack.c.bf16 %v242, %v242
      %v334 = vpack.c.bf16 %v243, %v243
      %v335 = vpack.c.bf16 %v244, %v244
      %v336 = vpack.c.bf16 %v245, %v245
      %v337 = vpack.c.bf16 %v246, %v246
      %v338 = vpack.c.bf16 %v247, %v247
      %v339 = vpack.c.bf16 %v248, %v248
      %v340 = vpack.c.bf16 %v249, %v249
      %v341 = vpack.c.bf16 %v250, %v250
      %v342 = vpack.c.bf16 %v251, %v251
      %v343 = vpack.c.bf16 %v252, %v252
      %v344 = vpack.c.bf16 %v253, %v253
      %v345 = vpack.c.bf16 %v254, %v254
      %v346 = vpack.c.bf16 %v255, %v255
      %v347 = vpack.c.bf16 %v256, %v256
      %v348 = vpack.c.bf16 %v257, %v257
      %v349 = vpack.c.bf16 %v258, %v258
      %v350 = vpack.c.bf16 %v259, %v259
      %v351 = vpack.c.bf16 %v260, %v260
      %v352 = vpack.c.bf16 %v261, %v261
      %v353 = vpack.c.bf16 %v262, %v262
      %v354 = vpack.c.bf16 %v263, %v263
      %v355 = vpack.c.bf16 %v264, %v264
      %v356 = vpack.c.bf16 %v265, %v265
      %v357 = vpack.c.bf16 %v266, %v266
      %v358 = vpack.c.bf16 %v267, %v267
      %v359 = vpack.c.bf16 %v268, %v268
      %v360 = vpack.c.bf16 %v269, %v269
      %v361 = vpack.c.bf16 %v270, %v270
      %v362 = vpack.c.bf16 %v271, %v271
      %v363 = vpack.c.bf16 %v272, %v272
      %v396 = vunpack.c.l.b16 %v310
      %v397 = vunpack.c.l.b16 %v311
      %v398 = vunpack.c.l.b16 %v313
      %v399 = vunpack.c.l.b16 %v314
      %v400 = vunpack.c.l.b16 %v316
      %v401 = vunpack.c.l.b16 %v317
      %v402 = vunpack.c.l.b16 %v319
      %v403 = vunpack.c.l.b16 %v320
      %v404 = vunpack.c.l.b16 %v322
      %v405 = vunpack.c.l.b16 %v323
      %v406 = vunpack.c.l.b16 %v325
      %v407 = vunpack.c.l.b16 %v326
      %v408 = vunpack.c.l.b16 %v328
      %v409 = vunpack.c.l.b16 %v329
      %v410 = vunpack.c.l.b16 %v331
      %v411 = vunpack.c.l.b16 %v332
      %v412 = vunpack.c.l.b16 %v334
      %v413 = vunpack.c.l.b16 %v335
      %v414 = vunpack.c.l.b16 %v337
      %v415 = vunpack.c.l.b16 %v338
      %v416 = vunpack.c.l.b16 %v340
      %v417 = vunpack.c.l.b16 %v341
      %v418 = vunpack.c.l.b16 %v343
      %v419 = vunpack.c.l.b16 %v344
      %v420 = vunpack.c.l.b16 %v346
      %v421 = vunpack.c.l.b16 %v347
      %v422 = vunpack.c.l.b16 %v349
      %v423 = vunpack.c.l.b16 %v350
      %v424 = vunpack.c.l.b16 %v352
      %v425 = vunpack.c.l.b16 %v353
      %v426 = vunpack.c.l.b16 %v355
      %v427 = vunpack.c.l.b16 %v356
      %v428 = vpack.c.b16 %v397, %v396
      %v429 = vpack.c.b16 %v399, %v398
      %v430 = vpack.c.b16 %v401, %v400
      %v431 = vpack.c.b16 %v403, %v402
      %v432 = vpack.c.b16 %v405, %v404
      %v433 = vpack.c.b16 %v407, %v406
      %v434 = vpack.c.b16 %v409, %v408
      %v435 = vpack.c.b16 %v411, %v410
      %v436 = vpack.c.b16 %v413, %v412
      %v437 = vpack.c.b16 %v415, %v414
      %v438 = vpack.c.b16 %v417, %v416
      %v439 = vpack.c.b16 %v419, %v418
      %v440 = vpack.c.b16 %v421, %v420
      %v441 = vpack.c.b16 %v423, %v422
      %v442 = vpack.c.b16 %v425, %v424
      %v443 = vpack.c.b16 %v427, %v426
      %v460 = vunpack.c.l.b16 %v312
      %v461 = vunpack.c.l.b16 %v315
      %v462 = vunpack.c.l.b16 %v318
      %v463 = vunpack.c.l.b16 %v321
      %v464 = vunpack.c.l.b16 %v324
      %v465 = vunpack.c.l.b16 %v327
      %v466 = vunpack.c.l.b16 %v330
      %v467 = vunpack.c.l.b16 %v333
      %v468 = vunpack.c.l.b16 %v336
      %v469 = vunpack.c.l.b16 %v339
      %v470 = vunpack.c.l.b16 %v342
      %v471 = vunpack.c.l.b16 %v345
      %v472 = vunpack.c.l.b16 %v348
      %v473 = vunpack.c.l.b16 %v351
      %v474 = vunpack.c.l.b16 %v354
      %v475 = vunpack.c.l.b16 %v357
      %v476 = vpack.c.b16 %v460, %v460
      %v477 = vpack.c.b16 %v461, %v461
      %v478 = vpack.c.b16 %v462, %v462
      %v479 = vpack.c.b16 %v463, %v463
      %v480 = vpack.c.b16 %v464, %v464
      %v481 = vpack.c.b16 %v465, %v465
      %v482 = vpack.c.b16 %v466, %v466
      %v483 = vpack.c.b16 %v467, %v467
      %v484 = vpack.c.b16 %v468, %v468
      %v485 = vpack.c.b16 %v469, %v469
      %v486 = vpack.c.b16 %v470, %v470
      %v487 = vpack.c.b16 %v471, %v471
      %v488 = vpack.c.b16 %v472, %v472
      %v489 = vpack.c.b16 %v473, %v473
      %v490 = vpack.c.b16 %v474, %v474
      %v491 = vpack.c.b16 %v475, %v475
      %vm492 = vsmask.f32 7424
      %v494 = vshrl.u32 %v428, 16
      %v496 = vshll.u32 %v428, 16
      %v498 = vrot.slane %v496, 1
      %v499 = vor.u32 %v494, %v498
      %v501 = vshll.u32 %v476, 16
      %v503 = vrot.slane %v501, 1
      %v504 = vsel %vm492, %v499, %v503
      %v506 = vshrl.u32 %v429, 16
      %v508 = vshll.u32 %v429, 16
      %v510 = vrot.slane %v508, 1
      %v511 = vor.u32 %v506, %v510
      %v513 = vshll.u32 %v477, 16
      %v515 = vrot.slane %v513, 1
      %v516 = vsel %vm492, %v511, %v515
      %v518 = vshrl.u32 %v430, 16
      %v520 = vshll.u32 %v430, 16
      %v522 = vrot.slane %v520, 1
      %v523 = vor.u32 %v518, %v522
      %v525 = vshll.u32 %v478, 16
      %v527 = vrot.slane %v525, 1
      %v528 = vsel %vm492, %v523, %v527
      %v530 = vshrl.u32 %v431, 16
      %v532 = vshll.u32 %v431, 16
      %v534 = vrot.slane %v532, 1
      %v535 = vor.u32 %v530, %v534
      %v537 = vshll.u32 %v479, 16
      %v539 = vrot.slane %v537, 1
      %v540 = vsel %vm492, %v535, %v539
      %v542 = vshrl.u32 %v432, 16
      %v544 = vshll.u32 %v432, 16
      %v546 = vrot.slane %v544, 1
      %v547 = vor.u32 %v542, %v546
      %v549 = vshll.u32 %v480, 16
      %v551 = vrot.slane %v549, 1
      %v552 = vsel %vm492, %v547, %v551
      %v554 = vshrl.u32 %v433, 16
      %v556 = vshll.u32 %v433, 16
      %v558 = vrot.slane %v556, 1
      %v559 = vor.u32 %v554, %v558
      %v561 = vshll.u32 %v481, 16
      %v563 = vrot.slane %v561, 1
      %v564 = vsel %vm492, %v559, %v563
      %v566 = vshrl.u32 %v434, 16
      %v568 = vshll.u32 %v434, 16
      %v570 = vrot.slane %v568, 1
      %v571 = vor.u32 %v566, %v570
      %v573 = vshll.u32 %v482, 16
      %v575 = vrot.slane %v573, 1
      %v576 = vsel %vm492, %v571, %v575
      %v578 = vshrl.u32 %v435, 16
      %v580 = vshll.u32 %v435, 16
      %v582 = vrot.slane %v580, 1
      %v583 = vor.u32 %v578, %v582
      %v585 = vshll.u32 %v483, 16
      %v587 = vrot.slane %v585, 1
      %v588 = vsel %vm492, %v583, %v587
      %v590 = vshrl.u32 %v436, 16
      %v592 = vshll.u32 %v436, 16
      %v594 = vrot.slane %v592, 1
      %v595 = vor.u32 %v590, %v594
      %v597 = vshll.u32 %v484, 16
      %v599 = vrot.slane %v597, 1
      %v600 = vsel %vm492, %v595, %v599
      %v602 = vshrl.u32 %v437, 16
      %v604 = vshll.u32 %v437, 16
      %v606 = vrot.slane %v604, 1
      %v607 = vor.u32 %v602, %v606
      %v609 = vshll.u32 %v485, 16
      %v611 = vrot.slane %v609, 1
      %v612 = vsel %vm492, %v607, %v611
      %v614 = vshrl.u32 %v438, 16
      %v616 = vshll.u32 %v438, 16
      %v618 = vrot.slane %v616, 1
      %v619 = vor.u32 %v614, %v618
      %v621 = vshll.u32 %v486, 16
      %v623 = vrot.slane %v621, 1
      %v624 = vsel %vm492, %v619, %v623
      %v626 = vshrl.u32 %v439, 16
      %v628 = vshll.u32 %v439, 16
      %v630 = vrot.slane %v628, 1
      %v631 = vor.u32 %v626, %v630
      %v633 = vshll.u32 %v487, 16
      %v635 = vrot.slane %v633, 1
      %v636 = vsel %vm492, %v631, %v635
      %v638 = vshrl.u32 %v440, 16
      %v640 = vshll.u32 %v440, 16
      %v642 = vrot.slane %v640, 1
      %v643 = vor.u32 %v638, %v642
      %v645 = vshll.u32 %v488, 16
      %v647 = vrot.slane %v645, 1
      %v648 = vsel %vm492, %v643, %v647
      %v650 = vshrl.u32 %v441, 16
      %v652 = vshll.u32 %v441, 16
      %v654 = vrot.slane %v652, 1
      %v655 = vor.u32 %v650, %v654
      %v657 = vshll.u32 %v489, 16
      %v659 = vrot.slane %v657, 1
      %v660 = vsel %vm492, %v655, %v659
      %v662 = vshrl.u32 %v442, 16
      %v664 = vshll.u32 %v442, 16
      %v666 = vrot.slane %v664, 1
      %v667 = vor.u32 %v662, %v666
      %v669 = vshll.u32 %v490, 16
      %v671 = vrot.slane %v669, 1
      %v672 = vsel %vm492, %v667, %v671
      %v674 = vshrl.u32 %v443, 16
      %v676 = vshll.u32 %v443, 16
      %v678 = vrot.slane %v676, 1
      %v679 = vor.u32 %v674, %v678
      %v681 = vshll.u32 %v491, 16
      %v683 = vrot.slane %v681, 1
      %v684 = vsel %vm492, %v679, %v683
      %685 = vrot.lane.b32.xlu0 %v504, 32
      %v686 = vpop.permute.xlu0 %685
      %687 = vrot.lane.b32.xlu0 %v516, 32
      %v688 = vpop.permute.xlu0 %687
      %689 = vrot.lane.b32.xlu0 %v528, 32
      %v690 = vpop.permute.xlu0 %689
      %691 = vrot.lane.b32.xlu0 %v540, 32
      %v692 = vpop.permute.xlu0 %691
      %693 = vrot.lane.b32.xlu0 %v552, 32
      %v694 = vpop.permute.xlu0 %693
      %695 = vrot.lane.b32.xlu0 %v564, 32
      %v696 = vpop.permute.xlu0 %695
      %697 = vrot.lane.b32.xlu0 %v576, 32
      %v698 = vpop.permute.xlu0 %697
      %699 = vrot.lane.b32.xlu0 %v588, 32
      %v700 = vpop.permute.xlu0 %699
      %701 = vrot.lane.b32.xlu0 %v600, 32
      %v702 = vpop.permute.xlu0 %701
      %703 = vrot.lane.b32.xlu0 %v612, 32
      %v704 = vpop.permute.xlu0 %703
      %705 = vrot.lane.b32.xlu0 %v624, 32
      %v706 = vpop.permute.xlu0 %705
      %707 = vrot.lane.b32.xlu0 %v636, 32
      %v708 = vpop.permute.xlu0 %707
      %709 = vrot.lane.b32.xlu0 %v648, 32
      %v710 = vpop.permute.xlu0 %709
      %711 = vrot.lane.b32.xlu0 %v660, 32
      %v712 = vpop.permute.xlu0 %711
      %713 = vrot.lane.b32.xlu0 %v672, 32
      %v714 = vpop.permute.xlu0 %713
      %715 = vrot.lane.b32.xlu0 %v684, 32
      %v716 = vpop.permute.xlu0 %715
      %vm717 = vcmask 1046528
      %v718 = vrot.slane %v428, 1
      %v719 = vrot.slane %v476, 1
      %v720 = vsel %vm717, %v718, %v719
      %v721 = vrot.slane %v429, 1
      %v722 = vrot.slane %v477, 1
      %v723 = vsel %vm717, %v721, %v722
      %v724 = vrot.slane %v430, 1
      %v725 = vrot.slane %v478, 1
      %v726 = vsel %vm717, %v724, %v725
      %v727 = vrot.slane %v431, 1
      %v728 = vrot.slane %v479, 1
      %v729 = vsel %vm717, %v727, %v728
      %v730 = vrot.slane %v432, 1
      %v731 = vrot.slane %v480, 1
      %v732 = vsel %vm717, %v730, %v731
      %v733 = vrot.slane %v433, 1
      %v734 = vrot.slane %v481, 1
      %v735 = vsel %vm717, %v733, %v734
      %v736 = vrot.slane %v434, 1
      %v737 = vrot.slane %v482, 1
      %v738 = vsel %vm717, %v736, %v737
      %v739 = vrot.slane %v435, 1
      %v740 = vrot.slane %v483, 1
      %v741 = vsel %vm717, %v739, %v740
      %v742 = vrot.slane %v436, 1
      %v743 = vrot.slane %v484, 1
      %v744 = vsel %vm717, %v742, %v743
      %v745 = vrot.slane %v437, 1
      %v746 = vrot.slane %v485, 1
      %v747 = vsel %vm717, %v745, %v746
      %v748 = vrot.slane %v438, 1
      %v749 = vrot.slane %v486, 1
      %v750 = vsel %vm717, %v748, %v749
      %v751 = vrot.slane %v439, 1
      %v752 = vrot.slane %v487, 1
      %v753 = vsel %vm717, %v751, %v752
      %v754 = vrot.slane %v440, 1
      %v755 = vrot.slane %v488, 1
      %v756 = vsel %vm717, %v754, %v755
      %v757 = vrot.slane %v441, 1
      %v758 = vrot.slane %v489, 1
      %v759 = vsel %vm717, %v757, %v758
      %v760 = vrot.slane %v442, 1
      %v761 = vrot.slane %v490, 1
      %v762 = vsel %vm717, %v760, %v761
      %v763 = vrot.slane %v443, 1
      %v764 = vrot.slane %v491, 1
      %v765 = vsel %vm717, %v763, %v764
      %766 = vrot.lane.b32.xlu0 %v720, 64
      %v767 = vpop.permute.xlu0 %766
      %768 = vrot.lane.b32.xlu0 %v723, 64
      %v769 = vpop.permute.xlu0 %768
      %770 = vrot.lane.b32.xlu0 %v726, 64
      %v771 = vpop.permute.xlu0 %770
      %772 = vrot.lane.b32.xlu0 %v729, 64
      %v773 = vpop.permute.xlu0 %772
      %774 = vrot.lane.b32.xlu0 %v732, 64
      %v775 = vpop.permute.xlu0 %774
      %776 = vrot.lane.b32.xlu0 %v735, 64
      %v777 = vpop.permute.xlu0 %776
      %778 = vrot.lane.b32.xlu0 %v738, 64
      %v779 = vpop.permute.xlu0 %778
      %780 = vrot.lane.b32.xlu0 %v741, 64
      %v781 = vpop.permute.xlu0 %780
      %782 = vrot.lane.b32.xlu0 %v744, 64
      %v783 = vpop.permute.xlu0 %782
      %784 = vrot.lane.b32.xlu0 %v747, 64
      %v785 = vpop.permute.xlu0 %784
      %786 = vrot.lane.b32.xlu0 %v750, 64
      %v787 = vpop.permute.xlu0 %786
      %788 = vrot.lane.b32.xlu0 %v753, 64
      %v789 = vpop.permute.xlu0 %788
      %790 = vrot.lane.b32.xlu0 %v756, 64
      %v791 = vpop.permute.xlu0 %790
      %792 = vrot.lane.b32.xlu0 %v759, 64
      %v793 = vpop.permute.xlu0 %792
      %794 = vrot.lane.b32.xlu0 %v762, 64
      %v795 = vpop.permute.xlu0 %794
      %796 = vrot.lane.b32.xlu0 %v765, 64
      %v797 = vpop.permute.xlu0 %796
      %v800 = vunpack.c.l.b16 %v358
      %v801 = vunpack.c.l.b16 %v359
      %v802 = vpack.c.b16 %v801, %v800
      %803 = vrot.lane.b32.xlu0 %v429, 96
      %v804 = vpop.permute.xlu0 %803
      %805 = vrot.lane.b32.xlu0 %v430, 96
      %v806 = vpop.permute.xlu0 %805
      %807 = vrot.lane.b32.xlu0 %v431, 96
      %v808 = vpop.permute.xlu0 %807
      %809 = vrot.lane.b32.xlu0 %v432, 96
      %v810 = vpop.permute.xlu0 %809
      %811 = vrot.lane.b32.xlu0 %v433, 96
      %v812 = vpop.permute.xlu0 %811
      %813 = vrot.lane.b32.xlu0 %v434, 96
      %v814 = vpop.permute.xlu0 %813
      %815 = vrot.lane.b32.xlu0 %v435, 96
      %v816 = vpop.permute.xlu0 %815
      %817 = vrot.lane.b32.xlu0 %v436, 96
      %v818 = vpop.permute.xlu0 %817
      %819 = vrot.lane.b32.xlu0 %v437, 96
      %v820 = vpop.permute.xlu0 %819
      %821 = vrot.lane.b32.xlu0 %v438, 96
      %v822 = vpop.permute.xlu0 %821
      %823 = vrot.lane.b32.xlu0 %v439, 96
      %v824 = vpop.permute.xlu0 %823
      %825 = vrot.lane.b32.xlu0 %v440, 96
      %v826 = vpop.permute.xlu0 %825
      %827 = vrot.lane.b32.xlu0 %v441, 96
      %v828 = vpop.permute.xlu0 %827
      %829 = vrot.lane.b32.xlu0 %v442, 96
      %v830 = vpop.permute.xlu0 %829
      %831 = vrot.lane.b32.xlu0 %v443, 96
      %v832 = vpop.permute.xlu0 %831
      %833 = vrot.lane.b32.xlu0 %v802, 96
      %v834 = vpop.permute.xlu0 %833
      %v836 = vunpack.c.l.b16 %v360
      %v837 = vpack.c.b16 %v836, %v836
      %v839 = vshrl.u32 %v802, 16
      %v841 = vshll.u32 %v802, 16
      %v843 = vrot.slane %v841, 1
      %v844 = vor.u32 %v839, %v843
      %v846 = vshll.u32 %v837, 16
      %v848 = vrot.slane %v846, 1
      %v849 = vsel %vm492, %v844, %v848
      %v850 = vrot.slane %v802, 1
      %v851 = vrot.slane %v837, 1
      %v852 = vsel %vm717, %v850, %v851
      %853 = vrot.lane.b32.xlu0 %v723, 32
      %v854 = vpop.permute.xlu0 %853
      %855 = vrot.lane.b32.xlu0 %v726, 32
      %v856 = vpop.permute.xlu0 %855
      %857 = vrot.lane.b32.xlu0 %v729, 32
      %v858 = vpop.permute.xlu0 %857
      %859 = vrot.lane.b32.xlu0 %v732, 32
      %v860 = vpop.permute.xlu0 %859
      %861 = vrot.lane.b32.xlu0 %v735, 32
      %v862 = vpop.permute.xlu0 %861
      %863 = vrot.lane.b32.xlu0 %v738, 32
      %v864 = vpop.permute.xlu0 %863
      %865 = vrot.lane.b32.xlu0 %v741, 32
      %v866 = vpop.permute.xlu0 %865
      %867 = vrot.lane.b32.xlu0 %v744, 32
      %v868 = vpop.permute.xlu0 %867
      %869 = vrot.lane.b32.xlu0 %v747, 32
      %v870 = vpop.permute.xlu0 %869
      %871 = vrot.lane.b32.xlu0 %v750, 32
      %v872 = vpop.permute.xlu0 %871
      %873 = vrot.lane.b32.xlu0 %v753, 32
      %v874 = vpop.permute.xlu0 %873
      %875 = vrot.lane.b32.xlu0 %v756, 32
      %v876 = vpop.permute.xlu0 %875
      %877 = vrot.lane.b32.xlu0 %v759, 32
      %v878 = vpop.permute.xlu0 %877
      %879 = vrot.lane.b32.xlu0 %v762, 32
      %v880 = vpop.permute.xlu0 %879
      %881 = vrot.lane.b32.xlu0 %v765, 32
      %v882 = vpop.permute.xlu0 %881
      %883 = vrot.lane.b32.xlu0 %v852, 32
      %v884 = vpop.permute.xlu0 %883
      %v887 = vunpack.c.l.b16 %v361
      %v888 = vunpack.c.l.b16 %v362
      %v889 = vpack.c.b16 %v888, %v887
      %890 = vrot.lane.b32.xlu0 %v430, 64
      %v891 = vpop.permute.xlu0 %890
      %892 = vrot.lane.b32.xlu0 %v431, 64
      %v893 = vpop.permute.xlu0 %892
      %894 = vrot.lane.b32.xlu0 %v432, 64
      %v895 = vpop.permute.xlu0 %894
      %896 = vrot.lane.b32.xlu0 %v433, 64
      %v897 = vpop.permute.xlu0 %896
      %898 = vrot.lane.b32.xlu0 %v434, 64
      %v899 = vpop.permute.xlu0 %898
      %900 = vrot.lane.b32.xlu0 %v435, 64
      %v901 = vpop.permute.xlu0 %900
      %902 = vrot.lane.b32.xlu0 %v436, 64
      %v903 = vpop.permute.xlu0 %902
      %904 = vrot.lane.b32.xlu0 %v437, 64
      %v905 = vpop.permute.xlu0 %904
      %906 = vrot.lane.b32.xlu0 %v438, 64
      %v907 = vpop.permute.xlu0 %906
      %908 = vrot.lane.b32.xlu0 %v439, 64
      %v909 = vpop.permute.xlu0 %908
      %910 = vrot.lane.b32.xlu0 %v440, 64
      %v911 = vpop.permute.xlu0 %910
      %912 = vrot.lane.b32.xlu0 %v441, 64
      %v913 = vpop.permute.xlu0 %912
      %914 = vrot.lane.b32.xlu0 %v442, 64
      %v915 = vpop.permute.xlu0 %914
      %916 = vrot.lane.b32.xlu0 %v443, 64
      %v917 = vpop.permute.xlu0 %916
      %918 = vrot.lane.b32.xlu0 %v802, 64
      %v919 = vpop.permute.xlu0 %918
      %920 = vrot.lane.b32.xlu0 %v889, 64
      %v921 = vpop.permute.xlu0 %920
      %v923 = vunpack.c.l.b16 %v363
      %v924 = vpack.c.b16 %v923, %v923
      %v926 = vshrl.u32 %v889, 16
      %v928 = vshll.u32 %v889, 16
      %v930 = vrot.slane %v928, 1
      %v931 = vor.u32 %v926, %v930
      %v933 = vshll.u32 %v924, 16
      %v935 = vrot.slane %v933, 1
      %v936 = vsel %vm492, %v931, %v935
      %937 = vrot.lane.b32.xlu0 %v528, 96
      %v938 = vpop.permute.xlu0 %937
      %939 = vrot.lane.b32.xlu0 %v540, 96
      %v940 = vpop.permute.xlu0 %939
      %941 = vrot.lane.b32.xlu0 %v552, 96
      %v942 = vpop.permute.xlu0 %941
      %943 = vrot.lane.b32.xlu0 %v564, 96
      %v944 = vpop.permute.xlu0 %943
      %945 = vrot.lane.b32.xlu0 %v576, 96
      %v946 = vpop.permute.xlu0 %945
      %947 = vrot.lane.b32.xlu0 %v588, 96
      %v948 = vpop.permute.xlu0 %947
      %949 = vrot.lane.b32.xlu0 %v600, 96
      %v950 = vpop.permute.xlu0 %949
      %951 = vrot.lane.b32.xlu0 %v612, 96
      %v952 = vpop.permute.xlu0 %951
      %953 = vrot.lane.b32.xlu0 %v624, 96
      %v954 = vpop.permute.xlu0 %953
      %955 = vrot.lane.b32.xlu0 %v636, 96
      %v956 = vpop.permute.xlu0 %955
      %957 = vrot.lane.b32.xlu0 %v648, 96
      %v958 = vpop.permute.xlu0 %957
      %959 = vrot.lane.b32.xlu0 %v660, 96
      %v960 = vpop.permute.xlu0 %959
      %961 = vrot.lane.b32.xlu0 %v672, 96
      %v962 = vpop.permute.xlu0 %961
      %963 = vrot.lane.b32.xlu0 %v684, 96
      %v964 = vpop.permute.xlu0 %963
      %965 = vrot.lane.b32.xlu0 %v849, 96
      %v966 = vpop.permute.xlu0 %965
      %967 = vrot.lane.b32.xlu0 %v936, 96
      %v968 = vpop.permute.xlu0 %967
      %v969 = vrot.slane %v889, 1
      %v970 = vrot.slane %v924, 1
      %v971 = vsel %vm717, %v969, %v970
      %vm972 = vcmask 261120
      %v974 = vsel %vm972, %v428, %v686
      %v976 = vsel %vm972, %v429, %v688
      %v978 = vsel %vm972, %v430, %v690
      %v980 = vsel %vm972, %v431, %v692
      %v982 = vsel %vm972, %v432, %v694
      %v984 = vsel %vm972, %v433, %v696
      %v986 = vsel %vm972, %v434, %v698
      %v988 = vsel %vm972, %v435, %v700
      %v990 = vsel %vm972, %v436, %v702
      %v992 = vsel %vm972, %v437, %v704
      %v994 = vsel %vm972, %v438, %v706
      %v996 = vsel %vm972, %v439, %v708
      %v998 = vsel %vm972, %v440, %v710
      %v1000 = vsel %vm972, %v441, %v712
      %v1002 = vsel %vm972, %v442, %v714
      %v1004 = vsel %vm972, %v443, %v716
      %vm1005 = vcmask 523264
      %v1007 = vsel %vm1005, %v974, %v767
      %v1009 = vsel %vm1005, %v976, %v769
      %v1011 = vsel %vm1005, %v978, %v771
      %v1013 = vsel %vm1005, %v980, %v773
      %v1015 = vsel %vm1005, %v982, %v775
      %v1017 = vsel %vm1005, %v984, %v777
      %v1019 = vsel %vm1005, %v986, %v779
      %v1021 = vsel %vm1005, %v988, %v781
      %v1023 = vsel %vm1005, %v990, %v783
      %v1025 = vsel %vm1005, %v992, %v785
      %v1027 = vsel %vm1005, %v994, %v787
      %v1029 = vsel %vm1005, %v996, %v789
      %v1031 = vsel %vm1005, %v998, %v791
      %v1033 = vsel %vm1005, %v1000, %v793
      %v1035 = vsel %vm1005, %v1002, %v795
      %v1037 = vsel %vm1005, %v1004, %v797
      %vm1038 = vcmask 785408
      %v1040 = vsel %vm1038, %v1007, %v804
      %v1043 = vsel %vm1038, %v1009, %v806
      %v1046 = vsel %vm1038, %v1011, %v808
      %v1049 = vsel %vm1038, %v1013, %v810
      %v1052 = vsel %vm1038, %v1015, %v812
      %v1055 = vsel %vm1038, %v1017, %v814
      %v1058 = vsel %vm1038, %v1019, %v816
      %v1061 = vsel %vm1038, %v1021, %v818
      %v1064 = vsel %vm1038, %v1023, %v820
      %v1067 = vsel %vm1038, %v1025, %v822
      %v1070 = vsel %vm1038, %v1027, %v824
      %v1073 = vsel %vm1038, %v1029, %v826
      %v1076 = vsel %vm1038, %v1031, %v828
      %v1079 = vsel %vm1038, %v1033, %v830
      %v1082 = vsel %vm1038, %v1035, %v832
      %v1085 = vsel %vm1038, %v1037, %v834
      %v1089 = vsel %vm972, %v516, %v854
      %v1092 = vsel %vm972, %v528, %v856
      %v1095 = vsel %vm972, %v540, %v858
      %v1098 = vsel %vm972, %v552, %v860
      %v1101 = vsel %vm972, %v564, %v862
      %v1104 = vsel %vm972, %v576, %v864
      %v1107 = vsel %vm972, %v588, %v866
      %v1110 = vsel %vm972, %v600, %v868
      %v1113 = vsel %vm972, %v612, %v870
      %v1116 = vsel %vm972, %v624, %v872
      %v1119 = vsel %vm972, %v636, %v874
      %v1122 = vsel %vm972, %v648, %v876
      %v1125 = vsel %vm972, %v660, %v878
      %v1128 = vsel %vm972, %v672, %v880
      %v1131 = vsel %vm972, %v684, %v882
      %v1134 = vsel %vm972, %v849, %v884
      %v1136 = vsel %vm1005, %v1089, %v891
      %v1138 = vsel %vm1005, %v1092, %v893
      %v1140 = vsel %vm1005, %v1095, %v895
      %v1142 = vsel %vm1005, %v1098, %v897
      %v1144 = vsel %vm1005, %v1101, %v899
      %v1146 = vsel %vm1005, %v1104, %v901
      %v1148 = vsel %vm1005, %v1107, %v903
      %v1150 = vsel %vm1005, %v1110, %v905
      %v1152 = vsel %vm1005, %v1113, %v907
      %v1154 = vsel %vm1005, %v1116, %v909
      %v1156 = vsel %vm1005, %v1119, %v911
      %v1158 = vsel %vm1005, %v1122, %v913
      %v1160 = vsel %vm1005, %v1125, %v915
      %v1162 = vsel %vm1005, %v1128, %v917
      %v1164 = vsel %vm1005, %v1131, %v919
      %v1166 = vsel %vm1005, %v1134, %v921
      %v1168 = vsel %vm1038, %v1136, %v938
      %v1171 = vsel %vm1038, %v1138, %v940
      %v1174 = vsel %vm1038, %v1140, %v942
      %v1177 = vsel %vm1038, %v1142, %v944
      %v1180 = vsel %vm1038, %v1144, %v946
      %v1183 = vsel %vm1038, %v1146, %v948
      %v1186 = vsel %vm1038, %v1148, %v950
      %v1189 = vsel %vm1038, %v1150, %v952
      %v1192 = vsel %vm1038, %v1152, %v954
      %v1195 = vsel %vm1038, %v1154, %v956
      %v1198 = vsel %vm1038, %v1156, %v958
      %v1201 = vsel %vm1038, %v1158, %v960
      %v1204 = vsel %vm1038, %v1160, %v962
      %v1207 = vsel %vm1038, %v1162, %v964
      %v1210 = vsel %vm1038, %v1164, %v966
      %v1213 = vsel %vm1038, %v1166, %v968
      %v1216 = vperm.slane %v309, 0
      %v1254 = vunpack.c.l.b16 %v273
      %v1255 = vunpack.c.l.b16 %v274
      %v1256 = vunpack.c.l.b16 %v275
      %v1257 = vunpack.c.l.b16 %v276
      %v1258 = vunpack.c.l.b16 %v277
      %v1259 = vunpack.c.l.b16 %v278
      %v1260 = vunpack.c.l.b16 %v279
      %v1261 = vunpack.c.l.b16 %v280
      %v1262 = vunpack.c.l.b16 %v281
      %v1263 = vunpack.c.l.b16 %v282
      %v1264 = vunpack.c.l.b16 %v283
      %v1265 = vunpack.c.l.b16 %v284
      %v1266 = vunpack.c.l.b16 %v285
      %v1267 = vunpack.c.l.b16 %v286
      %v1268 = vunpack.c.l.b16 %v287
      %v1269 = vunpack.c.l.b16 %v288
      %v1270 = vunpack.c.l.b16 %v289
      %v1271 = vunpack.c.l.b16 %v290
      %v1272 = vunpack.c.l.b16 %v291
      %v1273 = vunpack.c.l.b16 %v292
      %v1274 = vunpack.c.l.b16 %v293
      %v1275 = vunpack.c.l.b16 %v294
      %v1276 = vunpack.c.l.b16 %v295
      %v1277 = vunpack.c.l.b16 %v296
      %v1278 = vunpack.c.l.b16 %v297
      %v1279 = vunpack.c.l.b16 %v298
      %v1280 = vunpack.c.l.b16 %v299
      %v1281 = vunpack.c.l.b16 %v300
      %v1282 = vunpack.c.l.b16 %v301
      %v1283 = vunpack.c.l.b16 %v302
      %v1284 = vunpack.c.l.b16 %v303
      %v1285 = vunpack.c.l.b16 %v304
      %v1286 = vunpack.c.l.b16 %v305
      %v1287 = vunpack.c.l.b16 %v306
      %v1288 = vunpack.c.l.b16 %v307
      %v1289 = vunpack.c.l.b16 %v308
      %v1290 = vpack.c.b16 %v1255, %v1254
      %v1291 = vpack.c.b16 %v1257, %v1256
      %v1292 = vpack.c.b16 %v1259, %v1258
      %v1293 = vpack.c.b16 %v1261, %v1260
      %v1294 = vpack.c.b16 %v1263, %v1262
      %v1295 = vpack.c.b16 %v1265, %v1264
      %v1296 = vpack.c.b16 %v1267, %v1266
      %v1297 = vpack.c.b16 %v1269, %v1268
      %v1298 = vpack.c.b16 %v1271, %v1270
      %v1299 = vpack.c.b16 %v1273, %v1272
      %v1300 = vpack.c.b16 %v1275, %v1274
      %v1301 = vpack.c.b16 %v1277, %v1276
      %v1302 = vpack.c.b16 %v1279, %v1278
      %v1303 = vpack.c.b16 %v1281, %v1280
      %v1304 = vpack.c.b16 %v1283, %v1282
      %v1305 = vpack.c.b16 %v1285, %v1284
      %v1306 = vpack.c.b16 %v1287, %v1286
      %v1307 = vpack.c.b16 %v1289, %v1288
      %v1327 = vsel %vm972, %v726, 0
      %v1330 = vsel %vm972, %v729, 0
      %v1333 = vsel %vm972, %v732, 0
      %v1336 = vsel %vm972, %v735, 0
      %v1339 = vsel %vm972, %v738, 0
      %v1342 = vsel %vm972, %v741, 0
      %v1345 = vsel %vm972, %v744, 0
      %v1348 = vsel %vm972, %v747, 0
      %v1351 = vsel %vm972, %v750, 0
      %v1354 = vsel %vm972, %v753, 0
      %v1357 = vsel %vm972, %v756, 0
      %v1360 = vsel %vm972, %v759, 0
      %v1363 = vsel %vm972, %v762, 0
      %v1366 = vsel %vm972, %v765, 0
      %v1369 = vsel %vm972, %v852, 0
      %v1372 = vsel %vm972, %v971, 0
      %1374 = vmatpush.bf16.msra.mxu0 %v1297
      %1375 = vmatpush.bf16.msra.mxu0 %v1296
      %1376 = vmatpush.bf16.msra.mxu0 %v1295
      %1377 = vmatpush.bf16.msra.mxu0 %v1294
      %1378 = vmatpush.bf16.msra.mxu0 %v1293
      %1379 = vmatpush.bf16.msra.mxu0 %v1292
      %1380 = vmatpush.bf16.msra.mxu0 %v1291
      %1381 = vmatpush.bf16.msra.mxu0 %v1290
      %1382 = vmatmul.bf16.gmra.mxu0 %v1040
      %v1383 = vpop.f32.mrf.mxu0
      %v1384 = vadd.f32 %v1216, %v1383
      %v1385 = vpop.f32.mrf.mxu0
      %v1386 = vadd.f32 %v1216, %v1385
      %1387 = vmatmul.bf16.gmra.mxu0 %v1043
      %v1388 = vpop.f32.mrf.mxu0
      %v1389 = vadd.f32 %v1216, %v1388
      %v1390 = vpop.f32.mrf.mxu0
      %v1391 = vadd.f32 %v1216, %v1390
      %1392 = vmatmul.bf16.gmra.mxu0 %v1046
      %v1393 = vpop.f32.mrf.mxu0
      %v1394 = vadd.f32 %v1216, %v1393
      %v1395 = vpop.f32.mrf.mxu0
      %v1396 = vadd.f32 %v1216, %v1395
      %1397 = vmatmul.bf16.gmra.mxu0 %v1049
      %v1398 = vpop.f32.mrf.mxu0
      %v1399 = vadd.f32 %v1216, %v1398
      %v1400 = vpop.f32.mrf.mxu0
      %v1401 = vadd.f32 %v1216, %v1400
      %1402 = vmatmul.bf16.gmra.mxu0 %v1052
      %v1403 = vpop.f32.mrf.mxu0
      %v1404 = vadd.f32 %v1216, %v1403
      %v1405 = vpop.f32.mrf.mxu0
      %v1406 = vadd.f32 %v1216, %v1405
      %1407 = vmatmul.bf16.gmra.mxu0 %v1055
      %v1408 = vpop.f32.mrf.mxu0
      %v1409 = vadd.f32 %v1216, %v1408
      %v1410 = vpop.f32.mrf.mxu0
      %v1411 = vadd.f32 %v1216, %v1410
      %1412 = vmatmul.bf16.gmra.mxu0 %v1058
      %v1413 = vpop.f32.mrf.mxu0
      %v1414 = vadd.f32 %v1216, %v1413
      %v1415 = vpop.f32.mrf.mxu0
      %v1416 = vadd.f32 %v1216, %v1415
      %1417 = vmatmul.bf16.gmra.mxu0 %v1061
      %v1418 = vpop.f32.mrf.mxu0
      %v1419 = vadd.f32 %v1216, %v1418
      %v1420 = vpop.f32.mrf.mxu0
      %v1421 = vadd.f32 %v1216, %v1420
      %1422 = vmatmul.bf16.gmra.mxu0 %v1064
      %v1423 = vpop.f32.mrf.mxu0
      %v1424 = vadd.f32 %v1216, %v1423
      %v1425 = vpop.f32.mrf.mxu0
      %v1426 = vadd.f32 %v1216, %v1425
      %1427 = vmatmul.bf16.gmra.mxu0 %v1067
      %v1428 = vpop.f32.mrf.mxu0
      %v1429 = vadd.f32 %v1216, %v1428
      %v1430 = vpop.f32.mrf.mxu0
      %v1431 = vadd.f32 %v1216, %v1430
      %1432 = vmatmul.bf16.gmra.mxu0 %v1070
      %v1433 = vpop.f32.mrf.mxu0
      %v1434 = vadd.f32 %v1216, %v1433
      %v1435 = vpop.f32.mrf.mxu0
      %v1436 = vadd.f32 %v1216, %v1435
      %1437 = vmatmul.bf16.gmra.mxu0 %v1073
      %v1438 = vpop.f32.mrf.mxu0
      %v1439 = vadd.f32 %v1216, %v1438
      %v1440 = vpop.f32.mrf.mxu0
      %v1441 = vadd.f32 %v1216, %v1440
      %1442 = vmatmul.bf16.gmra.mxu0 %v1076
      %v1443 = vpop.f32.mrf.mxu0
      %v1444 = vadd.f32 %v1216, %v1443
      %v1445 = vpop.f32.mrf.mxu0
      %v1446 = vadd.f32 %v1216, %v1445
      %1447 = vmatmul.bf16.gmra.mxu0 %v1079
      %v1448 = vpop.f32.mrf.mxu0
      %v1449 = vadd.f32 %v1216, %v1448
      %v1450 = vpop.f32.mrf.mxu0
      %v1451 = vadd.f32 %v1216, %v1450
      %1452 = vmatmul.bf16.gmra.mxu0 %v1082
      %v1453 = vpop.f32.mrf.mxu0
      %v1454 = vadd.f32 %v1216, %v1453
      %v1455 = vpop.f32.mrf.mxu0
      %v1456 = vadd.f32 %v1216, %v1455
      %1457 = vmatmul.bf16.gmra.mxu0 %v1085
      %v1458 = vpop.f32.mrf.mxu0
      %v1459 = vadd.f32 %v1216, %v1458
      %v1460 = vpop.f32.mrf.mxu0
      %v1461 = vadd.f32 %v1216, %v1460
      %1462 = vdwg.mxu0
      %1463 = vmatpush.bf16.msra.mxu0 %v1305
      %1464 = vmatpush.bf16.msra.mxu0 %v1304
      %1465 = vmatpush.bf16.msra.mxu0 %v1303
      %1466 = vmatpush.bf16.msra.mxu0 %v1302
      %1467 = vmatpush.bf16.msra.mxu0 %v1301
      %1468 = vmatpush.bf16.msra.mxu0 %v1300
      %1469 = vmatpush.bf16.msra.mxu0 %v1299
      %1470 = vmatpush.bf16.msra.mxu0 %v1298
      %1471 = vmatmul.bf16.gmra.mxu0 %v1168
      %v1472 = vpop.f32.mrf.mxu0
      %v1473 = vadd.f32 %v1384, %v1472
      %v1474 = vpop.f32.mrf.mxu0
      %v1475 = vadd.f32 %v1386, %v1474
      %1476 = vmatmul.bf16.gmra.mxu0 %v1171
      %v1477 = vpop.f32.mrf.mxu0
      %v1478 = vadd.f32 %v1389, %v1477
      %v1479 = vpop.f32.mrf.mxu0
      %v1480 = vadd.f32 %v1391, %v1479
      %1481 = vmatmul.bf16.gmra.mxu0 %v1174
      %v1482 = vpop.f32.mrf.mxu0
      %v1483 = vadd.f32 %v1394, %v1482
      %v1484 = vpop.f32.mrf.mxu0
      %v1485 = vadd.f32 %v1396, %v1484
      %1486 = vmatmul.bf16.gmra.mxu0 %v1177
      %v1487 = vpop.f32.mrf.mxu0
      %v1488 = vadd.f32 %v1399, %v1487
      %v1489 = vpop.f32.mrf.mxu0
      %v1490 = vadd.f32 %v1401, %v1489
      %1491 = vmatmul.bf16.gmra.mxu0 %v1180
      %v1492 = vpop.f32.mrf.mxu0
      %v1493 = vadd.f32 %v1404, %v1492
      %v1494 = vpop.f32.mrf.mxu0
      %v1495 = vadd.f32 %v1406, %v1494
      %1496 = vmatmul.bf16.gmra.mxu0 %v1183
      %v1497 = vpop.f32.mrf.mxu0
      %v1498 = vadd.f32 %v1409, %v1497
      %v1499 = vpop.f32.mrf.mxu0
      %v1500 = vadd.f32 %v1411, %v1499
      %1501 = vmatmul.bf16.gmra.mxu0 %v1186
      %v1502 = vpop.f32.mrf.mxu0
      %v1503 = vadd.f32 %v1414, %v1502
      %v1504 = vpop.f32.mrf.mxu0
      %v1505 = vadd.f32 %v1416, %v1504
      %1506 = vmatmul.bf16.gmra.mxu0 %v1189
      %v1507 = vpop.f32.mrf.mxu0
      %v1508 = vadd.f32 %v1419, %v1507
      %v1509 = vpop.f32.mrf.mxu0
      %v1510 = vadd.f32 %v1421, %v1509
      %1511 = vmatmul.bf16.gmra.mxu0 %v1192
      %v1512 = vpop.f32.mrf.mxu0
      %v1513 = vadd.f32 %v1424, %v1512
      %v1514 = vpop.f32.mrf.mxu0
      %v1515 = vadd.f32 %v1426, %v1514
      %1516 = vmatmul.bf16.gmra.mxu0 %v1195
      %v1517 = vpop.f32.mrf.mxu0
      %v1518 = vadd.f32 %v1429, %v1517
      %v1519 = vpop.f32.mrf.mxu0
      %v1520 = vadd.f32 %v1431, %v1519
      %1521 = vmatmul.bf16.gmra.mxu0 %v1198
      %v1522 = vpop.f32.mrf.mxu0
      %v1523 = vadd.f32 %v1434, %v1522
      %v1524 = vpop.f32.mrf.mxu0
      %v1525 = vadd.f32 %v1436, %v1524
      %1526 = vmatmul.bf16.gmra.mxu0 %v1201
      %v1527 = vpop.f32.mrf.mxu0
      %v1528 = vadd.f32 %v1439, %v1527
      %v1529 = vpop.f32.mrf.mxu0
      %v1530 = vadd.f32 %v1441, %v1529
      %1531 = vmatmul.bf16.gmra.mxu0 %v1204
      %v1532 = vpop.f32.mrf.mxu0
      %v1533 = vadd.f32 %v1444, %v1532
      %v1534 = vpop.f32.mrf.mxu0
      %v1535 = vadd.f32 %v1446, %v1534
      %1536 = vmatmul.bf16.gmra.mxu0 %v1207
      %v1537 = vpop.f32.mrf.mxu0
      %v1538 = vadd.f32 %v1449, %v1537
      %v1539 = vpop.f32.mrf.mxu0
      %v1540 = vadd.f32 %v1451, %v1539
      %1541 = vmatmul.bf16.gmra.mxu0 %v1210
      %v1542 = vpop.f32.mrf.mxu0
      %v1543 = vadd.f32 %v1454, %v1542
      %v1544 = vpop.f32.mrf.mxu0
      %v1545 = vadd.f32 %v1456, %v1544
      %1546 = vmatmul.bf16.gmra.mxu0 %v1213
      %v1547 = vpop.f32.mrf.mxu0
      %v1548 = vadd.f32 %v1459, %v1547
      %v1549 = vpop.f32.mrf.mxu0
      %v1550 = vadd.f32 %v1461, %v1549
      %1551 = vdwg.mxu0
      %1552 = vmatpush.bf16.msra.mxu0 0
      %1553 = vmatpush.bf16.msra.mxu0 0
      %1554 = vmatpush.bf16.msra.mxu0 0
      %1555 = vmatpush.bf16.msra.mxu0 0
      %1556 = vmatpush.bf16.msra.mxu0 0
      %1557 = vmatpush.bf16.msra.mxu0 0
      %1558 = vmatpush.bf16.msra.mxu0 %v1307
      %1559 = vmatpush.bf16.msra.mxu0 %v1306
      %1560 = vmatmul.bf16.gmra.mxu0 %v1327
      %v1561 = vpop.f32.mrf.mxu0
      %v1562 = vadd.f32 %v1473, %v1561
      %v1563 = vpop.f32.mrf.mxu0
      %v1564 = vadd.f32 %v1475, %v1563
      %1565 = vmatmul.bf16.gmra.mxu0 %v1330
      %v1566 = vpop.f32.mrf.mxu0
      %v1567 = vadd.f32 %v1478, %v1566
      %v1568 = vpop.f32.mrf.mxu0
      %v1569 = vadd.f32 %v1480, %v1568
      %1570 = vmatmul.bf16.gmra.mxu0 %v1333
      %v1571 = vpop.f32.mrf.mxu0
      %v1572 = vadd.f32 %v1483, %v1571
      %v1573 = vpop.f32.mrf.mxu0
      %v1574 = vadd.f32 %v1485, %v1573
      %1575 = vmatmul.bf16.gmra.mxu0 %v1336
      %v1576 = vpop.f32.mrf.mxu0
      %v1577 = vadd.f32 %v1488, %v1576
      %v1578 = vpop.f32.mrf.mxu0
      %v1579 = vadd.f32 %v1490, %v1578
      %1580 = vmatmul.bf16.gmra.mxu0 %v1339
      %v1581 = vpop.f32.mrf.mxu0
      %v1582 = vadd.f32 %v1493, %v1581
      %v1583 = vpop.f32.mrf.mxu0
      %v1584 = vadd.f32 %v1495, %v1583
      %1585 = vmatmul.bf16.gmra.mxu0 %v1342
      %v1586 = vpop.f32.mrf.mxu0
      %v1587 = vadd.f32 %v1498, %v1586
      %v1588 = vpop.f32.mrf.mxu0
      %v1589 = vadd.f32 %v1500, %v1588
      %1590 = vmatmul.bf16.gmra.mxu0 %v1345
      %v1591 = vpop.f32.mrf.mxu0
      %v1592 = vadd.f32 %v1503, %v1591
      %v1593 = vpop.f32.mrf.mxu0
      %v1594 = vadd.f32 %v1505, %v1593
      %1595 = vmatmul.bf16.gmra.mxu0 %v1348
      %v1596 = vpop.f32.mrf.mxu0
      %v1597 = vadd.f32 %v1508, %v1596
      %v1598 = vpop.f32.mrf.mxu0
      %v1599 = vadd.f32 %v1510, %v1598
      %1600 = vmatmul.bf16.gmra.mxu0 %v1351
      %v1601 = vpop.f32.mrf.mxu0
      %v1602 = vadd.f32 %v1513, %v1601
      %v1603 = vpop.f32.mrf.mxu0
      %v1604 = vadd.f32 %v1515, %v1603
      %1605 = vmatmul.bf16.gmra.mxu0 %v1354
      %v1606 = vpop.f32.mrf.mxu0
      %v1607 = vadd.f32 %v1518, %v1606
      %v1608 = vpop.f32.mrf.mxu0
      %v1609 = vadd.f32 %v1520, %v1608
      %1610 = vmatmul.bf16.gmra.mxu0 %v1357
      %v1611 = vpop.f32.mrf.mxu0
      %v1612 = vadd.f32 %v1523, %v1611
      %v1613 = vpop.f32.mrf.mxu0
      %v1614 = vadd.f32 %v1525, %v1613
      %1615 = vmatmul.bf16.gmra.mxu0 %v1360
      %v1616 = vpop.f32.mrf.mxu0
      %v1617 = vadd.f32 %v1528, %v1616
      %v1618 = vpop.f32.mrf.mxu0
      %v1619 = vadd.f32 %v1530, %v1618
      %1620 = vmatmul.bf16.gmra.mxu0 %v1363
      %v1621 = vpop.f32.mrf.mxu0
      %v1622 = vadd.f32 %v1533, %v1621
      %v1623 = vpop.f32.mrf.mxu0
      %v1624 = vadd.f32 %v1535, %v1623
      %1625 = vmatmul.bf16.gmra.mxu0 %v1366
      %v1626 = vpop.f32.mrf.mxu0
      %v1627 = vadd.f32 %v1538, %v1626
      %v1628 = vpop.f32.mrf.mxu0
      %v1629 = vadd.f32 %v1540, %v1628
      %1630 = vmatmul.bf16.gmra.mxu0 %v1369
      %v1631 = vpop.f32.mrf.mxu0
      %v1632 = vadd.f32 %v1543, %v1631
      %v1633 = vpop.f32.mrf.mxu0
      %v1634 = vadd.f32 %v1545, %v1633
      %1635 = vmatmul.bf16.gmra.mxu0 %v1372
      %v1636 = vpop.f32.mrf.mxu0
      %v1637 = vadd.f32 %v1548, %v1636
      %v1638 = vpop.f32.mrf.mxu0
      %v1639 = vadd.f32 %v1550, %v1638
      %1640 = vdwg.mxu0
      %s1641 = scalar_lea.vmem %s212, 24
      %v1642 = vld [vmem:[%s1641 + $0x1] sm:$0xff]
      %v1643 = vld [vmem:[%s1641 + $0x9] sm:$0xff]
      %v1644 = vld [vmem:[%s1641 + $0x19] sm:$0xff]
      %v1645 = vld [vmem:[%s1641 + $0x21] sm:$0xff]
      %v1646 = vld [vmem:[%s1641 + $0x31] sm:$0xff]
      %v1647 = vld [vmem:[%s1641 + $0x39] sm:$0xff]
      %v1648 = vld [vmem:[%s1641 + $0x49] sm:$0xff]
      %v1649 = vld [vmem:[%s1641 + $0x51] sm:$0xff]
      %v1650 = vld [vmem:[%s1641 + $0x61] sm:$0xff]
      %v1651 = vld [vmem:[%s1641 + $0x69] sm:$0xff]
      %v1652 = vld [vmem:[%s1641 + $0x79] sm:$0xff]
      %v1653 = vld [vmem:[%s1641 + $0x81] sm:$0xff]
      %v1654 = vld [vmem:[%s1641 + $0x91] sm:$0xff]
      %v1655 = vld [vmem:[%s1641 + $0x99] sm:$0xff]
      %v1656 = vld [vmem:[%s1641 + $0xa9] sm:$0xff]
      %v1657 = vld [vmem:[%s1641 + $0xb1] sm:$0xff]
      %v1658 = vld [vmem:[%s1641 + $0xc1] sm:$0xff]
      %v1659 = vld [vmem:[%s1641 + $0xc9] sm:$0xff]
      %v1660 = vld [vmem:[%s1641 + $0xd9] sm:$0xff]
      %v1661 = vld [vmem:[%s1641 + $0xe1] sm:$0xff]
      %v1662 = vld [vmem:[%s1641 + $0xf1] sm:$0xff]
      %v1663 = vld [vmem:[%s1641 + $0xf9] sm:$0xff]
      %v1664 = vld [vmem:[%s1641 + $0x109] sm:$0xff]
      %v1665 = vld [vmem:[%s1641 + $0x111] sm:$0xff]
      %v1666 = vld [vmem:[%s1641 + $0x121] sm:$0xff]
      %v1667 = vld [vmem:[%s1641 + $0x129] sm:$0xff]
      %v1668 = vld [vmem:[%s1641 + $0x139] sm:$0xff]
      %v1669 = vld [vmem:[%s1641 + $0x141] sm:$0xff]
      %v1670 = vld [vmem:[%s1641 + $0x151] sm:$0xff]
      %v1671 = vld [vmem:[%s1641 + $0x159] sm:$0xff]
      %v1672 = vld [vmem:[%s1641 + $0x169] sm:$0xff]
      %v1673 = vld [vmem:[%s1641 + $0x171] sm:$0xff]
      %v1674 = vadd.f32 %v1562, %v1642
      %v1675 = vadd.f32 %v1564, %v1643
      %v1676 = vadd.f32 %v1567, %v1644
      %v1677 = vadd.f32 %v1569, %v1645
      %v1678 = vadd.f32 %v1572, %v1646
      %v1679 = vadd.f32 %v1574, %v1647
      %v1680 = vadd.f32 %v1577, %v1648
      %v1681 = vadd.f32 %v1579, %v1649
      %v1682 = vadd.f32 %v1582, %v1650
      %v1683 = vadd.f32 %v1584, %v1651
      %v1684 = vadd.f32 %v1587, %v1652
      %v1685 = vadd.f32 %v1589, %v1653
      %v1686 = vadd.f32 %v1592, %v1654
      %v1687 = vadd.f32 %v1594, %v1655
      %v1688 = vadd.f32 %v1597, %v1656
      %v1689 = vadd.f32 %v1599, %v1657
      %v1690 = vadd.f32 %v1602, %v1658
      %v1691 = vadd.f32 %v1604, %v1659
      %v1692 = vadd.f32 %v1607, %v1660
      %v1693 = vadd.f32 %v1609, %v1661
      %v1694 = vadd.f32 %v1612, %v1662
      %v1695 = vadd.f32 %v1614, %v1663
      %v1696 = vadd.f32 %v1617, %v1664
      %v1697 = vadd.f32 %v1619, %v1665
      %v1698 = vadd.f32 %v1622, %v1666
      %v1699 = vadd.f32 %v1624, %v1667
      %v1700 = vadd.f32 %v1627, %v1668
      %v1701 = vadd.f32 %v1629, %v1669
      %v1702 = vadd.f32 %v1632, %v1670
      %v1703 = vadd.f32 %v1634, %v1671
      %v1704 = vadd.f32 %v1637, %v1672
      %v1705 = vadd.f32 %v1639, %v1673
      %vm1706 = vcmask 23552
      %1707 = vst.msk [vmem:[%s217] sm:$0xff] %vm1706, %v1674
      %1708 = vst.msk [vmem:[%s217 + $0x8] sm:$0xff] %vm1706, %v1675
      %1709 = vst.msk [vmem:[%s217 + $0x10] sm:$0xff] %vm1706, %v1676
      %1710 = vst.msk [vmem:[%s217 + $0x18] sm:$0xff] %vm1706, %v1677
      %1711 = vst.msk [vmem:[%s217 + $0x20] sm:$0xff] %vm1706, %v1678
      %1712 = vst.msk [vmem:[%s217 + $0x28] sm:$0xff] %vm1706, %v1679
      %1713 = vst.msk [vmem:[%s217 + $0x30] sm:$0xff] %vm1706, %v1680
      %1714 = vst.msk [vmem:[%s217 + $0x38] sm:$0xff] %vm1706, %v1681
      %1715 = vst.msk [vmem:[%s217 + $0x40] sm:$0xff] %vm1706, %v1682
      %1716 = vst.msk [vmem:[%s217 + $0x48] sm:$0xff] %vm1706, %v1683
      %1717 = vst.msk [vmem:[%s217 + $0x50] sm:$0xff] %vm1706, %v1684
      %1718 = vst.msk [vmem:[%s217 + $0x58] sm:$0xff] %vm1706, %v1685
      %1719 = vst.msk [vmem:[%s217 + $0x60] sm:$0xff] %vm1706, %v1686
      %1720 = vst.msk [vmem:[%s217 + $0x68] sm:$0xff] %vm1706, %v1687
      %1721 = vst.msk [vmem:[%s217 + $0x70] sm:$0xff] %vm1706, %v1688
      %1722 = vst.msk [vmem:[%s217 + $0x78] sm:$0xff] %vm1706, %v1689
      %1723 = vst.msk [vmem:[%s217 + $0x80] sm:$0xff] %vm1706, %v1690
      %1724 = vst.msk [vmem:[%s217 + $0x88] sm:$0xff] %vm1706, %v1691
      %1725 = vst.msk [vmem:[%s217 + $0x90] sm:$0xff] %vm1706, %v1692
      %1726 = vst.msk [vmem:[%s217 + $0x98] sm:$0xff] %vm1706, %v1693
      %1727 = vst.msk [vmem:[%s217 + $0xa0] sm:$0xff] %vm1706, %v1694
      %1728 = vst.msk [vmem:[%s217 + $0xa8] sm:$0xff] %vm1706, %v1695
      %1729 = vst.msk [vmem:[%s217 + $0xb0] sm:$0xff] %vm1706, %v1696
      %1730 = vst.msk [vmem:[%s217 + $0xb8] sm:$0xff] %vm1706, %v1697
      %1731 = vst.msk [vmem:[%s217 + $0xc0] sm:$0xff] %vm1706, %v1698
      %1732 = vst.msk [vmem:[%s217 + $0xc8] sm:$0xff] %vm1706, %v1699
      %1733 = vst.msk [vmem:[%s217 + $0xd0] sm:$0xff] %vm1706, %v1700
      %1734 = vst.msk [vmem:[%s217 + $0xd8] sm:$0xff] %vm1706, %v1701
      %1735 = vst.msk [vmem:[%s217 + $0xe0] sm:$0xff] %vm1706, %v1702
      %1736 = vst.msk [vmem:[%s217 + $0xe8] sm:$0xff] %vm1706, %v1703
      %1737 = vst.msk [vmem:[%s217 + $0xf0] sm:$0xff] %vm1706, %v1704
      %1738 = vst.msk [vmem:[%s217 + $0xf8] sm:$0xff] %vm1706, %v1705
      %p1739 = scmp.lt.s32.totalorder %s15, 1
      %s1740 = scalar_select %p1739, %s15, 1
      %s1741 = smul.addr %s1740, 32
      %s1742 = smul.addr %s1741, 8
      %s1743 = scalar_lea.vmem %s4, %s1742
      // Predicated region
      $region37: #{precoding_resnet_forward.7} parent=35 // pred_check
        %p1744 = pneg %p127
      $region38: #{precoding_resnet_forward.7} parent=35 // pred_check_branch
        %1746 = sbr.rel (%p1744) target = $region40
      $region39: #{precoding_resnet_forward.7} parent=35 // pred_region
        _
      $region40: #{precoding_resnet_forward.7} parent=35 // pred_fallthru
        _
    $region36: #{precoding_resnet_forward.7} parent=5 // pred_fallthru
      _
    %p1747 = scmp.le.s32.totalorder 2, %s10
    // Predicated region
    $region41: #{precoding_resnet_forward.7} parent=5 // pred_check
      %p1748 = pneg %p1747
    $region42: #{precoding_resnet_forward.7} parent=5 // pred_check_branch
      %1750 = sbr.rel (%p1748) target = $region44
    $region43: #{precoding_resnet_forward.7} parent=5 // pred_region
      %s1751 = ssub.s32 %s10, 2
      // Predicated region
      $region45: #{precoding_resnet_forward.7} parent=43 // pred_check
        %p1752 = pneg %p133
      $region46: #{precoding_resnet_forward.7} parent=43 // pred_check_branch
        %1754 = sbr.rel (%p1752) target = $region48
      $region47: #{precoding_resnet_forward.7} parent=43 // pred_region
        %p1755 = scmp.lt.s32.totalorder %s16, 1
        %s1756 = scalar_select %p1755, %s16, 1
        %s1757 = smul.addr %s1756, 32
        %s1758 = smul.addr %s1757, 8
        %s1759 = scalar_lea.vmem %s4, %s1758
      $region48: #{precoding_resnet_forward.7} parent=43 // pred_fallthru
        _
    $region44: #{precoding_resnet_forward.7} parent=5 // pred_fallthru
      _
  $region6: #{precoding_resnet_forward.7} parent=0 // loop_footer
    %s14 = sadd.s32 1, %s10
  $region7: #{precoding_resnet_forward.7} parent=0 // loop_footer_branch
    %9 = sbr.rel target = $region3
  $region8: #{precoding_resnet_forward.7} parent=0 // loop_exit
    _

// kernel: precoding_resnet_forward.4
$region0: #{precoding_resnet_forward.4}
  #allocation0 [shape = 'u32[]', space=smem, size = 0x4, offset = 0x4, fixed_abs, tag = 'smem constant byte address 0x4 - core index']
  #allocation1 [shape = 'u32[72,128]{1,0:T(1,128)}', space=vmem, size = 0x9000, scoped, tag = 'internal scratch']
  %s0 = inlined_call_operand.vmem [shape: f32[2,18,18,3], index: 0, kind: input, shape index: {}]
  %s1 = inlined_call_operand.vmem [shape: bf16[27,32], index: 1, kind: input, shape index: {}]
  %s2 = inlined_call_operand.vmem [shape: f32[1,32], index: 2, kind: input, shape index: {}]
  %s3 = inlined_call_operand.vmem [shape: f32[2,18,18,32], index: 3, kind: output, shape index: {}]
  %s4 = sld [smem:[#allocation0]]
  $region45: #{precoding_resnet_forward.4} parent=0
    _
  %s6 = ssub.s32 1, %s4
  %s7 = scalar_select 0, %s6, %s4
  loop: start=0, step=1, limit=4
  $region2: #{precoding_resnet_forward.4} parent=0 // loop_pre_header
    _
  $region3: #{precoding_resnet_forward.4} parent=0 // loop_header
    %s9 = sphi 0, %s13
    %p10 = scmp.ge.s32.totalorder %s9, 4
    %s19 = sphi 0, %s21
    %s22 = sphi 0, %s19
    %s23 = sphi 0, %s22
    %s39 = sphi 0, %s23
    %s43 = sphi 0, %s43
    %s45 = sphi 0, %s43
    %s46 = sphi 0, %s45
    %s60 = sphi 0, %s46
    %s64 = sphi 0, %s64
    %s66 = sphi 0, %s64
    %s67 = sphi 0, %s66
    %s81 = sphi 0, %s67
    %s87 = sphi 0, %s89
    %s90 = sphi 0, %s87
    %s91 = sphi 0, %s90
    %s107 = sphi 0, %s91
  $region4: #{precoding_resnet_forward.4} parent=0 // loop_header_branch
    %12 = sbr.rel (%p10) target = $region8
  $region5: #{precoding_resnet_forward.4} parent=0 // loop_body
    %s14 = ssub.s32 %s9, 1
    %s15 = ssub.s32 %s9, 2
    %s16 = sadd.s32 %s9, 1
    %s17 = ssub.s32 %s9, %s16
    %p18 = scmp.eq.s32.totalorder %s17, 0
    %s20 = sadd.s32 %s19, 1
    %s21 = scalar_select %p18, %s19, %s20
    %p24 = pneg %p18
    %p25 = scmp.eq.s32.totalorder %s9, 1
    %p26 = por %p24, %p25
    %p27 = scmp.ne.s32.totalorder %s19, %s22
    %p28 = scmp.eq.s32.totalorder %s9, 0
    %p29 = por %p27, %p28
    %p30 = scmp.ne.s32.totalorder %s19, %s22
    %p31 = scmp.eq.s32.totalorder %s14, 1
    %p32 = por %p30, %p31
    %p33 = scmp.ne.s32.totalorder %s22, %s23
    %p34 = scmp.eq.s32.totalorder %s14, 0
    %p35 = por %p33, %p34
    %p36 = scmp.ne.s32.totalorder %s22, %s23
    %p37 = scmp.eq.s32.totalorder %s15, 1
    %p38 = por %p36, %p37
    %p40 = scmp.ne.s32.totalorder %s23, %s39
    %p41 = scmp.eq.s32.totalorder %s15, 0
    %p42 = por %p40, %p41
    %s44 = sadd.s32 %s43, 1
    %p47 = scmp.eq.s32.totalorder %s9, 1
    %p48 = scmp.ne.s32.totalorder %s43, %s45
    %p49 = scmp.eq.s32.totalorder %s9, 0
    %p50 = por %p48, %p49
    %p51 = scmp.ne.s32.totalorder %s43, %s45
    %p52 = scmp.eq.s32.totalorder %s14, 1
    %p53 = por %p51, %p52
    %p54 = scmp.ne.s32.totalorder %s45, %s46
    %p55 = scmp.eq.s32.totalorder %s14, 0
    %p56 = por %p54, %p55
    %p57 = scmp.ne.s32.totalorder %s45, %s46
    %p58 = scmp.eq.s32.totalorder %s15, 1
    %p59 = por %p57, %p58
    %p61 = scmp.ne.s32.totalorder %s46, %s60
    %p62 = scmp.eq.s32.totalorder %s15, 0
    %p63 = por %p61, %p62
    %s65 = sadd.s32 %s64, 1
    %p68 = scmp.eq.s32.totalorder %s9, 1
    %p69 = scmp.ne.s32.totalorder %s64, %s66
    %p70 = scmp.eq.s32.totalorder %s9, 0
    %p71 = por %p69, %p70
    %p72 = scmp.ne.s32.totalorder %s64, %s66
    %p73 = scmp.eq.s32.totalorder %s14, 1
    %p74 = por %p72, %p73
    %p75 = scmp.ne.s32.totalorder %s66, %s67
    %p76 = scmp.eq.s32.totalorder %s14, 0
    %p77 = por %p75, %p76
    %p78 = scmp.ne.s32.totalorder %s66, %s67
    %p79 = scmp.eq.s32.totalorder %s15, 1
    %p80 = por %p78, %p79
    %p82 = scmp.ne.s32.totalorder %s67, %s81
    %p83 = scmp.eq.s32.totalorder %s15, 0
    %p84 = por %p82, %p83
    %s85 = ssub.s32 %s9, %s16
    %p86 = scmp.eq.s32.totalorder %s85, 0
    %s88 = sadd.s32 %s87, 1
    %s89 = scalar_select %p86, %s87, %s88
    %p92 = pneg %p86
    %p93 = scmp.eq.s32.totalorder %s9, 1
    %p94 = por %p92, %p93
    %p95 = scmp.ne.s32.totalorder %s87, %s90
    %p96 = scmp.eq.s32.totalorder %s9, 0
    %p97 = por %p95, %p96
    %p98 = scmp.ne.s32.totalorder %s87, %s90
    %p99 = scmp.eq.s32.totalorder %s14, 1
    %p100 = por %p98, %p99
    %p101 = scmp.ne.s32.totalorder %s90, %s91
    %p102 = scmp.eq.s32.totalorder %s14, 0
    %p103 = por %p101, %p102
    %p104 = scmp.ne.s32.totalorder %s90, %s91
    %p105 = scmp.eq.s32.totalorder %s15, 1
    %p106 = por %p104, %p105
    %p108 = scmp.ne.s32.totalorder %s91, %s107
    %p109 = scmp.eq.s32.totalorder %s15, 0
    %p110 = por %p108, %p109
    %p111 = scmp.le.s32.totalorder 1, %s9
    %p112 = scmp.lt.s32.totalorder %s9, 3
    %p113 = pnand %p111, %p112
    %p114 = pneg %p113
    // Predicated region
    $region9: #{precoding_resnet_forward.4} parent=5 // pred_check
      _
    $region10: #{precoding_resnet_forward.4} parent=5 // pred_check_branch
      %116 = sbr.rel (%p113) target = $region12
    $region11: #{precoding_resnet_forward.4} parent=5 // pred_region
      %s117 = ssub.s32 %s9, 1
      // Predicated region
      $region13: #{precoding_resnet_forward.4} parent=11 // pred_check
        %p118 = pneg %p56
      $region14: #{precoding_resnet_forward.4} parent=11 // pred_check_branch
        %120 = sbr.rel (%p118) target = $region16
      $region15: #{precoding_resnet_forward.4} parent=11 // pred_region
        _
      $region16: #{precoding_resnet_forward.4} parent=11 // pred_fallthru
        _
      // Predicated region
      $region17: #{precoding_resnet_forward.4} parent=11 // pred_check
        %p121 = pneg %p77
      $region18: #{precoding_resnet_forward.4} parent=11 // pred_check_branch
        %123 = sbr.rel (%p121) target = $region20
      $region19: #{precoding_resnet_forward.4} parent=11 // pred_region
        _
      $region20: #{precoding_resnet_forward.4} parent=11 // pred_fallthru
        _
    $region12: #{precoding_resnet_forward.4} parent=5 // pred_fallthru
      _
    %p124 = scmp.lt.s32.totalorder %s9, 2
    // Predicated region
    $region21: #{precoding_resnet_forward.4} parent=5 // pred_check
      %p125 = pneg %p124
    $region22: #{precoding_resnet_forward.4} parent=5 // pred_check_branch
      %127 = sbr.rel (%p125) target = $region24
    $region23: #{precoding_resnet_forward.4} parent=5 // pred_region
      // Predicated region
      $region25: #{precoding_resnet_forward.4} parent=23 // pred_check
        %p128 = pneg %p29
      $region26: #{precoding_resnet_forward.4} parent=23 // pred_check_branch
        %130 = sbr.rel (%p128) target = $region28
      $region27: #{precoding_resnet_forward.4} parent=23 // pred_region
        %p131 = scmp.lt.s32.totalorder %s9, 1
        %s132 = scalar_select %p131, %s9, 1
        %s133 = smul.addr %s132, 54
        %s134 = smul.addr %s133, 8
        %s135 = scalar_lea.vmem %s0, %s134
      $region28: #{precoding_resnet_forward.4} parent=23 // pred_fallthru
        _
    $region24: #{precoding_resnet_forward.4} parent=5 // pred_fallthru
      _
    %p136 = scmp.le.s32.totalorder 1, %s9
    %p137 = scmp.lt.s32.totalorder %s9, 3
    %p138 = pnand %p136, %p137
    %p139 = pneg %p138
    // Predicated region
    $region29: #{precoding_resnet_forward.4} parent=5 // pred_check
      _
    $region30: #{precoding_resnet_forward.4} parent=5 // pred_check_branch
      %141 = sbr.rel (%p138) target = $region32
    $region31: #{precoding_resnet_forward.4} parent=5 // pred_region
      %s142 = ssub.s32 %s9, 1
      %p143 = scmp.lt.s32.totalorder %s14, 1
      %s144 = scalar_select %p143, %s14, 1
      %s145 = smul.addr %s144, 54
      %s146 = smul.addr %s145, 8
      %s147 = scalar_lea.vmem %s0, %s146
      %p148 = pneg %p35
      %p149 = pneg %p32
      %p150 = pneg %p56
      %p151 = pneg %p53
      %p152 = pneg %p77
      %p153 = pneg %p74
      %p154 = pneg %p103
      %p155 = pneg %p100
      %p156 = scmp.lt.s32.totalorder %s14, 1
      %s157 = scalar_select %p156, %s14, 1
      %s158 = smul.addr %s157, 54
      %s159 = smul.addr %s158, 8
      %s160 = scalar_lea.vmem %s3, %s159
      %p161 = scmp.lt.s32.totalorder %s14, 1
      %s162 = scalar_select %p161, %s14, 1
      %s163 = smul.addr %s162, 54
      %s164 = smul.addr %s163, 8
      %s165 = scalar_lea.vmem %s0, %s164
      %p166 = scmp.lt.s32.totalorder %s14, 1
      %s167 = scalar_select %p166, %s14, 1
      %s168 = smul.addr %s167, 54
      %s169 = smul.addr %s168, 8
      %s170 = scalar_lea.vmem %s3, %s169
      %v172 = vld [vmem:[%s165] sm:$0xff]
      %v173 = vld [vmem:[%s165 + $0x8] sm:$0xff]
      %v174 = vld [vmem:[%s165 + $0x10] sm:$0x3]
      %v175 = vld [vmem:[%s165 + $0x18] sm:$0xff]
      %v176 = vld [vmem:[%s165 + $0x20] sm:$0xff]
      %v177 = vld [vmem:[%s165 + $0x28] sm:$0x3]
      %v178 = vld [vmem:[%s165 + $0x30] sm:$0xff]
      %v179 = vld [vmem:[%s165 + $0x38] sm:$0xff]
      %v180 = vld [vmem:[%s165 + $0x40] sm:$0x3]
      %v181 = vld [vmem:[%s165 + $0x48] sm:$0xff]
      %v182 = vld [vmem:[%s165 + $0x50] sm:$0xff]
      %v183 = vld [vmem:[%s165 + $0x58] sm:$0x3]
      %v184 = vld [vmem:[%s165 + $0x60] sm:$0xff]
      %v185 = vld [vmem:[%s165 + $0x68] sm:$0xff]
      %v186 = vld [vmem:[%s165 + $0x70] sm:$0x3]
      %v187 = vld [vmem:[%s165 + $0x78] sm:$0xff]
      %v188 = vld [vmem:[%s165 + $0x80] sm:$0xff]
      %v189 = vld [vmem:[%s165 + $0x88] sm:$0x3]
      %v190 = vld [vmem:[%s165 + $0x90] sm:$0xff]
      %v191 = vld [vmem:[%s165 + $0x98] sm:$0xff]
      %v192 = vld [vmem:[%s165 + $0xa0] sm:$0x3]
      %v193 = vld [vmem:[%s165 + $0xa8] sm:$0xff]
      %v194 = vld [vmem:[%s165 + $0xb0] sm:$0xff]
      %v195 = vld [vmem:[%s165 + $0xb8] sm:$0x3]
      %v196 = vld [vmem:[%s165 + $0xc0] sm:$0xff]
      %v197 = vld [vmem:[%s165 + $0xc8] sm:$0xff]
      %v198 = vld [vmem:[%s165 + $0xd0] sm:$0x3]
      %v199 = vld [vmem:[%s165 + $0xd8] sm:$0xff]
      %v200 = vld [vmem:[%s165 + $0xe0] sm:$0xff]
      %v201 = vld [vmem:[%s165 + $0xe8] sm:$0x3]
      %v202 = vld [vmem:[%s165 + $0xf0] sm:$0xff]
      %v203 = vld [vmem:[%s165 + $0xf8] sm:$0xff]
      %v204 = vld [vmem:[%s165 + $0x100] sm:$0x3]
      %v205 = vld [vmem:[%s165 + $0x108] sm:$0xff]
      %v206 = vld [vmem:[%s165 + $0x110] sm:$0xff]
      %v207 = vld [vmem:[%s165 + $0x118] sm:$0x3]
      %v208 = vld [vmem:[%s165 + $0x120] sm:$0xff]
      %v209 = vld [vmem:[%s165 + $0x128] sm:$0xff]
      %v210 = vld [vmem:[%s165 + $0x130] sm:$0x3]
      %v211 = vld [vmem:[%s165 + $0x138] sm:$0xff]
      %v212 = vld [vmem:[%s165 + $0x140] sm:$0xff]
      %v213 = vld [vmem:[%s165 + $0x148] sm:$0x3]
      %v214 = vld [vmem:[%s165 + $0x150] sm:$0xff]
      %v215 = vld [vmem:[%s165 + $0x158] sm:$0xff]
      %v216 = vld [vmem:[%s165 + $0x160] sm:$0x3]
      %v217 = vld [vmem:[%s165 + $0x168] sm:$0xff]
      %v218 = vld [vmem:[%s165 + $0x170] sm:$0xff]
      %v219 = vld [vmem:[%s165 + $0x178] sm:$0x3]
      %v220 = vld [vmem:[%s165 + $0x180] sm:$0xff]
      %v221 = vld [vmem:[%s165 + $0x188] sm:$0xff]
      %v222 = vld [vmem:[%s165 + $0x190] sm:$0x3]
      %v223 = vld [vmem:[%s165 + $0x198] sm:$0xff]
      %v224 = vld [vmem:[%s165 + $0x1a0] sm:$0xff]
      %v225 = vld [vmem:[%s165 + $0x1a8] sm:$0x3]
      %v226 = vld [vmem:[%s1] sm:$0xf]
      %v227 = vld [vmem:[%s1 + $0x4] sm:$0xf]
      %v228 = vld [vmem:[%s1 + $0x8] sm:$0xf]
      %v229 = vld [vmem:[%s1 + $0xc] sm:$0x3]
      %v230 = vld [vmem:[%s2] sm:$0x1]
      %v231 = vpack.c.bf16 %v172, %v172
      %v232 = vpack.c.bf16 %v173, %v173
      %v233 = vpack.c.bf16 %v174, %v174
      %v234 = vpack.c.bf16 %v175, %v175
      %v235 = vpack.c.bf16 %v176, %v176
      %v236 = vpack.c.bf16 %v177, %v177
      %v237 = vpack.c.bf16 %v178, %v178
      %v238 = vpack.c.bf16 %v179, %v179
      %v239 = vpack.c.bf16 %v180, %v180
      %v240 = vpack.c.bf16 %v181, %v181
      %v241 = vpack.c.bf16 %v182, %v182
      %v242 = vpack.c.bf16 %v183, %v183
      %v243 = vpack.c.bf16 %v184, %v184
      %v244 = vpack.c.bf16 %v185, %v185
      %v245 = vpack.c.bf16 %v186, %v186
      %v246 = vpack.c.bf16 %v187, %v187
      %v247 = vpack.c.bf16 %v188, %v188
      %v248 = vpack.c.bf16 %v189, %v189
      %v249 = vpack.c.bf16 %v190, %v190
      %v250 = vpack.c.bf16 %v191, %v191
      %v251 = vpack.c.bf16 %v192, %v192
      %v252 = vpack.c.bf16 %v193, %v193
      %v253 = vpack.c.bf16 %v194, %v194
      %v254 = vpack.c.bf16 %v195, %v195
      %v255 = vpack.c.bf16 %v196, %v196
      %v256 = vpack.c.bf16 %v197, %v197
      %v257 = vpack.c.bf16 %v198, %v198
      %v258 = vpack.c.bf16 %v199, %v199
      %v259 = vpack.c.bf16 %v200, %v200
      %v260 = vpack.c.bf16 %v201, %v201
      %v261 = vpack.c.bf16 %v202, %v202
      %v262 = vpack.c.bf16 %v203, %v203
      %v263 = vpack.c.bf16 %v204, %v204
      %v264 = vpack.c.bf16 %v205, %v205
      %v265 = vpack.c.bf16 %v206, %v206
      %v266 = vpack.c.bf16 %v207, %v207
      %v267 = vpack.c.bf16 %v208, %v208
      %v268 = vpack.c.bf16 %v209, %v209
      %v269 = vpack.c.bf16 %v210, %v210
      %v270 = vpack.c.bf16 %v211, %v211
      %v271 = vpack.c.bf16 %v212, %v212
      %v272 = vpack.c.bf16 %v213, %v213
      %v273 = vpack.c.bf16 %v214, %v214
      %v274 = vpack.c.bf16 %v215, %v215
      %v275 = vpack.c.bf16 %v216, %v216
      %v276 = vpack.c.bf16 %v217, %v217
      %v277 = vpack.c.bf16 %v218, %v218
      %v278 = vpack.c.bf16 %v219, %v219
      %v279 = vpack.c.bf16 %v220, %v220
      %v280 = vpack.c.bf16 %v221, %v221
      %v281 = vpack.c.bf16 %v222, %v222
      %v282 = vpack.c.bf16 %v223, %v223
      %v283 = vpack.c.bf16 %v224, %v224
      %v284 = vpack.c.bf16 %v225, %v225
      %v317 = vunpack.c.l.b16 %v231
      %v318 = vunpack.c.l.b16 %v232
      %v319 = vunpack.c.l.b16 %v234
      %v320 = vunpack.c.l.b16 %v235
      %v321 = vunpack.c.l.b16 %v237
      %v322 = vunpack.c.l.b16 %v238
      %v323 = vunpack.c.l.b16 %v240
      %v324 = vunpack.c.l.b16 %v241
      %v325 = vunpack.c.l.b16 %v243
      %v326 = vunpack.c.l.b16 %v244
      %v327 = vunpack.c.l.b16 %v246
      %v328 = vunpack.c.l.b16 %v247
      %v329 = vunpack.c.l.b16 %v249
      %v330 = vunpack.c.l.b16 %v250
      %v331 = vunpack.c.l.b16 %v252
      %v332 = vunpack.c.l.b16 %v253
      %v333 = vunpack.c.l.b16 %v255
      %v334 = vunpack.c.l.b16 %v256
      %v335 = vunpack.c.l.b16 %v258
      %v336 = vunpack.c.l.b16 %v259
      %v337 = vunpack.c.l.b16 %v261
      %v338 = vunpack.c.l.b16 %v262
      %v339 = vunpack.c.l.b16 %v264
      %v340 = vunpack.c.l.b16 %v265
      %v341 = vunpack.c.l.b16 %v267
      %v342 = vunpack.c.l.b16 %v268
      %v343 = vunpack.c.l.b16 %v270
      %v344 = vunpack.c.l.b16 %v271
      %v345 = vunpack.c.l.b16 %v273
      %v346 = vunpack.c.l.b16 %v274
      %v347 = vunpack.c.l.b16 %v276
      %v348 = vunpack.c.l.b16 %v277
      %v349 = vpack.c.b16 %v318, %v317
      %v350 = vpack.c.b16 %v320, %v319
      %v351 = vpack.c.b16 %v322, %v321
      %v352 = vpack.c.b16 %v324, %v323
      %v353 = vpack.c.b16 %v326, %v325
      %v354 = vpack.c.b16 %v328, %v327
      %v355 = vpack.c.b16 %v330, %v329
      %v356 = vpack.c.b16 %v332, %v331
      %v357 = vpack.c.b16 %v334, %v333
      %v358 = vpack.c.b16 %v336, %v335
      %v359 = vpack.c.b16 %v338, %v337
      %v360 = vpack.c.b16 %v340, %v339
      %v361 = vpack.c.b16 %v342, %v341
      %v362 = vpack.c.b16 %v344, %v343
      %v363 = vpack.c.b16 %v346, %v345
      %v364 = vpack.c.b16 %v348, %v347
      %v381 = vunpack.c.l.b16 %v233
      %v382 = vunpack.c.l.b16 %v236
      %v383 = vunpack.c.l.b16 %v239
      %v384 = vunpack.c.l.b16 %v242
      %v385 = vunpack.c.l.b16 %v245
      %v386 = vunpack.c.l.b16 %v248
      %v387 = vunpack.c.l.b16 %v251
      %v388 = vunpack.c.l.b16 %v254
      %v389 = vunpack.c.l.b16 %v257
      %v390 = vunpack.c.l.b16 %v260
      %v391 = vunpack.c.l.b16 %v263
      %v392 = vunpack.c.l.b16 %v266
      %v393 = vunpack.c.l.b16 %v269
      %v394 = vunpack.c.l.b16 %v272
      %v395 = vunpack.c.l.b16 %v275
      %v396 = vunpack.c.l.b16 %v278
      %v397 = vpack.c.b16 %v381, %v381
      %v398 = vpack.c.b16 %v382, %v382
      %v399 = vpack.c.b16 %v383, %v383
      %v400 = vpack.c.b16 %v384, %v384
      %v401 = vpack.c.b16 %v385, %v385
      %v402 = vpack.c.b16 %v386, %v386
      %v403 = vpack.c.b16 %v387, %v387
      %v404 = vpack.c.b16 %v388, %v388
      %v405 = vpack.c.b16 %v389, %v389
      %v406 = vpack.c.b16 %v390, %v390
      %v407 = vpack.c.b16 %v391, %v391
      %v408 = vpack.c.b16 %v392, %v392
      %v409 = vpack.c.b16 %v393, %v393
      %v410 = vpack.c.b16 %v394, %v394
      %v411 = vpack.c.b16 %v395, %v395
      %v412 = vpack.c.b16 %v396, %v396
      %vm413 = vsmask.f32 7424
      %v415 = vshrl.u32 %v349, 16
      %v417 = vshll.u32 %v349, 16
      %v419 = vrot.slane %v417, 1
      %v420 = vor.u32 %v415, %v419
      %v422 = vshll.u32 %v397, 16
      %v424 = vrot.slane %v422, 1
      %v425 = vsel %vm413, %v420, %v424
      %v427 = vshrl.u32 %v350, 16
      %v429 = vshll.u32 %v350, 16
      %v431 = vrot.slane %v429, 1
      %v432 = vor.u32 %v427, %v431
      %v434 = vshll.u32 %v398, 16
      %v436 = vrot.slane %v434, 1
      %v437 = vsel %vm413, %v432, %v436
      %v439 = vshrl.u32 %v351, 16
      %v441 = vshll.u32 %v351, 16
      %v443 = vrot.slane %v441, 1
      %v444 = vor.u32 %v439, %v443
      %v446 = vshll.u32 %v399, 16
      %v448 = vrot.slane %v446, 1
      %v449 = vsel %vm413, %v444, %v448
      %v451 = vshrl.u32 %v352, 16
      %v453 = vshll.u32 %v352, 16
      %v455 = vrot.slane %v453, 1
      %v456 = vor.u32 %v451, %v455
      %v458 = vshll.u32 %v400, 16
      %v460 = vrot.slane %v458, 1
      %v461 = vsel %vm413, %v456, %v460
      %v463 = vshrl.u32 %v353, 16
      %v465 = vshll.u32 %v353, 16
      %v467 = vrot.slane %v465, 1
      %v468 = vor.u32 %v463, %v467
      %v470 = vshll.u32 %v401, 16
      %v472 = vrot.slane %v470, 1
      %v473 = vsel %vm413, %v468, %v472
      %v475 = vshrl.u32 %v354, 16
      %v477 = vshll.u32 %v354, 16
      %v479 = vrot.slane %v477, 1
      %v480 = vor.u32 %v475, %v479
      %v482 = vshll.u32 %v402, 16
      %v484 = vrot.slane %v482, 1
      %v485 = vsel %vm413, %v480, %v484
      %v487 = vshrl.u32 %v355, 16
      %v489 = vshll.u32 %v355, 16
      %v491 = vrot.slane %v489, 1
      %v492 = vor.u32 %v487, %v491
      %v494 = vshll.u32 %v403, 16
      %v496 = vrot.slane %v494, 1
      %v497 = vsel %vm413, %v492, %v496
      %v499 = vshrl.u32 %v356, 16
      %v501 = vshll.u32 %v356, 16
      %v503 = vrot.slane %v501, 1
      %v504 = vor.u32 %v499, %v503
      %v506 = vshll.u32 %v404, 16
      %v508 = vrot.slane %v506, 1
      %v509 = vsel %vm413, %v504, %v508
      %v511 = vshrl.u32 %v357, 16
      %v513 = vshll.u32 %v357, 16
      %v515 = vrot.slane %v513, 1
      %v516 = vor.u32 %v511, %v515
      %v518 = vshll.u32 %v405, 16
      %v520 = vrot.slane %v518, 1
      %v521 = vsel %vm413, %v516, %v520
      %v523 = vshrl.u32 %v358, 16
      %v525 = vshll.u32 %v358, 16
      %v527 = vrot.slane %v525, 1
      %v528 = vor.u32 %v523, %v527
      %v530 = vshll.u32 %v406, 16
      %v532 = vrot.slane %v530, 1
      %v533 = vsel %vm413, %v528, %v532
      %v535 = vshrl.u32 %v359, 16
      %v537 = vshll.u32 %v359, 16
      %v539 = vrot.slane %v537, 1
      %v540 = vor.u32 %v535, %v539
      %v542 = vshll.u32 %v407, 16
      %v544 = vrot.slane %v542, 1
      %v545 = vsel %vm413, %v540, %v544
      %v547 = vshrl.u32 %v360, 16
      %v549 = vshll.u32 %v360, 16
      %v551 = vrot.slane %v549, 1
      %v552 = vor.u32 %v547, %v551
      %v554 = vshll.u32 %v408, 16
      %v556 = vrot.slane %v554, 1
      %v557 = vsel %vm413, %v552, %v556
      %v559 = vshrl.u32 %v361, 16
      %v561 = vshll.u32 %v361, 16
      %v563 = vrot.slane %v561, 1
      %v564 = vor.u32 %v559, %v563
      %v566 = vshll.u32 %v409, 16
      %v568 = vrot.slane %v566, 1
      %v569 = vsel %vm413, %v564, %v568
      %v571 = vshrl.u32 %v362, 16
      %v573 = vshll.u32 %v362, 16
      %v575 = vrot.slane %v573, 1
      %v576 = vor.u32 %v571, %v575
      %v578 = vshll.u32 %v410, 16
      %v580 = vrot.slane %v578, 1
      %v581 = vsel %vm413, %v576, %v580
      %v583 = vshrl.u32 %v363, 16
      %v585 = vshll.u32 %v363, 16
      %v587 = vrot.slane %v585, 1
      %v588 = vor.u32 %v583, %v587
      %v590 = vshll.u32 %v411, 16
      %v592 = vrot.slane %v590, 1
      %v593 = vsel %vm413, %v588, %v592
      %v595 = vshrl.u32 %v364, 16
      %v597 = vshll.u32 %v364, 16
      %v599 = vrot.slane %v597, 1
      %v600 = vor.u32 %v595, %v599
      %v602 = vshll.u32 %v412, 16
      %v604 = vrot.slane %v602, 1
      %v605 = vsel %vm413, %v600, %v604
      %606 = vrot.lane.b32.xlu0 %v425, 3
      %v607 = vpop.permute.xlu0 %606
      %608 = vrot.lane.b32.xlu0 %v437, 3
      %v609 = vpop.permute.xlu0 %608
      %610 = vrot.lane.b32.xlu0 %v449, 3
      %v611 = vpop.permute.xlu0 %610
      %612 = vrot.lane.b32.xlu0 %v461, 3
      %v613 = vpop.permute.xlu0 %612
      %614 = vrot.lane.b32.xlu0 %v473, 3
      %v615 = vpop.permute.xlu0 %614
      %616 = vrot.lane.b32.xlu0 %v485, 3
      %v617 = vpop.permute.xlu0 %616
      %618 = vrot.lane.b32.xlu0 %v497, 3
      %v619 = vpop.permute.xlu0 %618
      %620 = vrot.lane.b32.xlu0 %v509, 3
      %v621 = vpop.permute.xlu0 %620
      %622 = vrot.lane.b32.xlu0 %v521, 3
      %v623 = vpop.permute.xlu0 %622
      %624 = vrot.lane.b32.xlu0 %v533, 3
      %v625 = vpop.permute.xlu0 %624
      %626 = vrot.lane.b32.xlu0 %v545, 3
      %v627 = vpop.permute.xlu0 %626
      %628 = vrot.lane.b32.xlu0 %v557, 3
      %v629 = vpop.permute.xlu0 %628
      %630 = vrot.lane.b32.xlu0 %v569, 3
      %v631 = vpop.permute.xlu0 %630
      %632 = vrot.lane.b32.xlu0 %v581, 3
      %v633 = vpop.permute.xlu0 %632
      %634 = vrot.lane.b32.xlu0 %v593, 3
      %v635 = vpop.permute.xlu0 %634
      %636 = vrot.lane.b32.xlu0 %v605, 3
      %v637 = vpop.permute.xlu0 %636
      %vm638 = vcmask 1046528
      %v639 = vrot.slane %v349, 1
      %v640 = vrot.slane %v397, 1
      %v641 = vsel %vm638, %v639, %v640
      %v642 = vrot.slane %v350, 1
      %v643 = vrot.slane %v398, 1
      %v644 = vsel %vm638, %v642, %v643
      %v645 = vrot.slane %v351, 1
      %v646 = vrot.slane %v399, 1
      %v647 = vsel %vm638, %v645, %v646
      %v648 = vrot.slane %v352, 1
      %v649 = vrot.slane %v400, 1
      %v650 = vsel %vm638, %v648, %v649
      %v651 = vrot.slane %v353, 1
      %v652 = vrot.slane %v401, 1
      %v653 = vsel %vm638, %v651, %v652
      %v654 = vrot.slane %v354, 1
      %v655 = vrot.slane %v402, 1
      %v656 = vsel %vm638, %v654, %v655
      %v657 = vrot.slane %v355, 1
      %v658 = vrot.slane %v403, 1
      %v659 = vsel %vm638, %v657, %v658
      %v660 = vrot.slane %v356, 1
      %v661 = vrot.slane %v404, 1
      %v662 = vsel %vm638, %v660, %v661
      %v663 = vrot.slane %v357, 1
      %v664 = vrot.slane %v405, 1
      %v665 = vsel %vm638, %v663, %v664
      %v666 = vrot.slane %v358, 1
      %v667 = vrot.slane %v406, 1
      %v668 = vsel %vm638, %v666, %v667
      %v669 = vrot.slane %v359, 1
      %v670 = vrot.slane %v407, 1
      %v671 = vsel %vm638, %v669, %v670
      %v672 = vrot.slane %v360, 1
      %v673 = vrot.slane %v408, 1
      %v674 = vsel %vm638, %v672, %v673
      %v675 = vrot.slane %v361, 1
      %v676 = vrot.slane %v409, 1
      %v677 = vsel %vm638, %v675, %v676
      %v678 = vrot.slane %v362, 1
      %v679 = vrot.slane %v410, 1
      %v680 = vsel %vm638, %v678, %v679
      %v681 = vrot.slane %v363, 1
      %v682 = vrot.slane %v411, 1
      %v683 = vsel %vm638, %v681, %v682
      %v684 = vrot.slane %v364, 1
      %v685 = vrot.slane %v412, 1
      %v686 = vsel %vm638, %v684, %v685
      %687 = vrot.lane.b32.xlu0 %v641, 6
      %v688 = vpop.permute.xlu0 %687
      %689 = vrot.lane.b32.xlu0 %v644, 6
      %v690 = vpop.permute.xlu0 %689
      %691 = vrot.lane.b32.xlu0 %v647, 6
      %v692 = vpop.permute.xlu0 %691
      %693 = vrot.lane.b32.xlu0 %v650, 6
      %v694 = vpop.permute.xlu0 %693
      %695 = vrot.lane.b32.xlu0 %v653, 6
      %v696 = vpop.permute.xlu0 %695
      %697 = vrot.lane.b32.xlu0 %v656, 6
      %v698 = vpop.permute.xlu0 %697
      %699 = vrot.lane.b32.xlu0 %v659, 6
      %v700 = vpop.permute.xlu0 %699
      %701 = vrot.lane.b32.xlu0 %v662, 6
      %v702 = vpop.permute.xlu0 %701
      %703 = vrot.lane.b32.xlu0 %v665, 6
      %v704 = vpop.permute.xlu0 %703
      %705 = vrot.lane.b32.xlu0 %v668, 6
      %v706 = vpop.permute.xlu0 %705
      %707 = vrot.lane.b32.xlu0 %v671, 6
      %v708 = vpop.permute.xlu0 %707
      %709 = vrot.lane.b32.xlu0 %v674, 6
      %v710 = vpop.permute.xlu0 %709
      %711 = vrot.lane.b32.xlu0 %v677, 6
      %v712 = vpop.permute.xlu0 %711
      %713 = vrot.lane.b32.xlu0 %v680, 6
      %v714 = vpop.permute.xlu0 %713
      %715 = vrot.lane.b32.xlu0 %v683, 6
      %v716 = vpop.permute.xlu0 %715
      %717 = vrot.lane.b32.xlu0 %v686, 6
      %v718 = vpop.permute.xlu0 %717
      %v721 = vunpack.c.l.b16 %v279
      %v722 = vunpack.c.l.b16 %v280
      %v723 = vpack.c.b16 %v722, %v721
      %724 = vrot.lane.b32.xlu0 %v350, 9
      %v725 = vpop.permute.xlu0 %724
      %726 = vrot.lane.b32.xlu0 %v351, 9
      %v727 = vpop.permute.xlu0 %726
      %728 = vrot.lane.b32.xlu0 %v352, 9
      %v729 = vpop.permute.xlu0 %728
      %730 = vrot.lane.b32.xlu0 %v353, 9
      %v731 = vpop.permute.xlu0 %730
      %732 = vrot.lane.b32.xlu0 %v354, 9
      %v733 = vpop.permute.xlu0 %732
      %734 = vrot.lane.b32.xlu0 %v355, 9
      %v735 = vpop.permute.xlu0 %734
      %736 = vrot.lane.b32.xlu0 %v356, 9
      %v737 = vpop.permute.xlu0 %736
      %738 = vrot.lane.b32.xlu0 %v357, 9
      %v739 = vpop.permute.xlu0 %738
      %740 = vrot.lane.b32.xlu0 %v358, 9
      %v741 = vpop.permute.xlu0 %740
      %742 = vrot.lane.b32.xlu0 %v359, 9
      %v743 = vpop.permute.xlu0 %742
      %744 = vrot.lane.b32.xlu0 %v360, 9
      %v745 = vpop.permute.xlu0 %744
      %746 = vrot.lane.b32.xlu0 %v361, 9
      %v747 = vpop.permute.xlu0 %746
      %748 = vrot.lane.b32.xlu0 %v362, 9
      %v749 = vpop.permute.xlu0 %748
      %750 = vrot.lane.b32.xlu0 %v363, 9
      %v751 = vpop.permute.xlu0 %750
      %752 = vrot.lane.b32.xlu0 %v364, 9
      %v753 = vpop.permute.xlu0 %752
      %754 = vrot.lane.b32.xlu0 %v723, 9
      %v755 = vpop.permute.xlu0 %754
      %v757 = vunpack.c.l.b16 %v281
      %v758 = vpack.c.b16 %v757, %v757
      %v760 = vshrl.u32 %v723, 16
      %v762 = vshll.u32 %v723, 16
      %v764 = vrot.slane %v762, 1
      %v765 = vor.u32 %v760, %v764
      %v767 = vshll.u32 %v758, 16
      %v769 = vrot.slane %v767, 1
      %v770 = vsel %vm413, %v765, %v769
      %771 = vrot.lane.b32.xlu0 %v437, 12
      %v772 = vpop.permute.xlu0 %771
      %773 = vrot.lane.b32.xlu0 %v449, 12
      %v774 = vpop.permute.xlu0 %773
      %775 = vrot.lane.b32.xlu0 %v461, 12
      %v776 = vpop.permute.xlu0 %775
      %777 = vrot.lane.b32.xlu0 %v473, 12
      %v778 = vpop.permute.xlu0 %777
      %779 = vrot.lane.b32.xlu0 %v485, 12
      %v780 = vpop.permute.xlu0 %779
      %781 = vrot.lane.b32.xlu0 %v497, 12
      %v782 = vpop.permute.xlu0 %781
      %783 = vrot.lane.b32.xlu0 %v509, 12
      %v784 = vpop.permute.xlu0 %783
      %785 = vrot.lane.b32.xlu0 %v521, 12
      %v786 = vpop.permute.xlu0 %785
      %787 = vrot.lane.b32.xlu0 %v533, 12
      %v788 = vpop.permute.xlu0 %787
      %789 = vrot.lane.b32.xlu0 %v545, 12
      %v790 = vpop.permute.xlu0 %789
      %791 = vrot.lane.b32.xlu0 %v557, 12
      %v792 = vpop.permute.xlu0 %791
      %793 = vrot.lane.b32.xlu0 %v569, 12
      %v794 = vpop.permute.xlu0 %793
      %795 = vrot.lane.b32.xlu0 %v581, 12
      %v796 = vpop.permute.xlu0 %795
      %797 = vrot.lane.b32.xlu0 %v593, 12
      %v798 = vpop.permute.xlu0 %797
      %799 = vrot.lane.b32.xlu0 %v605, 12
      %v800 = vpop.permute.xlu0 %799
      %801 = vrot.lane.b32.xlu0 %v770, 12
      %v802 = vpop.permute.xlu0 %801
      %v803 = vrot.slane %v723, 1
      %v804 = vrot.slane %v758, 1
      %v805 = vsel %vm638, %v803, %v804
      %806 = vrot.lane.b32.xlu0 %v644, 15
      %v807 = vpop.permute.xlu0 %806
      %808 = vrot.lane.b32.xlu0 %v647, 15
      %v809 = vpop.permute.xlu0 %808
      %810 = vrot.lane.b32.xlu0 %v650, 15
      %v811 = vpop.permute.xlu0 %810
      %812 = vrot.lane.b32.xlu0 %v653, 15
      %v813 = vpop.permute.xlu0 %812
      %814 = vrot.lane.b32.xlu0 %v656, 15
      %v815 = vpop.permute.xlu0 %814
      %816 = vrot.lane.b32.xlu0 %v659, 15
      %v817 = vpop.permute.xlu0 %816
      %818 = vrot.lane.b32.xlu0 %v662, 15
      %v819 = vpop.permute.xlu0 %818
      %820 = vrot.lane.b32.xlu0 %v665, 15
      %v821 = vpop.permute.xlu0 %820
      %822 = vrot.lane.b32.xlu0 %v668, 15
      %v823 = vpop.permute.xlu0 %822
      %824 = vrot.lane.b32.xlu0 %v671, 15
      %v825 = vpop.permute.xlu0 %824
      %826 = vrot.lane.b32.xlu0 %v674, 15
      %v827 = vpop.permute.xlu0 %826
      %828 = vrot.lane.b32.xlu0 %v677, 15
      %v829 = vpop.permute.xlu0 %828
      %830 = vrot.lane.b32.xlu0 %v680, 15
      %v831 = vpop.permute.xlu0 %830
      %832 = vrot.lane.b32.xlu0 %v683, 15
      %v833 = vpop.permute.xlu0 %832
      %834 = vrot.lane.b32.xlu0 %v686, 15
      %v835 = vpop.permute.xlu0 %834
      %836 = vrot.lane.b32.xlu0 %v805, 15
      %v837 = vpop.permute.xlu0 %836
      %v840 = vunpack.c.l.b16 %v282
      %v841 = vunpack.c.l.b16 %v283
      %v842 = vpack.c.b16 %v841, %v840
      %843 = vrot.lane.b32.xlu0 %v351, 18
      %v844 = vpop.permute.xlu0 %843
      %845 = vrot.lane.b32.xlu0 %v352, 18
      %v846 = vpop.permute.xlu0 %845
      %847 = vrot.lane.b32.xlu0 %v353, 18
      %v848 = vpop.permute.xlu0 %847
      %849 = vrot.lane.b32.xlu0 %v354, 18
      %v850 = vpop.permute.xlu0 %849
      %851 = vrot.lane.b32.xlu0 %v355, 18
      %v852 = vpop.permute.xlu0 %851
      %853 = vrot.lane.b32.xlu0 %v356, 18
      %v854 = vpop.permute.xlu0 %853
      %855 = vrot.lane.b32.xlu0 %v357, 18
      %v856 = vpop.permute.xlu0 %855
      %857 = vrot.lane.b32.xlu0 %v358, 18
      %v858 = vpop.permute.xlu0 %857
      %859 = vrot.lane.b32.xlu0 %v359, 18
      %v860 = vpop.permute.xlu0 %859
      %861 = vrot.lane.b32.xlu0 %v360, 18
      %v862 = vpop.permute.xlu0 %861
      %863 = vrot.lane.b32.xlu0 %v361, 18
      %v864 = vpop.permute.xlu0 %863
      %865 = vrot.lane.b32.xlu0 %v362, 18
      %v866 = vpop.permute.xlu0 %865
      %867 = vrot.lane.b32.xlu0 %v363, 18
      %v868 = vpop.permute.xlu0 %867
      %869 = vrot.lane.b32.xlu0 %v364, 18
      %v870 = vpop.permute.xlu0 %869
      %871 = vrot.lane.b32.xlu0 %v723, 18
      %v872 = vpop.permute.xlu0 %871
      %873 = vrot.lane.b32.xlu0 %v842, 18
      %v874 = vpop.permute.xlu0 %873
      %v876 = vunpack.c.l.b16 %v284
      %v877 = vpack.c.b16 %v876, %v876
      %v879 = vshrl.u32 %v842, 16
      %v881 = vshll.u32 %v842, 16
      %v883 = vrot.slane %v881, 1
      %v884 = vor.u32 %v879, %v883
      %v886 = vshll.u32 %v877, 16
      %v888 = vrot.slane %v886, 1
      %v889 = vsel %vm413, %v884, %v888
      %890 = vrot.lane.b32.xlu0 %v449, 21
      %v891 = vpop.permute.xlu0 %890
      %892 = vrot.lane.b32.xlu0 %v461, 21
      %v893 = vpop.permute.xlu0 %892
      %894 = vrot.lane.b32.xlu0 %v473, 21
      %v895 = vpop.permute.xlu0 %894
      %896 = vrot.lane.b32.xlu0 %v485, 21
      %v897 = vpop.permute.xlu0 %896
      %898 = vrot.lane.b32.xlu0 %v497, 21
      %v899 = vpop.permute.xlu0 %898
      %900 = vrot.lane.b32.xlu0 %v509, 21
      %v901 = vpop.permute.xlu0 %900
      %902 = vrot.lane.b32.xlu0 %v521, 21
      %v903 = vpop.permute.xlu0 %902
      %904 = vrot.lane.b32.xlu0 %v533, 21
      %v905 = vpop.permute.xlu0 %904
      %906 = vrot.lane.b32.xlu0 %v545, 21
      %v907 = vpop.permute.xlu0 %906
      %908 = vrot.lane.b32.xlu0 %v557, 21
      %v909 = vpop.permute.xlu0 %908
      %910 = vrot.lane.b32.xlu0 %v569, 21
      %v911 = vpop.permute.xlu0 %910
      %912 = vrot.lane.b32.xlu0 %v581, 21
      %v913 = vpop.permute.xlu0 %912
      %914 = vrot.lane.b32.xlu0 %v593, 21
      %v915 = vpop.permute.xlu0 %914
      %916 = vrot.lane.b32.xlu0 %v605, 21
      %v917 = vpop.permute.xlu0 %916
      %918 = vrot.lane.b32.xlu0 %v770, 21
      %v919 = vpop.permute.xlu0 %918
      %920 = vrot.lane.b32.xlu0 %v889, 21
      %v921 = vpop.permute.xlu0 %920
      %v922 = vrot.slane %v842, 1
      %v923 = vrot.slane %v877, 1
      %v924 = vsel %vm638, %v922, %v923
      %925 = vrot.lane.b32.xlu0 %v647, 24
      %v926 = vpop.permute.xlu0 %925
      %927 = vrot.lane.b32.xlu0 %v650, 24
      %v928 = vpop.permute.xlu0 %927
      %929 = vrot.lane.b32.xlu0 %v653, 24
      %v930 = vpop.permute.xlu0 %929
      %931 = vrot.lane.b32.xlu0 %v656, 24
      %v932 = vpop.permute.xlu0 %931
      %933 = vrot.lane.b32.xlu0 %v659, 24
      %v934 = vpop.permute.xlu0 %933
      %935 = vrot.lane.b32.xlu0 %v662, 24
      %v936 = vpop.permute.xlu0 %935
      %937 = vrot.lane.b32.xlu0 %v665, 24
      %v938 = vpop.permute.xlu0 %937
      %939 = vrot.lane.b32.xlu0 %v668, 24
      %v940 = vpop.permute.xlu0 %939
      %941 = vrot.lane.b32.xlu0 %v671, 24
      %v942 = vpop.permute.xlu0 %941
      %943 = vrot.lane.b32.xlu0 %v674, 24
      %v944 = vpop.permute.xlu0 %943
      %945 = vrot.lane.b32.xlu0 %v677, 24
      %v946 = vpop.permute.xlu0 %945
      %947 = vrot.lane.b32.xlu0 %v680, 24
      %v948 = vpop.permute.xlu0 %947
      %949 = vrot.lane.b32.xlu0 %v683, 24
      %v950 = vpop.permute.xlu0 %949
      %951 = vrot.lane.b32.xlu0 %v686, 24
      %v952 = vpop.permute.xlu0 %951
      %953 = vrot.lane.b32.xlu0 %v805, 24
      %v954 = vpop.permute.xlu0 %953
      %955 = vrot.lane.b32.xlu0 %v924, 24
      %v956 = vpop.permute.xlu0 %955
      %vm957 = vcmask 23552
      %v959 = vsel %vm957, %v349, %v607
      %v961 = vsel %vm957, %v350, %v609
      %v963 = vsel %vm957, %v351, %v611
      %v965 = vsel %vm957, %v352, %v613
      %v967 = vsel %vm957, %v353, %v615
      %v969 = vsel %vm957, %v354, %v617
      %v971 = vsel %vm957, %v355, %v619
      %v973 = vsel %vm957, %v356, %v621
      %v975 = vsel %vm957, %v357, %v623
      %v977 = vsel %vm957, %v358, %v625
      %v979 = vsel %vm957, %v359, %v627
      %v981 = vsel %vm957, %v360, %v629
      %v983 = vsel %vm957, %v361, %v631
      %v985 = vsel %vm957, %v362, %v633
      %v987 = vsel %vm957, %v363, %v635
      %v989 = vsel %vm957, %v364, %v637
      %vm990 = vcmask 48128
      %v992 = vsel %vm990, %v959, %v688
      %v994 = vsel %vm990, %v961, %v690
      %v996 = vsel %vm990, %v963, %v692
      %v998 = vsel %vm990, %v965, %v694
      %v1000 = vsel %vm990, %v967, %v696
      %v1002 = vsel %vm990, %v969, %v698
      %v1004 = vsel %vm990, %v971, %v700
      %v1006 = vsel %vm990, %v973, %v702
      %v1008 = vsel %vm990, %v975, %v704
      %v1010 = vsel %vm990, %v977, %v706
      %v1012 = vsel %vm990, %v979, %v708
      %v1014 = vsel %vm990, %v981, %v710
      %v1016 = vsel %vm990, %v983, %v712
      %v1018 = vsel %vm990, %v985, %v714
      %v1020 = vsel %vm990, %v987, %v716
      %v1022 = vsel %vm990, %v989, %v718
      %vm1023 = vcmask 72704
      %v1025 = vsel %vm1023, %v992, %v725
      %v1027 = vsel %vm1023, %v994, %v727
      %v1029 = vsel %vm1023, %v996, %v729
      %v1031 = vsel %vm1023, %v998, %v731
      %v1033 = vsel %vm1023, %v1000, %v733
      %v1035 = vsel %vm1023, %v1002, %v735
      %v1037 = vsel %vm1023, %v1004, %v737
      %v1039 = vsel %vm1023, %v1006, %v739
      %v1041 = vsel %vm1023, %v1008, %v741
      %v1043 = vsel %vm1023, %v1010, %v743
      %v1045 = vsel %vm1023, %v1012, %v745
      %v1047 = vsel %vm1023, %v1014, %v747
      %v1049 = vsel %vm1023, %v1016, %v749
      %v1051 = vsel %vm1023, %v1018, %v751
      %v1053 = vsel %vm1023, %v1020, %v753
      %v1055 = vsel %vm1023, %v1022, %v755
      %vm1056 = vcmask 97280
      %v1058 = vsel %vm1056, %v1025, %v772
      %v1060 = vsel %vm1056, %v1027, %v774
      %v1062 = vsel %vm1056, %v1029, %v776
      %v1064 = vsel %vm1056, %v1031, %v778
      %v1066 = vsel %vm1056, %v1033, %v780
      %v1068 = vsel %vm1056, %v1035, %v782
      %v1070 = vsel %vm1056, %v1037, %v784
      %v1072 = vsel %vm1056, %v1039, %v786
      %v1074 = vsel %vm1056, %v1041, %v788
      %v1076 = vsel %vm1056, %v1043, %v790
      %v1078 = vsel %vm1056, %v1045, %v792
      %v1080 = vsel %vm1056, %v1047, %v794
      %v1082 = vsel %vm1056, %v1049, %v796
      %v1084 = vsel %vm1056, %v1051, %v798
      %v1086 = vsel %vm1056, %v1053, %v800
      %v1088 = vsel %vm1056, %v1055, %v802
      %vm1089 = vcmask 121856
      %v1091 = vsel %vm1089, %v1058, %v807
      %v1093 = vsel %vm1089, %v1060, %v809
      %v1095 = vsel %vm1089, %v1062, %v811
      %v1097 = vsel %vm1089, %v1064, %v813
      %v1099 = vsel %vm1089, %v1066, %v815
      %v1101 = vsel %vm1089, %v1068, %v817
      %v1103 = vsel %vm1089, %v1070, %v819
      %v1105 = vsel %vm1089, %v1072, %v821
      %v1107 = vsel %vm1089, %v1074, %v823
      %v1109 = vsel %vm1089, %v1076, %v825
      %v1111 = vsel %vm1089, %v1078, %v827
      %v1113 = vsel %vm1089, %v1080, %v829
      %v1115 = vsel %vm1089, %v1082, %v831
      %v1117 = vsel %vm1089, %v1084, %v833
      %v1119 = vsel %vm1089, %v1086, %v835
      %v1121 = vsel %vm1089, %v1088, %v837
      %vm1122 = vcmask 146432
      %v1124 = vsel %vm1122, %v1091, %v844
      %v1126 = vsel %vm1122, %v1093, %v846
      %v1128 = vsel %vm1122, %v1095, %v848
      %v1130 = vsel %vm1122, %v1097, %v850
      %v1132 = vsel %vm1122, %v1099, %v852
      %v1134 = vsel %vm1122, %v1101, %v854
      %v1136 = vsel %vm1122, %v1103, %v856
      %v1138 = vsel %vm1122, %v1105, %v858
      %v1140 = vsel %vm1122, %v1107, %v860
      %v1142 = vsel %vm1122, %v1109, %v862
      %v1144 = vsel %vm1122, %v1111, %v864
      %v1146 = vsel %vm1122, %v1113, %v866
      %v1148 = vsel %vm1122, %v1115, %v868
      %v1150 = vsel %vm1122, %v1117, %v870
      %v1152 = vsel %vm1122, %v1119, %v872
      %v1154 = vsel %vm1122, %v1121, %v874
      %vm1155 = vcmask 171008
      %v1157 = vsel %vm1155, %v1124, %v891
      %v1159 = vsel %vm1155, %v1126, %v893
      %v1161 = vsel %vm1155, %v1128, %v895
      %v1163 = vsel %vm1155, %v1130, %v897
      %v1165 = vsel %vm1155, %v1132, %v899
      %v1167 = vsel %vm1155, %v1134, %v901
      %v1169 = vsel %vm1155, %v1136, %v903
      %v1171 = vsel %vm1155, %v1138, %v905
      %v1173 = vsel %vm1155, %v1140, %v907
      %v1175 = vsel %vm1155, %v1142, %v909
      %v1177 = vsel %vm1155, %v1144, %v911
      %v1179 = vsel %vm1155, %v1146, %v913
      %v1181 = vsel %vm1155, %v1148, %v915
      %v1183 = vsel %vm1155, %v1150, %v917
      %v1185 = vsel %vm1155, %v1152, %v919
      %v1187 = vsel %vm1155, %v1154, %v921
      %vm1188 = vcmask 195584
      %v1190 = vsel %vm1188, %v1157, %v926
      %v1192 = vsel %vm1188, %v1159, %v928
      %v1194 = vsel %vm1188, %v1161, %v930
      %v1196 = vsel %vm1188, %v1163, %v932
      %v1198 = vsel %vm1188, %v1165, %v934
      %v1200 = vsel %vm1188, %v1167, %v936
      %v1202 = vsel %vm1188, %v1169, %v938
      %v1204 = vsel %vm1188, %v1171, %v940
      %v1206 = vsel %vm1188, %v1173, %v942
      %v1208 = vsel %vm1188, %v1175, %v944
      %v1210 = vsel %vm1188, %v1177, %v946
      %v1212 = vsel %vm1188, %v1179, %v948
      %v1214 = vsel %vm1188, %v1181, %v950
      %v1216 = vsel %vm1188, %v1183, %v952
      %v1218 = vsel %vm1188, %v1185, %v954
      %v1220 = vsel %vm1188, %v1187, %v956
      %v1222 = vperm.slane %v230, 0
      %v1228 = vunpack.c.l.b16 %v226
      %v1229 = vunpack.c.l.b16 %v227
      %v1230 = vunpack.c.l.b16 %v228
      %v1231 = vunpack.c.l.b16 %v229
      %v1232 = vpack.c.b16 %v1229, %v1228
      %v1233 = vpack.c.b16 %v1231, %v1230
      %vm1235 = vcmask 220160
      %v1236 = vsel %vm1235, %v1190, 0
      %v1238 = vsel %vm1235, %v1192, 0
      %v1240 = vsel %vm1235, %v1194, 0
      %v1242 = vsel %vm1235, %v1196, 0
      %v1244 = vsel %vm1235, %v1198, 0
      %v1246 = vsel %vm1235, %v1200, 0
      %v1248 = vsel %vm1235, %v1202, 0
      %v1250 = vsel %vm1235, %v1204, 0
      %v1252 = vsel %vm1235, %v1206, 0
      %v1254 = vsel %vm1235, %v1208, 0
      %v1256 = vsel %vm1235, %v1210, 0
      %v1258 = vsel %vm1235, %v1212, 0
      %v1260 = vsel %vm1235, %v1214, 0
      %v1262 = vsel %vm1235, %v1216, 0
      %v1264 = vsel %vm1235, %v1218, 0
      %v1266 = vsel %vm1235, %v1220, 0
      %vm1268 = vcmask 1044480
      %vm1269 = vcmask 1045504
      %v1270 = vsel %vm1268, 4294967295, 65535
      %v1271 = vsel %vm1269, %v1270, 0
      %v1273 = vand.u32 %v1233, %v1271
      %1275 = vmatpush.bf16.msra.mxu0 0
      %1276 = vmatpush.bf16.msra.mxu0 0
      %1277 = vmatpush.bf16.msra.mxu0 0
      %1278 = vmatpush.bf16.msra.mxu0 0
      %1279 = vmatpush.bf16.msra.mxu0 0
      %1280 = vmatpush.bf16.msra.mxu0 0
      %1281 = vmatpush.bf16.msra.mxu0 %v1273
      %1282 = vmatpush.bf16.msra.mxu0 %v1232
      %1283 = vmatmul.bf16.gmra.mxu0 %v1236
      %v1284 = vpop.f32.mrf.mxu0
      %v1285 = vadd.f32 %v1222, %v1284
      %v1286 = vpop.f32.mrf.mxu0
      %v1287 = vadd.f32 %v1222, %v1286
      %1288 = vmatmul.bf16.gmra.mxu0 %v1238
      %v1289 = vpop.f32.mrf.mxu0
      %v1290 = vadd.f32 %v1222, %v1289
      %v1291 = vpop.f32.mrf.mxu0
      %v1292 = vadd.f32 %v1222, %v1291
      %1293 = vmatmul.bf16.gmra.mxu0 %v1240
      %v1294 = vpop.f32.mrf.mxu0
      %v1295 = vadd.f32 %v1222, %v1294
      %v1296 = vpop.f32.mrf.mxu0
      %v1297 = vadd.f32 %v1222, %v1296
      %1298 = vmatmul.bf16.gmra.mxu0 %v1242
      %v1299 = vpop.f32.mrf.mxu0
      %v1300 = vadd.f32 %v1222, %v1299
      %v1301 = vpop.f32.mrf.mxu0
      %v1302 = vadd.f32 %v1222, %v1301
      %1303 = vmatmul.bf16.gmra.mxu0 %v1244
      %v1304 = vpop.f32.mrf.mxu0
      %v1305 = vadd.f32 %v1222, %v1304
      %v1306 = vpop.f32.mrf.mxu0
      %v1307 = vadd.f32 %v1222, %v1306
      %1308 = vmatmul.bf16.gmra.mxu0 %v1246
      %v1309 = vpop.f32.mrf.mxu0
      %v1310 = vadd.f32 %v1222, %v1309
      %v1311 = vpop.f32.mrf.mxu0
      %v1312 = vadd.f32 %v1222, %v1311
      %1313 = vmatmul.bf16.gmra.mxu0 %v1248
      %v1314 = vpop.f32.mrf.mxu0
      %v1315 = vadd.f32 %v1222, %v1314
      %v1316 = vpop.f32.mrf.mxu0
      %v1317 = vadd.f32 %v1222, %v1316
      %1318 = vmatmul.bf16.gmra.mxu0 %v1250
      %v1319 = vpop.f32.mrf.mxu0
      %v1320 = vadd.f32 %v1222, %v1319
      %v1321 = vpop.f32.mrf.mxu0
      %v1322 = vadd.f32 %v1222, %v1321
      %1323 = vmatmul.bf16.gmra.mxu0 %v1252
      %v1324 = vpop.f32.mrf.mxu0
      %v1325 = vadd.f32 %v1222, %v1324
      %v1326 = vpop.f32.mrf.mxu0
      %v1327 = vadd.f32 %v1222, %v1326
      %1328 = vmatmul.bf16.gmra.mxu0 %v1254
      %v1329 = vpop.f32.mrf.mxu0
      %v1330 = vadd.f32 %v1222, %v1329
      %v1331 = vpop.f32.mrf.mxu0
      %v1332 = vadd.f32 %v1222, %v1331
      %1333 = vmatmul.bf16.gmra.mxu0 %v1256
      %v1334 = vpop.f32.mrf.mxu0
      %v1335 = vadd.f32 %v1222, %v1334
      %v1336 = vpop.f32.mrf.mxu0
      %v1337 = vadd.f32 %v1222, %v1336
      %1338 = vmatmul.bf16.gmra.mxu0 %v1258
      %v1339 = vpop.f32.mrf.mxu0
      %v1340 = vadd.f32 %v1222, %v1339
      %v1341 = vpop.f32.mrf.mxu0
      %v1342 = vadd.f32 %v1222, %v1341
      %1343 = vmatmul.bf16.gmra.mxu0 %v1260
      %v1344 = vpop.f32.mrf.mxu0
      %v1345 = vadd.f32 %v1222, %v1344
      %v1346 = vpop.f32.mrf.mxu0
      %v1347 = vadd.f32 %v1222, %v1346
      %1348 = vmatmul.bf16.gmra.mxu0 %v1262
      %v1349 = vpop.f32.mrf.mxu0
      %v1350 = vadd.f32 %v1222, %v1349
      %v1351 = vpop.f32.mrf.mxu0
      %v1352 = vadd.f32 %v1222, %v1351
      %1353 = vmatmul.bf16.gmra.mxu0 %v1264
      %v1354 = vpop.f32.mrf.mxu0
      %v1355 = vadd.f32 %v1222, %v1354
      %v1356 = vpop.f32.mrf.mxu0
      %v1357 = vadd.f32 %v1222, %v1356
      %1358 = vmatmul.bf16.gmra.mxu0 %v1266
      %v1359 = vpop.f32.mrf.mxu0
      %v1360 = vadd.f32 %v1222, %v1359
      %v1361 = vpop.f32.mrf.mxu0
      %v1362 = vadd.f32 %v1222, %v1361
      %1363 = vdwg.mxu0
      %vm1364 = vcmp.gt.f32.partialorder %v1285, 0.0
      %vm1365 = vcmp.gt.f32.partialorder %v1287, 0.0
      %vm1366 = vcmp.gt.f32.partialorder %v1290, 0.0
      %vm1367 = vcmp.gt.f32.partialorder %v1292, 0.0
      %vm1368 = vcmp.gt.f32.partialorder %v1295, 0.0
      %vm1369 = vcmp.gt.f32.partialorder %v1297, 0.0
      %vm1370 = vcmp.gt.f32.partialorder %v1300, 0.0
      %vm1371 = vcmp.gt.f32.partialorder %v1302, 0.0
      %vm1372 = vcmp.gt.f32.partialorder %v1305, 0.0
      %vm1373 = vcmp.gt.f32.partialorder %v1307, 0.0
      %vm1374 = vcmp.gt.f32.partialorder %v1310, 0.0
      %vm1375 = vcmp.gt.f32.partialorder %v1312, 0.0
      %vm1376 = vcmp.gt.f32.partialorder %v1315, 0.0
      %vm1377 = vcmp.gt.f32.partialorder %v1317, 0.0
      %vm1378 = vcmp.gt.f32.partialorder %v1320, 0.0
      %vm1379 = vcmp.gt.f32.partialorder %v1322, 0.0
      %vm1380 = vcmp.gt.f32.partialorder %v1325, 0.0
      %vm1381 = vcmp.gt.f32.partialorder %v1327, 0.0
      %vm1382 = vcmp.gt.f32.partialorder %v1330, 0.0
      %vm1383 = vcmp.gt.f32.partialorder %v1332, 0.0
      %vm1384 = vcmp.gt.f32.partialorder %v1335, 0.0
      %vm1385 = vcmp.gt.f32.partialorder %v1337, 0.0
      %vm1386 = vcmp.gt.f32.partialorder %v1340, 0.0
      %vm1387 = vcmp.gt.f32.partialorder %v1342, 0.0
      %vm1388 = vcmp.gt.f32.partialorder %v1345, 0.0
      %vm1389 = vcmp.gt.f32.partialorder %v1347, 0.0
      %vm1390 = vcmp.gt.f32.partialorder %v1350, 0.0
      %vm1391 = vcmp.gt.f32.partialorder %v1352, 0.0
      %vm1392 = vcmp.gt.f32.partialorder %v1355, 0.0
      %vm1393 = vcmp.gt.f32.partialorder %v1357, 0.0
      %vm1394 = vcmp.gt.f32.partialorder %v1360, 0.0
      %vm1395 = vcmp.gt.f32.partialorder %v1362, 0.0
      %v1396 = vmul.f32 %v1285, 0.1
      %v1397 = vmul.f32 %v1287, 0.1
      %v1398 = vmul.f32 %v1290, 0.1
      %v1399 = vmul.f32 %v1292, 0.1
      %v1400 = vmul.f32 %v1295, 0.1
      %v1401 = vmul.f32 %v1297, 0.1
      %v1402 = vmul.f32 %v1300, 0.1
      %v1403 = vmul.f32 %v1302, 0.1
      %v1404 = vmul.f32 %v1305, 0.1
      %v1405 = vmul.f32 %v1307, 0.1
      %v1406 = vmul.f32 %v1310, 0.1
      %v1407 = vmul.f32 %v1312, 0.1
      %v1408 = vmul.f32 %v1315, 0.1
      %v1409 = vmul.f32 %v1317, 0.1
      %v1410 = vmul.f32 %v1320, 0.1
      %v1411 = vmul.f32 %v1322, 0.1
      %v1412 = vmul.f32 %v1325, 0.1
      %v1413 = vmul.f32 %v1327, 0.1
      %v1414 = vmul.f32 %v1330, 0.1
      %v1415 = vmul.f32 %v1332, 0.1
      %v1416 = vmul.f32 %v1335, 0.1
      %v1417 = vmul.f32 %v1337, 0.1
      %v1418 = vmul.f32 %v1340, 0.1
      %v1419 = vmul.f32 %v1342, 0.1
      %v1420 = vmul.f32 %v1345, 0.1
      %v1421 = vmul.f32 %v1347, 0.1
      %v1422 = vmul.f32 %v1350, 0.1
      %v1423 = vmul.f32 %v1352, 0.1
      %v1424 = vmul.f32 %v1355, 0.1
      %v1425 = vmul.f32 %v1357, 0.1
      %v1426 = vmul.f32 %v1360, 0.1
      %v1427 = vmul.f32 %v1362, 0.1
      %v1428 = vsel %vm1364, %v1285, %v1396
      %v1429 = vsel %vm1365, %v1287, %v1397
      %v1430 = vsel %vm1366, %v1290, %v1398
      %v1431 = vsel %vm1367, %v1292, %v1399
      %v1432 = vsel %vm1368, %v1295, %v1400
      %v1433 = vsel %vm1369, %v1297, %v1401
      %v1434 = vsel %vm1370, %v1300, %v1402
      %v1435 = vsel %vm1371, %v1302, %v1403
      %v1436 = vsel %vm1372, %v1305, %v1404
      %v1437 = vsel %vm1373, %v1307, %v1405
      %v1438 = vsel %vm1374, %v1310, %v1406
      %v1439 = vsel %vm1375, %v1312, %v1407
      %v1440 = vsel %vm1376, %v1315, %v1408
      %v1441 = vsel %vm1377, %v1317, %v1409
      %v1442 = vsel %vm1378, %v1320, %v1410
      %v1443 = vsel %vm1379, %v1322, %v1411
      %v1444 = vsel %vm1380, %v1325, %v1412
      %v1445 = vsel %vm1381, %v1327, %v1413
      %v1446 = vsel %vm1382, %v1330, %v1414
      %v1447 = vsel %vm1383, %v1332, %v1415
      %v1448 = vsel %vm1384, %v1335, %v1416
      %v1449 = vsel %vm1385, %v1337, %v1417
      %v1450 = vsel %vm1386, %v1340, %v1418
      %v1451 = vsel %vm1387, %v1342, %v1419
      %v1452 = vsel %vm1388, %v1345, %v1420
      %v1453 = vsel %vm1389, %v1347, %v1421
      %v1454 = vsel %vm1390, %v1350, %v1422
      %v1455 = vsel %vm1391, %v1352, %v1423
      %v1456 = vsel %vm1392, %v1355, %v1424
      %v1457 = vsel %vm1393, %v1357, %v1425
      %v1458 = vsel %vm1394, %v1360, %v1426
      %v1459 = vsel %vm1395, %v1362, %v1427
      %vm1460 = vcmask 261120
      %1461 = vst.msk [vmem:[%s170] sm:$0xff] %vm1460, 0.0
      %1462 = vst.msk [vmem:[%s170 + $0x8] sm:$0xff] %vm1460, 0.0
      %vm1463 = vcmask 254976
      %1464 = vst.msk [vmem:[%s170 + $0x10] sm:$0x3] %vm1463, 0.0
      %1465 = vst.msk [vmem:[%s170 + $0x18] sm:$0xff] %vm1460, 0.0
      %1466 = vst.msk [vmem:[%s170 + $0x20] sm:$0xff] %vm1460, 0.0
      %1467 = vst.msk [vmem:[%s170 + $0x28] sm:$0x3] %vm1463, 0.0
      %1468 = vst.msk [vmem:[%s170 + $0x30] sm:$0xff] %vm1460, 0.0
      %1469 = vst.msk [vmem:[%s170 + $0x38] sm:$0xff] %vm1460, 0.0
      %1470 = vst.msk [vmem:[%s170 + $0x40] sm:$0x3] %vm1463, 0.0
      %1471 = vst.msk [vmem:[%s170 + $0x48] sm:$0xff] %vm1460, 0.0
      %1472 = vst.msk [vmem:[%s170 + $0x50] sm:$0xff] %vm1460, 0.0
      %1473 = vst.msk [vmem:[%s170 + $0x58] sm:$0x3] %vm1463, 0.0
      %1474 = vst.msk [vmem:[%s170 + $0x60] sm:$0xff] %vm1460, 0.0
      %1475 = vst.msk [vmem:[%s170 + $0x68] sm:$0xff] %vm1460, 0.0
      %1476 = vst.msk [vmem:[%s170 + $0x70] sm:$0x3] %vm1463, 0.0
      %1477 = vst.msk [vmem:[%s170 + $0x78] sm:$0xff] %vm1460, 0.0
      %1478 = vst.msk [vmem:[%s170 + $0x80] sm:$0xff] %vm1460, 0.0
      %1479 = vst.msk [vmem:[%s170 + $0x88] sm:$0x3] %vm1463, 0.0
      %1480 = vst.msk [vmem:[%s170 + $0x90] sm:$0xff] %vm1460, 0.0
      %1481 = vst.msk [vmem:[%s170 + $0x98] sm:$0xff] %vm1460, 0.0
      %1482 = vst.msk [vmem:[%s170 + $0xa0] sm:$0x3] %vm1463, 0.0
      %1483 = vst.msk [vmem:[%s170 + $0xa8] sm:$0xff] %vm1460, 0.0
      %1484 = vst.msk [vmem:[%s170 + $0xb0] sm:$0xff] %vm1460, 0.0
      %1485 = vst.msk [vmem:[%s170 + $0xb8] sm:$0x3] %vm1463, 0.0
      %1486 = vst.msk [vmem:[%s170 + $0xc0] sm:$0xff] %vm1460, 0.0
      %1487 = vst.msk [vmem:[%s170 + $0xc8] sm:$0xff] %vm1460, 0.0
      %1488 = vst.msk [vmem:[%s170 + $0xd0] sm:$0x3] %vm1463, 0.0
      %1489 = vst.msk [vmem:[%s170 + $0xd8] sm:$0xff] %vm1460, 0.0
      %1490 = vst.msk [vmem:[%s170 + $0xe0] sm:$0xff] %vm1460, 0.0
      %1491 = vst.msk [vmem:[%s170 + $0xe8] sm:$0x3] %vm1463, 0.0
      %1492 = vst.msk [vmem:[%s170 + $0xf0] sm:$0xff] %vm1460, 0.0
      %1493 = vst.msk [vmem:[%s170 + $0xf8] sm:$0xff] %vm1460, 0.0
      %1494 = vst.msk [vmem:[%s170 + $0x100] sm:$0x3] %vm1463, 0.0
      %1495 = vst.msk [vmem:[%s170 + $0x108] sm:$0xff] %vm1460, 0.0
      %1496 = vst.msk [vmem:[%s170 + $0x110] sm:$0xff] %vm1460, 0.0
      %1497 = vst.msk [vmem:[%s170 + $0x118] sm:$0x3] %vm1463, 0.0
      %1498 = vst.msk [vmem:[%s170 + $0x120] sm:$0xff] %vm1460, 0.0
      %1499 = vst.msk [vmem:[%s170 + $0x128] sm:$0xff] %vm1460, 0.0
      %1500 = vst.msk [vmem:[%s170 + $0x130] sm:$0x3] %vm1463, 0.0
      %1501 = vst.msk [vmem:[%s170 + $0x138] sm:$0xff] %vm1460, 0.0
      %1502 = vst.msk [vmem:[%s170 + $0x140] sm:$0xff] %vm1460, 0.0
      %1503 = vst.msk [vmem:[%s170 + $0x148] sm:$0x3] %vm1463, 0.0
      %1504 = vst.msk [vmem:[%s170 + $0x150] sm:$0xff] %vm1460, 0.0
      %1505 = vst.msk [vmem:[%s170 + $0x158] sm:$0xff] %vm1460, 0.0
      %1506 = vst.msk [vmem:[%s170 + $0x160] sm:$0x3] %vm1463, 0.0
      %1507 = vst.msk [vmem:[%s170 + $0x168] sm:$0xff] %vm1460, 0.0
      %1508 = vst.msk [vmem:[%s170 + $0x170] sm:$0xff] %vm1460, 0.0
      %1509 = vst.msk [vmem:[%s170 + $0x178] sm:$0x3] %vm1463, 0.0
      %1510 = vst.msk [vmem:[%s170 + $0x180] sm:$0xff] %vm1460, 0.0
      %1511 = vst.msk [vmem:[%s170 + $0x188] sm:$0xff] %vm1460, 0.0
      %1512 = vst.msk [vmem:[%s170 + $0x190] sm:$0x3] %vm1463, 0.0
      %1513 = vst.msk [vmem:[%s170 + $0x198] sm:$0xff] %vm1460, 0.0
      %1514 = vst.msk [vmem:[%s170 + $0x1a0] sm:$0xff] %vm1460, 0.0
      %1515 = vst.msk [vmem:[%s170 + $0x1a8] sm:$0x3] %vm1463, 0.0
      %s1516 = scalar_lea.vmem %s170, 24
      %1517 = vst.msk [vmem:[%s1516 + $0x1] sm:$0xff] %vm1460, %v1428
      %1518 = vst.msk [vmem:[%s1516 + $0x9] sm:$0xff] %vm1460, %v1429
      %1519 = vst.msk [vmem:[%s1516 + $0x19] sm:$0xff] %vm1460, %v1430
      %1520 = vst.msk [vmem:[%s1516 + $0x21] sm:$0xff] %vm1460, %v1431
      %1521 = vst.msk [vmem:[%s1516 + $0x31] sm:$0xff] %vm1460, %v1432
      %1522 = vst.msk [vmem:[%s1516 + $0x39] sm:$0xff] %vm1460, %v1433
      %1523 = vst.msk [vmem:[%s1516 + $0x49] sm:$0xff] %vm1460, %v1434
      %1524 = vst.msk [vmem:[%s1516 + $0x51] sm:$0xff] %vm1460, %v1435
      %1525 = vst.msk [vmem:[%s1516 + $0x61] sm:$0xff] %vm1460, %v1436
      %1526 = vst.msk [vmem:[%s1516 + $0x69] sm:$0xff] %vm1460, %v1437
      %1527 = vst.msk [vmem:[%s1516 + $0x79] sm:$0xff] %vm1460, %v1438
      %1528 = vst.msk [vmem:[%s1516 + $0x81] sm:$0xff] %vm1460, %v1439
      %1529 = vst.msk [vmem:[%s1516 + $0x91] sm:$0xff] %vm1460, %v1440
      %1530 = vst.msk [vmem:[%s1516 + $0x99] sm:$0xff] %vm1460, %v1441
      %1531 = vst.msk [vmem:[%s1516 + $0xa9] sm:$0xff] %vm1460, %v1442
      %1532 = vst.msk [vmem:[%s1516 + $0xb1] sm:$0xff] %vm1460, %v1443
      %1533 = vst.msk [vmem:[%s1516 + $0xc1] sm:$0xff] %vm1460, %v1444
      %1534 = vst.msk [vmem:[%s1516 + $0xc9] sm:$0xff] %vm1460, %v1445
      %1535 = vst.msk [vmem:[%s1516 + $0xd9] sm:$0xff] %vm1460, %v1446
      %1536 = vst.msk [vmem:[%s1516 + $0xe1] sm:$0xff] %vm1460, %v1447
      %1537 = vst.msk [vmem:[%s1516 + $0xf1] sm:$0xff] %vm1460, %v1448
      %1538 = vst.msk [vmem:[%s1516 + $0xf9] sm:$0xff] %vm1460, %v1449
      %1539 = vst.msk [vmem:[%s1516 + $0x109] sm:$0xff] %vm1460, %v1450
      %1540 = vst.msk [vmem:[%s1516 + $0x111] sm:$0xff] %vm1460, %v1451
      %1541 = vst.msk [vmem:[%s1516 + $0x121] sm:$0xff] %vm1460, %v1452
      %1542 = vst.msk [vmem:[%s1516 + $0x129] sm:$0xff] %vm1460, %v1453
      %1543 = vst.msk [vmem:[%s1516 + $0x139] sm:$0xff] %vm1460, %v1454
      %1544 = vst.msk [vmem:[%s1516 + $0x141] sm:$0xff] %vm1460, %v1455
      %1545 = vst.msk [vmem:[%s1516 + $0x151] sm:$0xff] %vm1460, %v1456
      %1546 = vst.msk [vmem:[%s1516 + $0x159] sm:$0xff] %vm1460, %v1457
      %1547 = vst.msk [vmem:[%s1516 + $0x169] sm:$0xff] %vm1460, %v1458
      %1548 = vst.msk [vmem:[%s1516 + $0x171] sm:$0xff] %vm1460, %v1459
      %p1549 = scmp.lt.s32.totalorder %s14, 1
      %s1550 = scalar_select %p1549, %s14, 1
      %s1551 = smul.addr %s1550, 54
      %s1552 = smul.addr %s1551, 8
      %s1553 = scalar_lea.vmem %s3, %s1552
      // Predicated region
      $region33: #{precoding_resnet_forward.4} parent=31 // pred_check
        %p1554 = pneg %p100
      $region34: #{precoding_resnet_forward.4} parent=31 // pred_check_branch
        %1556 = sbr.rel (%p1554) target = $region36
      $region35: #{precoding_resnet_forward.4} parent=31 // pred_region
        _
      $region36: #{precoding_resnet_forward.4} parent=31 // pred_fallthru
        _
    $region32: #{precoding_resnet_forward.4} parent=5 // pred_fallthru
      _
    %p1557 = scmp.le.s32.totalorder 2, %s9
    // Predicated region
    $region37: #{precoding_resnet_forward.4} parent=5 // pred_check
      %p1558 = pneg %p1557
    $region38: #{precoding_resnet_forward.4} parent=5 // pred_check_branch
      %1560 = sbr.rel (%p1558) target = $region40
    $region39: #{precoding_resnet_forward.4} parent=5 // pred_region
      %s1561 = ssub.s32 %s9, 2
      // Predicated region
      $region41: #{precoding_resnet_forward.4} parent=39 // pred_check
        %p1562 = pneg %p106
      $region42: #{precoding_resnet_forward.4} parent=39 // pred_check_branch
        %1564 = sbr.rel (%p1562) target = $region44
      $region43: #{precoding_resnet_forward.4} parent=39 // pred_region
        %p1565 = scmp.lt.s32.totalorder %s15, 1
        %s1566 = scalar_select %p1565, %s15, 1
        %s1567 = smul.addr %s1566, 54
        %s1568 = smul.addr %s1567, 8
        %s1569 = scalar_lea.vmem %s3, %s1568
      $region44: #{precoding_resnet_forward.4} parent=39 // pred_fallthru
        _
    $region40: #{precoding_resnet_forward.4} parent=5 // pred_fallthru
      _
  $region6: #{precoding_resnet_forward.4} parent=0 // loop_footer
    %s13 = sadd.s32 1, %s9
  $region7: #{precoding_resnet_forward.4} parent=0 // loop_footer_branch
    %8 = sbr.rel target = $region3
  $region8: #{precoding_resnet_forward.4} parent=0 // loop_exit
    _

// kernel: precoding_resnet_forward.5
$region0: #{precoding_resnet_forward.5}
  #allocation0 [shape = 'u32[]', space=smem, size = 0x4, offset = 0x4, fixed_abs, tag = 'smem constant byte address 0x4 - core index']
  #allocation1 [shape = 'u32[72,128]{1,0:T(1,128)}', space=vmem, size = 0x9000, scoped, tag = 'internal scratch']
  #allocation2 [shape = 'bf16[1,18,18,32]{3,2,1,0:T(8,128)(2,1)}', space=vmem, size = 0x1b000, scoped, tag = 'scratch operand']
  %s0 = inlined_call_operand.vmem [shape: f32[2,18,18,32], index: 0, kind: input, shape index: {}]
  %s1 = inlined_call_operand.vmem [shape: bf16[288,32], index: 1, kind: input, shape index: {}]
  %s2 = inlined_call_operand.vmem [shape: f32[1,32], index: 2, kind: input, shape index: {}, may-alias: {2,4}]
  %s3 = inlined_call_operand.vmem [shape: bf16[288,32], index: 3, kind: input, shape index: {}]
  %s4 = inlined_call_operand.vmem [shape: f32[1,32], index: 4, kind: input, shape index: {}, may-alias: {2,4}]
  %s5 = inlined_call_operand.vmem [shape: f32[2,18,18,32], index: 5, kind: output, shape index: {}]
  %s6 = sld [smem:[#allocation0]]
  $region57: #{precoding_resnet_forward.5} parent=0
    _
  %s8 = ssub.s32 1, %s6
  %s9 = scalar_select 0, %s8, %s6
  loop: start=0, step=1, limit=4
  $region2: #{precoding_resnet_forward.5} parent=0 // loop_pre_header
    _
  $region3: #{precoding_resnet_forward.5} parent=0 // loop_header
    %s11 = sphi 0, %s15
    %p12 = scmp.ge.s32.totalorder %s11, 4
    %s21 = sphi 0, %s23
    %s24 = sphi 0, %s21
    %s25 = sphi 0, %s24
    %s41 = sphi 0, %s25
    %s45 = sphi 0, %s45
    %s47 = sphi 0, %s45
    %s48 = sphi 0, %s47
    %s62 = sphi 0, %s48
    %s66 = sphi 0, %s66
    %s68 = sphi 0, %s66
    %s69 = sphi 0, %s68
    %s83 = sphi 0, %s69
    %s87 = sphi 0, %s87
    %s89 = sphi 0, %s87
    %s90 = sphi 0, %s89
    %s104 = sphi 0, %s90
    %s108 = sphi 0, %s108
    %s110 = sphi 0, %s108
    %s111 = sphi 0, %s110
    %s125 = sphi 0, %s111
    %s131 = sphi 0, %s133
    %s134 = sphi 0, %s131
    %s135 = sphi 0, %s134
    %s151 = sphi 0, %s135
  $region4: #{precoding_resnet_forward.5} parent=0 // loop_header_branch
    %14 = sbr.rel (%p12) target = $region8
  $region5: #{precoding_resnet_forward.5} parent=0 // loop_body
    %s16 = ssub.s32 %s11, 1
    %s17 = ssub.s32 %s11, 2
    %s18 = sadd.s32 %s11, 1
    %s19 = ssub.s32 %s11, %s18
    %p20 = scmp.eq.s32.totalorder %s19, 0
    %s22 = sadd.s32 %s21, 1
    %s23 = scalar_select %p20, %s21, %s22
    %p26 = pneg %p20
    %p27 = scmp.eq.s32.totalorder %s11, 1
    %p28 = por %p26, %p27
    %p29 = scmp.ne.s32.totalorder %s21, %s24
    %p30 = scmp.eq.s32.totalorder %s11, 0
    %p31 = por %p29, %p30
    %p32 = scmp.ne.s32.totalorder %s21, %s24
    %p33 = scmp.eq.s32.totalorder %s16, 1
    %p34 = por %p32, %p33
    %p35 = scmp.ne.s32.totalorder %s24, %s25
    %p36 = scmp.eq.s32.totalorder %s16, 0
    %p37 = por %p35, %p36
    %p38 = scmp.ne.s32.totalorder %s24, %s25
    %p39 = scmp.eq.s32.totalorder %s17, 1
    %p40 = por %p38, %p39
    %p42 = scmp.ne.s32.totalorder %s25, %s41
    %p43 = scmp.eq.s32.totalorder %s17, 0
    %p44 = por %p42, %p43
    %s46 = sadd.s32 %s45, 1
    %p49 = scmp.eq.s32.totalorder %s11, 1
    %p50 = scmp.ne.s32.totalorder %s45, %s47
    %p51 = scmp.eq.s32.totalorder %s11, 0
    %p52 = por %p50, %p51
    %p53 = scmp.ne.s32.totalorder %s45, %s47
    %p54 = scmp.eq.s32.totalorder %s16, 1
    %p55 = por %p53, %p54
    %p56 = scmp.ne.s32.totalorder %s47, %s48
    %p57 = scmp.eq.s32.totalorder %s16, 0
    %p58 = por %p56, %p57
    %p59 = scmp.ne.s32.totalorder %s47, %s48
    %p60 = scmp.eq.s32.totalorder %s17, 1
    %p61 = por %p59, %p60
    %p63 = scmp.ne.s32.totalorder %s48, %s62
    %p64 = scmp.eq.s32.totalorder %s17, 0
    %p65 = por %p63, %p64
    %s67 = sadd.s32 %s66, 1
    %p70 = scmp.eq.s32.totalorder %s11, 1
    %p71 = scmp.ne.s32.totalorder %s66, %s68
    %p72 = scmp.eq.s32.totalorder %s11, 0
    %p73 = por %p71, %p72
    %p74 = scmp.ne.s32.totalorder %s66, %s68
    %p75 = scmp.eq.s32.totalorder %s16, 1
    %p76 = por %p74, %p75
    %p77 = scmp.ne.s32.totalorder %s68, %s69
    %p78 = scmp.eq.s32.totalorder %s16, 0
    %p79 = por %p77, %p78
    %p80 = scmp.ne.s32.totalorder %s68, %s69
    %p81 = scmp.eq.s32.totalorder %s17, 1
    %p82 = por %p80, %p81
    %p84 = scmp.ne.s32.totalorder %s69, %s83
    %p85 = scmp.eq.s32.totalorder %s17, 0
    %p86 = por %p84, %p85
    %s88 = sadd.s32 %s87, 1
    %p91 = scmp.eq.s32.totalorder %s11, 1
    %p92 = scmp.ne.s32.totalorder %s87, %s89
    %p93 = scmp.eq.s32.totalorder %s11, 0
    %p94 = por %p92, %p93
    %p95 = scmp.ne.s32.totalorder %s87, %s89
    %p96 = scmp.eq.s32.totalorder %s16, 1
    %p97 = por %p95, %p96
    %p98 = scmp.ne.s32.totalorder %s89, %s90
    %p99 = scmp.eq.s32.totalorder %s16, 0
    %p100 = por %p98, %p99
    %p101 = scmp.ne.s32.totalorder %s89, %s90
    %p102 = scmp.eq.s32.totalorder %s17, 1
    %p103 = por %p101, %p102
    %p105 = scmp.ne.s32.totalorder %s90, %s104
    %p106 = scmp.eq.s32.totalorder %s17, 0
    %p107 = por %p105, %p106
    %s109 = sadd.s32 %s108, 1
    %p112 = scmp.eq.s32.totalorder %s11, 1
    %p113 = scmp.ne.s32.totalorder %s108, %s110
    %p114 = scmp.eq.s32.totalorder %s11, 0
    %p115 = por %p113, %p114
    %p116 = scmp.ne.s32.totalorder %s108, %s110
    %p117 = scmp.eq.s32.totalorder %s16, 1
    %p118 = por %p116, %p117
    %p119 = scmp.ne.s32.totalorder %s110, %s111
    %p120 = scmp.eq.s32.totalorder %s16, 0
    %p121 = por %p119, %p120
    %p122 = scmp.ne.s32.totalorder %s110, %s111
    %p123 = scmp.eq.s32.totalorder %s17, 1
    %p124 = por %p122, %p123
    %p126 = scmp.ne.s32.totalorder %s111, %s125
    %p127 = scmp.eq.s32.totalorder %s17, 0
    %p128 = por %p126, %p127
    %s129 = ssub.s32 %s11, %s18
    %p130 = scmp.eq.s32.totalorder %s129, 0
    %s132 = sadd.s32 %s131, 1
    %s133 = scalar_select %p130, %s131, %s132
    %p136 = pneg %p130
    %p137 = scmp.eq.s32.totalorder %s11, 1
    %p138 = por %p136, %p137
    %p139 = scmp.ne.s32.totalorder %s131, %s134
    %p140 = scmp.eq.s32.totalorder %s11, 0
    %p141 = por %p139, %p140
    %p142 = scmp.ne.s32.totalorder %s131, %s134
    %p143 = scmp.eq.s32.totalorder %s16, 1
    %p144 = por %p142, %p143
    %p145 = scmp.ne.s32.totalorder %s134, %s135
    %p146 = scmp.eq.s32.totalorder %s16, 0
    %p147 = por %p145, %p146
    %p148 = scmp.ne.s32.totalorder %s134, %s135
    %p149 = scmp.eq.s32.totalorder %s17, 1
    %p150 = por %p148, %p149
    %p152 = scmp.ne.s32.totalorder %s135, %s151
    %p153 = scmp.eq.s32.totalorder %s17, 0
    %p154 = por %p152, %p153
    %p155 = scmp.le.s32.totalorder 1, %s11
    %p156 = scmp.lt.s32.totalorder %s11, 3
    %p157 = pnand %p155, %p156
    %p158 = pneg %p157
    // Predicated region
    $region9: #{precoding_resnet_forward.5} parent=5 // pred_check
      _
    $region10: #{precoding_resnet_forward.5} parent=5 // pred_check_branch
      %160 = sbr.rel (%p157) target = $region12
    $region11: #{precoding_resnet_forward.5} parent=5 // pred_region
      %s161 = ssub.s32 %s11, 1
      // Predicated region
      $region13: #{precoding_resnet_forward.5} parent=11 // pred_check
        %p162 = pneg %p58
      $region14: #{precoding_resnet_forward.5} parent=11 // pred_check_branch
        %164 = sbr.rel (%p162) target = $region16
      $region15: #{precoding_resnet_forward.5} parent=11 // pred_region
        _
      $region16: #{precoding_resnet_forward.5} parent=11 // pred_fallthru
        _
      // Predicated region
      $region17: #{precoding_resnet_forward.5} parent=11 // pred_check
        %p165 = pneg %p79
      $region18: #{precoding_resnet_forward.5} parent=11 // pred_check_branch
        %167 = sbr.rel (%p165) target = $region20
      $region19: #{precoding_resnet_forward.5} parent=11 // pred_region
        _
      $region20: #{precoding_resnet_forward.5} parent=11 // pred_fallthru
        _
      // Predicated region
      $region21: #{precoding_resnet_forward.5} parent=11 // pred_check
        %p168 = pneg %p100
      $region22: #{precoding_resnet_forward.5} parent=11 // pred_check_branch
        %170 = sbr.rel (%p168) target = $region24
      $region23: #{precoding_resnet_forward.5} parent=11 // pred_region
        _
      $region24: #{precoding_resnet_forward.5} parent=11 // pred_fallthru
        _
      // Predicated region
      $region25: #{precoding_resnet_forward.5} parent=11 // pred_check
        %p171 = pneg %p121
      $region26: #{precoding_resnet_forward.5} parent=11 // pred_check_branch
        %173 = sbr.rel (%p171) target = $region28
      $region27: #{precoding_resnet_forward.5} parent=11 // pred_region
        _
      $region28: #{precoding_resnet_forward.5} parent=11 // pred_fallthru
        _
    $region12: #{precoding_resnet_forward.5} parent=5 // pred_fallthru
      _
    %p174 = scmp.lt.s32.totalorder %s11, 2
    // Predicated region
    $region29: #{precoding_resnet_forward.5} parent=5 // pred_check
      %p175 = pneg %p174
    $region30: #{precoding_resnet_forward.5} parent=5 // pred_check_branch
      %177 = sbr.rel (%p175) target = $region32
    $region31: #{precoding_resnet_forward.5} parent=5 // pred_region
      // Predicated region
      $region33: #{precoding_resnet_forward.5} parent=31 // pred_check
        %p178 = pneg %p31
      $region34: #{precoding_resnet_forward.5} parent=31 // pred_check_branch
        %180 = sbr.rel (%p178) target = $region36
      $region35: #{precoding_resnet_forward.5} parent=31 // pred_region
        %p181 = scmp.lt.s32.totalorder %s11, 1
        %s182 = scalar_select %p181, %s11, 1
        %s183 = smul.addr %s182, 54
        %s184 = smul.addr %s183, 8
        %s185 = scalar_lea.vmem %s0, %s184
      $region36: #{precoding_resnet_forward.5} parent=31 // pred_fallthru
        _
    $region32: #{precoding_resnet_forward.5} parent=5 // pred_fallthru
      _
    %p186 = scmp.le.s32.totalorder 1, %s11
    %p187 = scmp.lt.s32.totalorder %s11, 3
    %p188 = pnand %p186, %p187
    %p189 = pneg %p188
    // Predicated region
    $region37: #{precoding_resnet_forward.5} parent=5 // pred_check
      _
    $region38: #{precoding_resnet_forward.5} parent=5 // pred_check_branch
      %191 = sbr.rel (%p188) target = $region40
    $region39: #{precoding_resnet_forward.5} parent=5 // pred_region
      %s192 = ssub.s32 %s11, 1
      %p193 = scmp.lt.s32.totalorder %s16, 1
      %s194 = scalar_select %p193, %s16, 1
      %s195 = smul.addr %s194, 54
      %s196 = smul.addr %s195, 8
      %s197 = scalar_lea.vmem %s0, %s196
      %p198 = pneg %p37
      %p199 = pneg %p34
      %p200 = pneg %p58
      %p201 = pneg %p55
      %p202 = pneg %p79
      %p203 = pneg %p76
      %p204 = pneg %p100
      %p205 = pneg %p97
      %p206 = pneg %p121
      %p207 = pneg %p118
      %p208 = pneg %p147
      %p209 = pneg %p144
      %p210 = scmp.lt.s32.totalorder %s16, 1
      %s211 = scalar_select %p210, %s16, 1
      %s212 = smul.addr %s211, 54
      %s213 = smul.addr %s212, 8
      %s214 = scalar_lea.vmem %s5, %s213
      %p215 = scmp.lt.s32.totalorder %s16, 1
      %s216 = scalar_select %p215, %s16, 1
      %s217 = smul.addr %s216, 54
      %s218 = smul.addr %s217, 8
      %s219 = scalar_lea.vmem %s0, %s218
      %p220 = scmp.lt.s32.totalorder %s16, 1
      %s221 = scalar_select %p220, %s16, 1
      %s222 = smul.addr %s221, 54
      %s223 = smul.addr %s222, 8
      %s224 = scalar_lea.vmem %s5, %s223
      %v226 = vld [vmem:[%s219] sm:$0xff]
      %v227 = vld [vmem:[%s219 + $0x8] sm:$0xff]
      %v228 = vld [vmem:[%s219 + $0x10] sm:$0x3]
      %v229 = vld [vmem:[%s219 + $0x18] sm:$0xff]
      %v230 = vld [vmem:[%s219 + $0x20] sm:$0xff]
      %v231 = vld [vmem:[%s219 + $0x28] sm:$0x3]
      %v232 = vld [vmem:[%s219 + $0x30] sm:$0xff]
      %v233 = vld [vmem:[%s219 + $0x38] sm:$0xff]
      %v234 = vld [vmem:[%s219 + $0x40] sm:$0x3]
      %v235 = vld [vmem:[%s219 + $0x48] sm:$0xff]
      %v236 = vld [vmem:[%s219 + $0x50] sm:$0xff]
      %v237 = vld [vmem:[%s219 + $0x58] sm:$0x3]
      %v238 = vld [vmem:[%s219 + $0x60] sm:$0xff]
      %v239 = vld [vmem:[%s219 + $0x68] sm:$0xff]
      %v240 = vld [vmem:[%s219 + $0x70] sm:$0x3]
      %v241 = vld [vmem:[%s219 + $0x78] sm:$0xff]
      %v242 = vld [vmem:[%s219 + $0x80] sm:$0xff]
      %v243 = vld [vmem:[%s219 + $0x88] sm:$0x3]
      %v244 = vld [vmem:[%s219 + $0x90] sm:$0xff]
      %v245 = vld [vmem:[%s219 + $0x98] sm:$0xff]
      %v246 = vld [vmem:[%s219 + $0xa0] sm:$0x3]
      %v247 = vld [vmem:[%s219 + $0xa8] sm:$0xff]
      %v248 = vld [vmem:[%s219 + $0xb0] sm:$0xff]
      %v249 = vld [vmem:[%s219 + $0xb8] sm:$0x3]
      %v250 = vld [vmem:[%s219 + $0xc0] sm:$0xff]
      %v251 = vld [vmem:[%s219 + $0xc8] sm:$0xff]
      %v252 = vld [vmem:[%s219 + $0xd0] sm:$0x3]
      %v253 = vld [vmem:[%s219 + $0xd8] sm:$0xff]
      %v254 = vld [vmem:[%s219 + $0xe0] sm:$0xff]
      %v255 = vld [vmem:[%s219 + $0xe8] sm:$0x3]
      %v256 = vld [vmem:[%s219 + $0xf0] sm:$0xff]
      %v257 = vld [vmem:[%s219 + $0xf8] sm:$0xff]
      %v258 = vld [vmem:[%s219 + $0x100] sm:$0x3]
      %v259 = vld [vmem:[%s219 + $0x108] sm:$0xff]
      %v260 = vld [vmem:[%s219 + $0x110] sm:$0xff]
      %v261 = vld [vmem:[%s219 + $0x118] sm:$0x3]
      %v262 = vld [vmem:[%s219 + $0x120] sm:$0xff]
      %v263 = vld [vmem:[%s219 + $0x128] sm:$0xff]
      %v264 = vld [vmem:[%s219 + $0x130] sm:$0x3]
      %v265 = vld [vmem:[%s219 + $0x138] sm:$0xff]
      %v266 = vld [vmem:[%s219 + $0x140] sm:$0xff]
      %v267 = vld [vmem:[%s219 + $0x148] sm:$0x3]
      %v268 = vld [vmem:[%s219 + $0x150] sm:$0xff]
      %v269 = vld [vmem:[%s219 + $0x158] sm:$0xff]
      %v270 = vld [vmem:[%s219 + $0x160] sm:$0x3]
      %v271 = vld [vmem:[%s219 + $0x168] sm:$0xff]
      %v272 = vld [vmem:[%s219 + $0x170] sm:$0xff]
      %v273 = vld [vmem:[%s219 + $0x178] sm:$0x3]
      %v274 = vld [vmem:[%s219 + $0x180] sm:$0xff]
      %v275 = vld [vmem:[%s219 + $0x188] sm:$0xff]
      %v276 = vld [vmem:[%s219 + $0x190] sm:$0x3]
      %v277 = vld [vmem:[%s219 + $0x198] sm:$0xff]
      %v278 = vld [vmem:[%s219 + $0x1a0] sm:$0xff]
      %v279 = vld [vmem:[%s219 + $0x1a8] sm:$0x3]
      %v280 = vld [vmem:[%s1] sm:$0xf]
      %v281 = vld [vmem:[%s1 + $0x4] sm:$0xf]
      %v282 = vld [vmem:[%s1 + $0x8] sm:$0xf]
      %v283 = vld [vmem:[%s1 + $0xc] sm:$0xf]
      %v284 = vld [vmem:[%s1 + $0x10] sm:$0xf]
      %v285 = vld [vmem:[%s1 + $0x14] sm:$0xf]
      %v286 = vld [vmem:[%s1 + $0x18] sm:$0xf]
      %v287 = vld [vmem:[%s1 + $0x1c] sm:$0xf]
      %v288 = vld [vmem:[%s1 + $0x20] sm:$0xf]
      %v289 = vld [vmem:[%s1 + $0x24] sm:$0xf]
      %v290 = vld [vmem:[%s1 + $0x28] sm:$0xf]
      %v291 = vld [vmem:[%s1 + $0x2c] sm:$0xf]
      %v292 = vld [vmem:[%s1 + $0x30] sm:$0xf]
      %v293 = vld [vmem:[%s1 + $0x34] sm:$0xf]
      %v294 = vld [vmem:[%s1 + $0x38] sm:$0xf]
      %v295 = vld [vmem:[%s1 + $0x3c] sm:$0xf]
      %v296 = vld [vmem:[%s1 + $0x40] sm:$0xf]
      %v297 = vld [vmem:[%s1 + $0x44] sm:$0xf]
      %v298 = vld [vmem:[%s1 + $0x48] sm:$0xf]
      %v299 = vld [vmem:[%s1 + $0x4c] sm:$0xf]
      %v300 = vld [vmem:[%s1 + $0x50] sm:$0xf]
      %v301 = vld [vmem:[%s1 + $0x54] sm:$0xf]
      %v302 = vld [vmem:[%s1 + $0x58] sm:$0xf]
      %v303 = vld [vmem:[%s1 + $0x5c] sm:$0xf]
      %v304 = vld [vmem:[%s1 + $0x60] sm:$0xf]
      %v305 = vld [vmem:[%s1 + $0x64] sm:$0xf]
      %v306 = vld [vmem:[%s1 + $0x68] sm:$0xf]
      %v307 = vld [vmem:[%s1 + $0x6c] sm:$0xf]
      %v308 = vld [vmem:[%s1 + $0x70] sm:$0xf]
      %v309 = vld [vmem:[%s1 + $0x74] sm:$0xf]
      %v310 = vld [vmem:[%s1 + $0x78] sm:$0xf]
      %v311 = vld [vmem:[%s1 + $0x7c] sm:$0xf]
      %v312 = vld [vmem:[%s1 + $0x80] sm:$0xf]
      %v313 = vld [vmem:[%s1 + $0x84] sm:$0xf]
      %v314 = vld [vmem:[%s1 + $0x88] sm:$0xf]
      %v315 = vld [vmem:[%s1 + $0x8c] sm:$0xf]
      %v316 = vld [vmem:[%s2] sm:$0x1]
      %v317 = vpack.c.bf16 %v226, %v226
      %v318 = vpack.c.bf16 %v227, %v227
      %v319 = vpack.c.bf16 %v228, %v228
      %v320 = vpack.c.bf16 %v229, %v229
      %v321 = vpack.c.bf16 %v230, %v230
      %v322 = vpack.c.bf16 %v231, %v231
      %v323 = vpack.c.bf16 %v232, %v232
      %v324 = vpack.c.bf16 %v233, %v233
      %v325 = vpack.c.bf16 %v234, %v234
      %v326 = vpack.c.bf16 %v235, %v235
      %v327 = vpack.c.bf16 %v236, %v236
      %v328 = vpack.c.bf16 %v237, %v237
      %v329 = vpack.c.bf16 %v238, %v238
      %v330 = vpack.c.bf16 %v239, %v239
      %v331 = vpack.c.bf16 %v240, %v240
      %v332 = vpack.c.bf16 %v241, %v241
      %v333 = vpack.c.bf16 %v242, %v242
      %v334 = vpack.c.bf16 %v243, %v243
      %v335 = vpack.c.bf16 %v244, %v244
      %v336 = vpack.c.bf16 %v245, %v245
      %v337 = vpack.c.bf16 %v246, %v246
      %v338 = vpack.c.bf16 %v247, %v247
      %v339 = vpack.c.bf16 %v248, %v248
      %v340 = vpack.c.bf16 %v249, %v249
      %v341 = vpack.c.bf16 %v250, %v250
      %v342 = vpack.c.bf16 %v251, %v251
      %v343 = vpack.c.bf16 %v252, %v252
      %v344 = vpack.c.bf16 %v253, %v253
      %v345 = vpack.c.bf16 %v254, %v254
      %v346 = vpack.c.bf16 %v255, %v255
      %v347 = vpack.c.bf16 %v256, %v256
      %v348 = vpack.c.bf16 %v257, %v257
      %v349 = vpack.c.bf16 %v258, %v258
      %v350 = vpack.c.bf16 %v259, %v259
      %v351 = vpack.c.bf16 %v260, %v260
      %v352 = vpack.c.bf16 %v261, %v261
      %v353 = vpack.c.bf16 %v262, %v262
      %v354 = vpack.c.bf16 %v263, %v263
      %v355 = vpack.c.bf16 %v264, %v264
      %v356 = vpack.c.bf16 %v265, %v265
      %v357 = vpack.c.bf16 %v266, %v266
      %v358 = vpack.c.bf16 %v267, %v267
      %v359 = vpack.c.bf16 %v268, %v268
      %v360 = vpack.c.bf16 %v269, %v269
      %v361 = vpack.c.bf16 %v270, %v270
      %v362 = vpack.c.bf16 %v271, %v271
      %v363 = vpack.c.bf16 %v272, %v272
      %v364 = vpack.c.bf16 %v273, %v273
      %v365 = vpack.c.bf16 %v274, %v274
      %v366 = vpack.c.bf16 %v275, %v275
      %v367 = vpack.c.bf16 %v276, %v276
      %v368 = vpack.c.bf16 %v277, %v277
      %v369 = vpack.c.bf16 %v278, %v278
      %v370 = vpack.c.bf16 %v279, %v279
      %v403 = vunpack.c.l.b16 %v317
      %v404 = vunpack.c.l.b16 %v318
      %v405 = vunpack.c.l.b16 %v320
      %v406 = vunpack.c.l.b16 %v321
      %v407 = vunpack.c.l.b16 %v323
      %v408 = vunpack.c.l.b16 %v324
      %v409 = vunpack.c.l.b16 %v326
      %v410 = vunpack.c.l.b16 %v327
      %v411 = vunpack.c.l.b16 %v329
      %v412 = vunpack.c.l.b16 %v330
      %v413 = vunpack.c.l.b16 %v332
      %v414 = vunpack.c.l.b16 %v333
      %v415 = vunpack.c.l.b16 %v335
      %v416 = vunpack.c.l.b16 %v336
      %v417 = vunpack.c.l.b16 %v338
      %v418 = vunpack.c.l.b16 %v339
      %v419 = vunpack.c.l.b16 %v341
      %v420 = vunpack.c.l.b16 %v342
      %v421 = vunpack.c.l.b16 %v344
      %v422 = vunpack.c.l.b16 %v345
      %v423 = vunpack.c.l.b16 %v347
      %v424 = vunpack.c.l.b16 %v348
      %v425 = vunpack.c.l.b16 %v350
      %v426 = vunpack.c.l.b16 %v351
      %v427 = vunpack.c.l.b16 %v353
      %v428 = vunpack.c.l.b16 %v354
      %v429 = vunpack.c.l.b16 %v356
      %v430 = vunpack.c.l.b16 %v357
      %v431 = vunpack.c.l.b16 %v359
      %v432 = vunpack.c.l.b16 %v360
      %v433 = vunpack.c.l.b16 %v362
      %v434 = vunpack.c.l.b16 %v363
      %v435 = vpack.c.b16 %v404, %v403
      %v436 = vpack.c.b16 %v406, %v405
      %v437 = vpack.c.b16 %v408, %v407
      %v438 = vpack.c.b16 %v410, %v409
      %v439 = vpack.c.b16 %v412, %v411
      %v440 = vpack.c.b16 %v414, %v413
      %v441 = vpack.c.b16 %v416, %v415
      %v442 = vpack.c.b16 %v418, %v417
      %v443 = vpack.c.b16 %v420, %v419
      %v444 = vpack.c.b16 %v422, %v421
      %v445 = vpack.c.b16 %v424, %v423
      %v446 = vpack.c.b16 %v426, %v425
      %v447 = vpack.c.b16 %v428, %v427
      %v448 = vpack.c.b16 %v430, %v429
      %v449 = vpack.c.b16 %v432, %v431
      %v450 = vpack.c.b16 %v434, %v433
      %v467 = vunpack.c.l.b16 %v319
      %v468 = vunpack.c.l.b16 %v322
      %v469 = vunpack.c.l.b16 %v325
      %v470 = vunpack.c.l.b16 %v328
      %v471 = vunpack.c.l.b16 %v331
      %v472 = vunpack.c.l.b16 %v334
      %v473 = vunpack.c.l.b16 %v337
      %v474 = vunpack.c.l.b16 %v340
      %v475 = vunpack.c.l.b16 %v343
      %v476 = vunpack.c.l.b16 %v346
      %v477 = vunpack.c.l.b16 %v349
      %v478 = vunpack.c.l.b16 %v352
      %v479 = vunpack.c.l.b16 %v355
      %v480 = vunpack.c.l.b16 %v358
      %v481 = vunpack.c.l.b16 %v361
      %v482 = vunpack.c.l.b16 %v364
      %v483 = vpack.c.b16 %v467, %v467
      %v484 = vpack.c.b16 %v468, %v468
      %v485 = vpack.c.b16 %v469, %v469
      %v486 = vpack.c.b16 %v470, %v470
      %v487 = vpack.c.b16 %v471, %v471
      %v488 = vpack.c.b16 %v472, %v472
      %v489 = vpack.c.b16 %v473, %v473
      %v490 = vpack.c.b16 %v474, %v474
      %v491 = vpack.c.b16 %v475, %v475
      %v492 = vpack.c.b16 %v476, %v476
      %v493 = vpack.c.b16 %v477, %v477
      %v494 = vpack.c.b16 %v478, %v478
      %v495 = vpack.c.b16 %v479, %v479
      %v496 = vpack.c.b16 %v480, %v480
      %v497 = vpack.c.b16 %v481, %v481
      %v498 = vpack.c.b16 %v482, %v482
      %vm499 = vsmask.f32 7424
      %v501 = vshrl.u32 %v435, 16
      %v503 = vshll.u32 %v435, 16
      %v505 = vrot.slane %v503, 1
      %v506 = vor.u32 %v501, %v505
      %v508 = vshll.u32 %v483, 16
      %v510 = vrot.slane %v508, 1
      %v511 = vsel %vm499, %v506, %v510
      %v513 = vshrl.u32 %v436, 16
      %v515 = vshll.u32 %v436, 16
      %v517 = vrot.slane %v515, 1
      %v518 = vor.u32 %v513, %v517
      %v520 = vshll.u32 %v484, 16
      %v522 = vrot.slane %v520, 1
      %v523 = vsel %vm499, %v518, %v522
      %v525 = vshrl.u32 %v437, 16
      %v527 = vshll.u32 %v437, 16
      %v529 = vrot.slane %v527, 1
      %v530 = vor.u32 %v525, %v529
      %v532 = vshll.u32 %v485, 16
      %v534 = vrot.slane %v532, 1
      %v535 = vsel %vm499, %v530, %v534
      %v537 = vshrl.u32 %v438, 16
      %v539 = vshll.u32 %v438, 16
      %v541 = vrot.slane %v539, 1
      %v542 = vor.u32 %v537, %v541
      %v544 = vshll.u32 %v486, 16
      %v546 = vrot.slane %v544, 1
      %v547 = vsel %vm499, %v542, %v546
      %v549 = vshrl.u32 %v439, 16
      %v551 = vshll.u32 %v439, 16
      %v553 = vrot.slane %v551, 1
      %v554 = vor.u32 %v549, %v553
      %v556 = vshll.u32 %v487, 16
      %v558 = vrot.slane %v556, 1
      %v559 = vsel %vm499, %v554, %v558
      %v561 = vshrl.u32 %v440, 16
      %v563 = vshll.u32 %v440, 16
      %v565 = vrot.slane %v563, 1
      %v566 = vor.u32 %v561, %v565
      %v568 = vshll.u32 %v488, 16
      %v570 = vrot.slane %v568, 1
      %v571 = vsel %vm499, %v566, %v570
      %v573 = vshrl.u32 %v441, 16
      %v575 = vshll.u32 %v441, 16
      %v577 = vrot.slane %v575, 1
      %v578 = vor.u32 %v573, %v577
      %v580 = vshll.u32 %v489, 16
      %v582 = vrot.slane %v580, 1
      %v583 = vsel %vm499, %v578, %v582
      %v585 = vshrl.u32 %v442, 16
      %v587 = vshll.u32 %v442, 16
      %v589 = vrot.slane %v587, 1
      %v590 = vor.u32 %v585, %v589
      %v592 = vshll.u32 %v490, 16
      %v594 = vrot.slane %v592, 1
      %v595 = vsel %vm499, %v590, %v594
      %v597 = vshrl.u32 %v443, 16
      %v599 = vshll.u32 %v443, 16
      %v601 = vrot.slane %v599, 1
      %v602 = vor.u32 %v597, %v601
      %v604 = vshll.u32 %v491, 16
      %v606 = vrot.slane %v604, 1
      %v607 = vsel %vm499, %v602, %v606
      %v609 = vshrl.u32 %v444, 16
      %v611 = vshll.u32 %v444, 16
      %v613 = vrot.slane %v611, 1
      %v614 = vor.u32 %v609, %v613
      %v616 = vshll.u32 %v492, 16
      %v618 = vrot.slane %v616, 1
      %v619 = vsel %vm499, %v614, %v618
      %v621 = vshrl.u32 %v445, 16
      %v623 = vshll.u32 %v445, 16
      %v625 = vrot.slane %v623, 1
      %v626 = vor.u32 %v621, %v625
      %v628 = vshll.u32 %v493, 16
      %v630 = vrot.slane %v628, 1
      %v631 = vsel %vm499, %v626, %v630
      %v633 = vshrl.u32 %v446, 16
      %v635 = vshll.u32 %v446, 16
      %v637 = vrot.slane %v635, 1
      %v638 = vor.u32 %v633, %v637
      %v640 = vshll.u32 %v494, 16
      %v642 = vrot.slane %v640, 1
      %v643 = vsel %vm499, %v638, %v642
      %v645 = vshrl.u32 %v447, 16
      %v647 = vshll.u32 %v447, 16
      %v649 = vrot.slane %v647, 1
      %v650 = vor.u32 %v645, %v649
      %v652 = vshll.u32 %v495, 16
      %v654 = vrot.slane %v652, 1
      %v655 = vsel %vm499, %v650, %v654
      %v657 = vshrl.u32 %v448, 16
      %v659 = vshll.u32 %v448, 16
      %v661 = vrot.slane %v659, 1
      %v662 = vor.u32 %v657, %v661
      %v664 = vshll.u32 %v496, 16
      %v666 = vrot.slane %v664, 1
      %v667 = vsel %vm499, %v662, %v666
      %v669 = vshrl.u32 %v449, 16
      %v671 = vshll.u32 %v449, 16
      %v673 = vrot.slane %v671, 1
      %v674 = vor.u32 %v669, %v673
      %v676 = vshll.u32 %v497, 16
      %v678 = vrot.slane %v676, 1
      %v679 = vsel %vm499, %v674, %v678
      %v681 = vshrl.u32 %v450, 16
      %v683 = vshll.u32 %v450, 16
      %v685 = vrot.slane %v683, 1
      %v686 = vor.u32 %v681, %v685
      %v688 = vshll.u32 %v498, 16
      %v690 = vrot.slane %v688, 1
      %v691 = vsel %vm499, %v686, %v690
      %692 = vrot.lane.b32.xlu0 %v511, 32
      %v693 = vpop.permute.xlu0 %692
      %694 = vrot.lane.b32.xlu0 %v523, 32
      %v695 = vpop.permute.xlu0 %694
      %696 = vrot.lane.b32.xlu0 %v535, 32
      %v697 = vpop.permute.xlu0 %696
      %698 = vrot.lane.b32.xlu0 %v547, 32
      %v699 = vpop.permute.xlu0 %698
      %700 = vrot.lane.b32.xlu0 %v559, 32
      %v701 = vpop.permute.xlu0 %700
      %702 = vrot.lane.b32.xlu0 %v571, 32
      %v703 = vpop.permute.xlu0 %702
      %704 = vrot.lane.b32.xlu0 %v583, 32
      %v705 = vpop.permute.xlu0 %704
      %706 = vrot.lane.b32.xlu0 %v595, 32
      %v707 = vpop.permute.xlu0 %706
      %708 = vrot.lane.b32.xlu0 %v607, 32
      %v709 = vpop.permute.xlu0 %708
      %710 = vrot.lane.b32.xlu0 %v619, 32
      %v711 = vpop.permute.xlu0 %710
      %712 = vrot.lane.b32.xlu0 %v631, 32
      %v713 = vpop.permute.xlu0 %712
      %714 = vrot.lane.b32.xlu0 %v643, 32
      %v715 = vpop.permute.xlu0 %714
      %716 = vrot.lane.b32.xlu0 %v655, 32
      %v717 = vpop.permute.xlu0 %716
      %718 = vrot.lane.b32.xlu0 %v667, 32
      %v719 = vpop.permute.xlu0 %718
      %720 = vrot.lane.b32.xlu0 %v679, 32
      %v721 = vpop.permute.xlu0 %720
      %722 = vrot.lane.b32.xlu0 %v691, 32
      %v723 = vpop.permute.xlu0 %722
      %vm724 = vcmask 1046528
      %v725 = vrot.slane %v435, 1
      %v726 = vrot.slane %v483, 1
      %v727 = vsel %vm724, %v725, %v726
      %v728 = vrot.slane %v436, 1
      %v729 = vrot.slane %v484, 1
      %v730 = vsel %vm724, %v728, %v729
      %v731 = vrot.slane %v437, 1
      %v732 = vrot.slane %v485, 1
      %v733 = vsel %vm724, %v731, %v732
      %v734 = vrot.slane %v438, 1
      %v735 = vrot.slane %v486, 1
      %v736 = vsel %vm724, %v734, %v735
      %v737 = vrot.slane %v439, 1
      %v738 = vrot.slane %v487, 1
      %v739 = vsel %vm724, %v737, %v738
      %v740 = vrot.slane %v440, 1
      %v741 = vrot.slane %v488, 1
      %v742 = vsel %vm724, %v740, %v741
      %v743 = vrot.slane %v441, 1
      %v744 = vrot.slane %v489, 1
      %v745 = vsel %vm724, %v743, %v744
      %v746 = vrot.slane %v442, 1
      %v747 = vrot.slane %v490, 1
      %v748 = vsel %vm724, %v746, %v747
      %v749 = vrot.slane %v443, 1
      %v750 = vrot.slane %v491, 1
      %v751 = vsel %vm724, %v749, %v750
      %v752 = vrot.slane %v444, 1
      %v753 = vrot.slane %v492, 1
      %v754 = vsel %vm724, %v752, %v753
      %v755 = vrot.slane %v445, 1
      %v756 = vrot.slane %v493, 1
      %v757 = vsel %vm724, %v755, %v756
      %v758 = vrot.slane %v446, 1
      %v759 = vrot.slane %v494, 1
      %v760 = vsel %vm724, %v758, %v759
      %v761 = vrot.slane %v447, 1
      %v762 = vrot.slane %v495, 1
      %v763 = vsel %vm724, %v761, %v762
      %v764 = vrot.slane %v448, 1
      %v765 = vrot.slane %v496, 1
      %v766 = vsel %vm724, %v764, %v765
      %v767 = vrot.slane %v449, 1
      %v768 = vrot.slane %v497, 1
      %v769 = vsel %vm724, %v767, %v768
      %v770 = vrot.slane %v450, 1
      %v771 = vrot.slane %v498, 1
      %v772 = vsel %vm724, %v770, %v771
      %773 = vrot.lane.b32.xlu0 %v727, 64
      %v774 = vpop.permute.xlu0 %773
      %775 = vrot.lane.b32.xlu0 %v730, 64
      %v776 = vpop.permute.xlu0 %775
      %777 = vrot.lane.b32.xlu0 %v733, 64
      %v778 = vpop.permute.xlu0 %777
      %779 = vrot.lane.b32.xlu0 %v736, 64
      %v780 = vpop.permute.xlu0 %779
      %781 = vrot.lane.b32.xlu0 %v739, 64
      %v782 = vpop.permute.xlu0 %781
      %783 = vrot.lane.b32.xlu0 %v742, 64
      %v784 = vpop.permute.xlu0 %783
      %785 = vrot.lane.b32.xlu0 %v745, 64
      %v786 = vpop.permute.xlu0 %785
      %787 = vrot.lane.b32.xlu0 %v748, 64
      %v788 = vpop.permute.xlu0 %787
      %789 = vrot.lane.b32.xlu0 %v751, 64
      %v790 = vpop.permute.xlu0 %789
      %791 = vrot.lane.b32.xlu0 %v754, 64
      %v792 = vpop.permute.xlu0 %791
      %793 = vrot.lane.b32.xlu0 %v757, 64
      %v794 = vpop.permute.xlu0 %793
      %795 = vrot.lane.b32.xlu0 %v760, 64
      %v796 = vpop.permute.xlu0 %795
      %797 = vrot.lane.b32.xlu0 %v763, 64
      %v798 = vpop.permute.xlu0 %797
      %799 = vrot.lane.b32.xlu0 %v766, 64
      %v800 = vpop.permute.xlu0 %799
      %801 = vrot.lane.b32.xlu0 %v769, 64
      %v802 = vpop.permute.xlu0 %801
      %803 = vrot.lane.b32.xlu0 %v772, 64
      %v804 = vpop.permute.xlu0 %803
      %v807 = vunpack.c.l.b16 %v365
      %v808 = vunpack.c.l.b16 %v366
      %v809 = vpack.c.b16 %v808, %v807
      %810 = vrot.lane.b32.xlu0 %v436, 96
      %v811 = vpop.permute.xlu0 %810
      %812 = vrot.lane.b32.xlu0 %v437, 96
      %v813 = vpop.permute.xlu0 %812
      %814 = vrot.lane.b32.xlu0 %v438, 96
      %v815 = vpop.permute.xlu0 %814
      %816 = vrot.lane.b32.xlu0 %v439, 96
      %v817 = vpop.permute.xlu0 %816
      %818 = vrot.lane.b32.xlu0 %v440, 96
      %v819 = vpop.permute.xlu0 %818
      %820 = vrot.lane.b32.xlu0 %v441, 96
      %v821 = vpop.permute.xlu0 %820
      %822 = vrot.lane.b32.xlu0 %v442, 96
      %v823 = vpop.permute.xlu0 %822
      %824 = vrot.lane.b32.xlu0 %v443, 96
      %v825 = vpop.permute.xlu0 %824
      %826 = vrot.lane.b32.xlu0 %v444, 96
      %v827 = vpop.permute.xlu0 %826
      %828 = vrot.lane.b32.xlu0 %v445, 96
      %v829 = vpop.permute.xlu0 %828
      %830 = vrot.lane.b32.xlu0 %v446, 96
      %v831 = vpop.permute.xlu0 %830
      %832 = vrot.lane.b32.xlu0 %v447, 96
      %v833 = vpop.permute.xlu0 %832
      %834 = vrot.lane.b32.xlu0 %v448, 96
      %v835 = vpop.permute.xlu0 %834
      %836 = vrot.lane.b32.xlu0 %v449, 96
      %v837 = vpop.permute.xlu0 %836
      %838 = vrot.lane.b32.xlu0 %v450, 96
      %v839 = vpop.permute.xlu0 %838
      %840 = vrot.lane.b32.xlu0 %v809, 96
      %v841 = vpop.permute.xlu0 %840
      %v843 = vunpack.c.l.b16 %v367
      %v844 = vpack.c.b16 %v843, %v843
      %v846 = vshrl.u32 %v809, 16
      %v848 = vshll.u32 %v809, 16
      %v850 = vrot.slane %v848, 1
      %v851 = vor.u32 %v846, %v850
      %v853 = vshll.u32 %v844, 16
      %v855 = vrot.slane %v853, 1
      %v856 = vsel %vm499, %v851, %v855
      %v857 = vrot.slane %v809, 1
      %v858 = vrot.slane %v844, 1
      %v859 = vsel %vm724, %v857, %v858
      %860 = vrot.lane.b32.xlu0 %v730, 32
      %v861 = vpop.permute.xlu0 %860
      %862 = vrot.lane.b32.xlu0 %v733, 32
      %v863 = vpop.permute.xlu0 %862
      %864 = vrot.lane.b32.xlu0 %v736, 32
      %v865 = vpop.permute.xlu0 %864
      %866 = vrot.lane.b32.xlu0 %v739, 32
      %v867 = vpop.permute.xlu0 %866
      %868 = vrot.lane.b32.xlu0 %v742, 32
      %v869 = vpop.permute.xlu0 %868
      %870 = vrot.lane.b32.xlu0 %v745, 32
      %v871 = vpop.permute.xlu0 %870
      %872 = vrot.lane.b32.xlu0 %v748, 32
      %v873 = vpop.permute.xlu0 %872
      %874 = vrot.lane.b32.xlu0 %v751, 32
      %v875 = vpop.permute.xlu0 %874
      %876 = vrot.lane.b32.xlu0 %v754, 32
      %v877 = vpop.permute.xlu0 %876
      %878 = vrot.lane.b32.xlu0 %v757, 32
      %v879 = vpop.permute.xlu0 %878
      %880 = vrot.lane.b32.xlu0 %v760, 32
      %v881 = vpop.permute.xlu0 %880
      %882 = vrot.lane.b32.xlu0 %v763, 32
      %v883 = vpop.permute.xlu0 %882
      %884 = vrot.lane.b32.xlu0 %v766, 32
      %v885 = vpop.permute.xlu0 %884
      %886 = vrot.lane.b32.xlu0 %v769, 32
      %v887 = vpop.permute.xlu0 %886
      %888 = vrot.lane.b32.xlu0 %v772, 32
      %v889 = vpop.permute.xlu0 %888
      %890 = vrot.lane.b32.xlu0 %v859, 32
      %v891 = vpop.permute.xlu0 %890
      %v894 = vunpack.c.l.b16 %v368
      %v895 = vunpack.c.l.b16 %v369
      %v896 = vpack.c.b16 %v895, %v894
      %897 = vrot.lane.b32.xlu0 %v437, 64
      %v898 = vpop.permute.xlu0 %897
      %899 = vrot.lane.b32.xlu0 %v438, 64
      %v900 = vpop.permute.xlu0 %899
      %901 = vrot.lane.b32.xlu0 %v439, 64
      %v902 = vpop.permute.xlu0 %901
      %903 = vrot.lane.b32.xlu0 %v440, 64
      %v904 = vpop.permute.xlu0 %903
      %905 = vrot.lane.b32.xlu0 %v441, 64
      %v906 = vpop.permute.xlu0 %905
      %907 = vrot.lane.b32.xlu0 %v442, 64
      %v908 = vpop.permute.xlu0 %907
      %909 = vrot.lane.b32.xlu0 %v443, 64
      %v910 = vpop.permute.xlu0 %909
      %911 = vrot.lane.b32.xlu0 %v444, 64
      %v912 = vpop.permute.xlu0 %911
      %913 = vrot.lane.b32.xlu0 %v445, 64
      %v914 = vpop.permute.xlu0 %913
      %915 = vrot.lane.b32.xlu0 %v446, 64
      %v916 = vpop.permute.xlu0 %915
      %917 = vrot.lane.b32.xlu0 %v447, 64
      %v918 = vpop.permute.xlu0 %917
      %919 = vrot.lane.b32.xlu0 %v448, 64
      %v920 = vpop.permute.xlu0 %919
      %921 = vrot.lane.b32.xlu0 %v449, 64
      %v922 = vpop.permute.xlu0 %921
      %923 = vrot.lane.b32.xlu0 %v450, 64
      %v924 = vpop.permute.xlu0 %923
      %925 = vrot.lane.b32.xlu0 %v809, 64
      %v926 = vpop.permute.xlu0 %925
      %927 = vrot.lane.b32.xlu0 %v896, 64
      %v928 = vpop.permute.xlu0 %927
      %v930 = vunpack.c.l.b16 %v370
      %v931 = vpack.c.b16 %v930, %v930
      %v933 = vshrl.u32 %v896, 16
      %v935 = vshll.u32 %v896, 16
      %v937 = vrot.slane %v935, 1
      %v938 = vor.u32 %v933, %v937
      %v940 = vshll.u32 %v931, 16
      %v942 = vrot.slane %v940, 1
      %v943 = vsel %vm499, %v938, %v942
      %944 = vrot.lane.b32.xlu0 %v535, 96
      %v945 = vpop.permute.xlu0 %944
      %946 = vrot.lane.b32.xlu0 %v547, 96
      %v947 = vpop.permute.xlu0 %946
      %948 = vrot.lane.b32.xlu0 %v559, 96
      %v949 = vpop.permute.xlu0 %948
      %950 = vrot.lane.b32.xlu0 %v571, 96
      %v951 = vpop.permute.xlu0 %950
      %952 = vrot.lane.b32.xlu0 %v583, 96
      %v953 = vpop.permute.xlu0 %952
      %954 = vrot.lane.b32.xlu0 %v595, 96
      %v955 = vpop.permute.xlu0 %954
      %956 = vrot.lane.b32.xlu0 %v607, 96
      %v957 = vpop.permute.xlu0 %956
      %958 = vrot.lane.b32.xlu0 %v619, 96
      %v959 = vpop.permute.xlu0 %958
      %960 = vrot.lane.b32.xlu0 %v631, 96
      %v961 = vpop.permute.xlu0 %960
      %962 = vrot.lane.b32.xlu0 %v643, 96
      %v963 = vpop.permute.xlu0 %962
      %964 = vrot.lane.b32.xlu0 %v655, 96
      %v965 = vpop.permute.xlu0 %964
      %966 = vrot.lane.b32.xlu0 %v667, 96
      %v967 = vpop.permute.xlu0 %966
      %968 = vrot.lane.b32.xlu0 %v679, 96
      %v969 = vpop.permute.xlu0 %968
      %970 = vrot.lane.b32.xlu0 %v691, 96
      %v971 = vpop.permute.xlu0 %970
      %972 = vrot.lane.b32.xlu0 %v856, 96
      %v973 = vpop.permute.xlu0 %972
      %974 = vrot.lane.b32.xlu0 %v943, 96
      %v975 = vpop.permute.xlu0 %974
      %v976 = vrot.slane %v896, 1
      %v977 = vrot.slane %v931, 1
      %v978 = vsel %vm724, %v976, %v977
      %vm979 = vcmask 261120
      %v981 = vsel %vm979, %v435, %v693
      %v983 = vsel %vm979, %v436, %v695
      %v985 = vsel %vm979, %v437, %v697
      %v987 = vsel %vm979, %v438, %v699
      %v989 = vsel %vm979, %v439, %v701
      %v991 = vsel %vm979, %v440, %v703
      %v993 = vsel %vm979, %v441, %v705
      %v995 = vsel %vm979, %v442, %v707
      %v997 = vsel %vm979, %v443, %v709
      %v999 = vsel %vm979, %v444, %v711
      %v1001 = vsel %vm979, %v445, %v713
      %v1003 = vsel %vm979, %v446, %v715
      %v1005 = vsel %vm979, %v447, %v717
      %v1007 = vsel %vm979, %v448, %v719
      %v1009 = vsel %vm979, %v449, %v721
      %v1011 = vsel %vm979, %v450, %v723
      %vm1012 = vcmask 523264
      %v1014 = vsel %vm1012, %v981, %v774
      %v1016 = vsel %vm1012, %v983, %v776
      %v1018 = vsel %vm1012, %v985, %v778
      %v1020 = vsel %vm1012, %v987, %v780
      %v1022 = vsel %vm1012, %v989, %v782
      %v1024 = vsel %vm1012, %v991, %v784
      %v1026 = vsel %vm1012, %v993, %v786
      %v1028 = vsel %vm1012, %v995, %v788
      %v1030 = vsel %vm1012, %v997, %v790
      %v1032 = vsel %vm1012, %v999, %v792
      %v1034 = vsel %vm1012, %v1001, %v794
      %v1036 = vsel %vm1012, %v1003, %v796
      %v1038 = vsel %vm1012, %v1005, %v798
      %v1040 = vsel %vm1012, %v1007, %v800
      %v1042 = vsel %vm1012, %v1009, %v802
      %v1044 = vsel %vm1012, %v1011, %v804
      %vm1045 = vcmask 785408
      %v1047 = vsel %vm1045, %v1014, %v811
      %v1050 = vsel %vm1045, %v1016, %v813
      %v1053 = vsel %vm1045, %v1018, %v815
      %v1056 = vsel %vm1045, %v1020, %v817
      %v1059 = vsel %vm1045, %v1022, %v819
      %v1062 = vsel %vm1045, %v1024, %v821
      %v1065 = vsel %vm1045, %v1026, %v823
      %v1068 = vsel %vm1045, %v1028, %v825
      %v1071 = vsel %vm1045, %v1030, %v827
      %v1074 = vsel %vm1045, %v1032, %v829
      %v1077 = vsel %vm1045, %v1034, %v831
      %v1080 = vsel %vm1045, %v1036, %v833
      %v1083 = vsel %vm1045, %v1038, %v835
      %v1086 = vsel %vm1045, %v1040, %v837
      %v1089 = vsel %vm1045, %v1042, %v839
      %v1092 = vsel %vm1045, %v1044, %v841
      %v1096 = vsel %vm979, %v523, %v861
      %v1099 = vsel %vm979, %v535, %v863
      %v1102 = vsel %vm979, %v547, %v865
      %v1105 = vsel %vm979, %v559, %v867
      %v1108 = vsel %vm979, %v571, %v869
      %v1111 = vsel %vm979, %v583, %v871
      %v1114 = vsel %vm979, %v595, %v873
      %v1117 = vsel %vm979, %v607, %v875
      %v1120 = vsel %vm979, %v619, %v877
      %v1123 = vsel %vm979, %v631, %v879
      %v1126 = vsel %vm979, %v643, %v881
      %v1129 = vsel %vm979, %v655, %v883
      %v1132 = vsel %vm979, %v667, %v885
      %v1135 = vsel %vm979, %v679, %v887
      %v1138 = vsel %vm979, %v691, %v889
      %v1141 = vsel %vm979, %v856, %v891
      %v1143 = vsel %vm1012, %v1096, %v898
      %v1145 = vsel %vm1012, %v1099, %v900
      %v1147 = vsel %vm1012, %v1102, %v902
      %v1149 = vsel %vm1012, %v1105, %v904
      %v1151 = vsel %vm1012, %v1108, %v906
      %v1153 = vsel %vm1012, %v1111, %v908
      %v1155 = vsel %vm1012, %v1114, %v910
      %v1157 = vsel %vm1012, %v1117, %v912
      %v1159 = vsel %vm1012, %v1120, %v914
      %v1161 = vsel %vm1012, %v1123, %v916
      %v1163 = vsel %vm1012, %v1126, %v918
      %v1165 = vsel %vm1012, %v1129, %v920
      %v1167 = vsel %vm1012, %v1132, %v922
      %v1169 = vsel %vm1012, %v1135, %v924
      %v1171 = vsel %vm1012, %v1138, %v926
      %v1173 = vsel %vm1012, %v1141, %v928
      %v1175 = vsel %vm1045, %v1143, %v945
      %v1178 = vsel %vm1045, %v1145, %v947
      %v1181 = vsel %vm1045, %v1147, %v949
      %v1184 = vsel %vm1045, %v1149, %v951
      %v1187 = vsel %vm1045, %v1151, %v953
      %v1190 = vsel %vm1045, %v1153, %v955
      %v1193 = vsel %vm1045, %v1155, %v957
      %v1196 = vsel %vm1045, %v1157, %v959
      %v1199 = vsel %vm1045, %v1159, %v961
      %v1202 = vsel %vm1045, %v1161, %v963
      %v1205 = vsel %vm1045, %v1163, %v965
      %v1208 = vsel %vm1045, %v1165, %v967
      %v1211 = vsel %vm1045, %v1167, %v969
      %v1214 = vsel %vm1045, %v1169, %v971
      %v1217 = vsel %vm1045, %v1171, %v973
      %v1220 = vsel %vm1045, %v1173, %v975
      %v1223 = vperm.slane %v316, 0
      %v1261 = vunpack.c.l.b16 %v280
      %v1262 = vunpack.c.l.b16 %v281
      %v1263 = vunpack.c.l.b16 %v282
      %v1264 = vunpack.c.l.b16 %v283
      %v1265 = vunpack.c.l.b16 %v284
      %v1266 = vunpack.c.l.b16 %v285
      %v1267 = vunpack.c.l.b16 %v286
      %v1268 = vunpack.c.l.b16 %v287
      %v1269 = vunpack.c.l.b16 %v288
      %v1270 = vunpack.c.l.b16 %v289
      %v1271 = vunpack.c.l.b16 %v290
      %v1272 = vunpack.c.l.b16 %v291
      %v1273 = vunpack.c.l.b16 %v292
      %v1274 = vunpack.c.l.b16 %v293
      %v1275 = vunpack.c.l.b16 %v294
      %v1276 = vunpack.c.l.b16 %v295
      %v1277 = vunpack.c.l.b16 %v296
      %v1278 = vunpack.c.l.b16 %v297
      %v1279 = vunpack.c.l.b16 %v298
      %v1280 = vunpack.c.l.b16 %v299
      %v1281 = vunpack.c.l.b16 %v300
      %v1282 = vunpack.c.l.b16 %v301
      %v1283 = vunpack.c.l.b16 %v302
      %v1284 = vunpack.c.l.b16 %v303
      %v1285 = vunpack.c.l.b16 %v304
      %v1286 = vunpack.c.l.b16 %v305
      %v1287 = vunpack.c.l.b16 %v306
      %v1288 = vunpack.c.l.b16 %v307
      %v1289 = vunpack.c.l.b16 %v308
      %v1290 = vunpack.c.l.b16 %v309
      %v1291 = vunpack.c.l.b16 %v310
      %v1292 = vunpack.c.l.b16 %v311
      %v1293 = vunpack.c.l.b16 %v312
      %v1294 = vunpack.c.l.b16 %v313
      %v1295 = vunpack.c.l.b16 %v314
      %v1296 = vunpack.c.l.b16 %v315
      %v1297 = vpack.c.b16 %v1262, %v1261
      %v1298 = vpack.c.b16 %v1264, %v1263
      %v1299 = vpack.c.b16 %v1266, %v1265
      %v1300 = vpack.c.b16 %v1268, %v1267
      %v1301 = vpack.c.b16 %v1270, %v1269
      %v1302 = vpack.c.b16 %v1272, %v1271
      %v1303 = vpack.c.b16 %v1274, %v1273
      %v1304 = vpack.c.b16 %v1276, %v1275
      %v1305 = vpack.c.b16 %v1278, %v1277
      %v1306 = vpack.c.b16 %v1280, %v1279
      %v1307 = vpack.c.b16 %v1282, %v1281
      %v1308 = vpack.c.b16 %v1284, %v1283
      %v1309 = vpack.c.b16 %v1286, %v1285
      %v1310 = vpack.c.b16 %v1288, %v1287
      %v1311 = vpack.c.b16 %v1290, %v1289
      %v1312 = vpack.c.b16 %v1292, %v1291
      %v1313 = vpack.c.b16 %v1294, %v1293
      %v1314 = vpack.c.b16 %v1296, %v1295
      %v1334 = vsel %vm979, %v733, 0
      %v1337 = vsel %vm979, %v736, 0
      %v1340 = vsel %vm979, %v739, 0
      %v1343 = vsel %vm979, %v742, 0
      %v1346 = vsel %vm979, %v745, 0
      %v1349 = vsel %vm979, %v748, 0
      %v1352 = vsel %vm979, %v751, 0
      %v1355 = vsel %vm979, %v754, 0
      %v1358 = vsel %vm979, %v757, 0
      %v1361 = vsel %vm979, %v760, 0
      %v1364 = vsel %vm979, %v763, 0
      %v1367 = vsel %vm979, %v766, 0
      %v1370 = vsel %vm979, %v769, 0
      %v1373 = vsel %vm979, %v772, 0
      %v1376 = vsel %vm979, %v859, 0
      %v1379 = vsel %vm979, %v978, 0
      %1381 = vmatpush.bf16.msra.mxu0 %v1304
      %1382 = vmatpush.bf16.msra.mxu0 %v1303
      %1383 = vmatpush.bf16.msra.mxu0 %v1302
      %1384 = vmatpush.bf16.msra.mxu0 %v1301
      %1385 = vmatpush.bf16.msra.mxu0 %v1300
      %1386 = vmatpush.bf16.msra.mxu0 %v1299
      %1387 = vmatpush.bf16.msra.mxu0 %v1298
      %1388 = vmatpush.bf16.msra.mxu0 %v1297
      %1389 = vmatmul.bf16.gmra.mxu0 %v1047
      %v1390 = vpop.f32.mrf.mxu0
      %v1391 = vadd.f32 %v1223, %v1390
      %v1392 = vpop.f32.mrf.mxu0
      %v1393 = vadd.f32 %v1223, %v1392
      %1394 = vmatmul.bf16.gmra.mxu0 %v1050
      %v1395 = vpop.f32.mrf.mxu0
      %v1396 = vadd.f32 %v1223, %v1395
      %v1397 = vpop.f32.mrf.mxu0
      %v1398 = vadd.f32 %v1223, %v1397
      %1399 = vmatmul.bf16.gmra.mxu0 %v1053
      %v1400 = vpop.f32.mrf.mxu0
      %v1401 = vadd.f32 %v1223, %v1400
      %v1402 = vpop.f32.mrf.mxu0
      %v1403 = vadd.f32 %v1223, %v1402
      %1404 = vmatmul.bf16.gmra.mxu0 %v1056
      %v1405 = vpop.f32.mrf.mxu0
      %v1406 = vadd.f32 %v1223, %v1405
      %v1407 = vpop.f32.mrf.mxu0
      %v1408 = vadd.f32 %v1223, %v1407
      %1409 = vmatmul.bf16.gmra.mxu0 %v1059
      %v1410 = vpop.f32.mrf.mxu0
      %v1411 = vadd.f32 %v1223, %v1410
      %v1412 = vpop.f32.mrf.mxu0
      %v1413 = vadd.f32 %v1223, %v1412
      %1414 = vmatmul.bf16.gmra.mxu0 %v1062
      %v1415 = vpop.f32.mrf.mxu0
      %v1416 = vadd.f32 %v1223, %v1415
      %v1417 = vpop.f32.mrf.mxu0
      %v1418 = vadd.f32 %v1223, %v1417
      %1419 = vmatmul.bf16.gmra.mxu0 %v1065
      %v1420 = vpop.f32.mrf.mxu0
      %v1421 = vadd.f32 %v1223, %v1420
      %v1422 = vpop.f32.mrf.mxu0
      %v1423 = vadd.f32 %v1223, %v1422
      %1424 = vmatmul.bf16.gmra.mxu0 %v1068
      %v1425 = vpop.f32.mrf.mxu0
      %v1426 = vadd.f32 %v1223, %v1425
      %v1427 = vpop.f32.mrf.mxu0
      %v1428 = vadd.f32 %v1223, %v1427
      %1429 = vmatmul.bf16.gmra.mxu0 %v1071
      %v1430 = vpop.f32.mrf.mxu0
      %v1431 = vadd.f32 %v1223, %v1430
      %v1432 = vpop.f32.mrf.mxu0
      %v1433 = vadd.f32 %v1223, %v1432
      %1434 = vmatmul.bf16.gmra.mxu0 %v1074
      %v1435 = vpop.f32.mrf.mxu0
      %v1436 = vadd.f32 %v1223, %v1435
      %v1437 = vpop.f32.mrf.mxu0
      %v1438 = vadd.f32 %v1223, %v1437
      %1439 = vmatmul.bf16.gmra.mxu0 %v1077
      %v1440 = vpop.f32.mrf.mxu0
      %v1441 = vadd.f32 %v1223, %v1440
      %v1442 = vpop.f32.mrf.mxu0
      %v1443 = vadd.f32 %v1223, %v1442
      %1444 = vmatmul.bf16.gmra.mxu0 %v1080
      %v1445 = vpop.f32.mrf.mxu0
      %v1446 = vadd.f32 %v1223, %v1445
      %v1447 = vpop.f32.mrf.mxu0
      %v1448 = vadd.f32 %v1223, %v1447
      %1449 = vmatmul.bf16.gmra.mxu0 %v1083
      %v1450 = vpop.f32.mrf.mxu0
      %v1451 = vadd.f32 %v1223, %v1450
      %v1452 = vpop.f32.mrf.mxu0
      %v1453 = vadd.f32 %v1223, %v1452
      %1454 = vmatmul.bf16.gmra.mxu0 %v1086
      %v1455 = vpop.f32.mrf.mxu0
      %v1456 = vadd.f32 %v1223, %v1455
      %v1457 = vpop.f32.mrf.mxu0
      %v1458 = vadd.f32 %v1223, %v1457
      %1459 = vmatmul.bf16.gmra.mxu0 %v1089
      %v1460 = vpop.f32.mrf.mxu0
      %v1461 = vadd.f32 %v1223, %v1460
      %v1462 = vpop.f32.mrf.mxu0
      %v1463 = vadd.f32 %v1223, %v1462
      %1464 = vmatmul.bf16.gmra.mxu0 %v1092
      %v1465 = vpop.f32.mrf.mxu0
      %v1466 = vadd.f32 %v1223, %v1465
      %v1467 = vpop.f32.mrf.mxu0
      %v1468 = vadd.f32 %v1223, %v1467
      %1469 = vdwg.mxu0
      %1470 = vmatpush.bf16.msra.mxu0 %v1312
      %1471 = vmatpush.bf16.msra.mxu0 %v1311
      %1472 = vmatpush.bf16.msra.mxu0 %v1310
      %1473 = vmatpush.bf16.msra.mxu0 %v1309
      %1474 = vmatpush.bf16.msra.mxu0 %v1308
      %1475 = vmatpush.bf16.msra.mxu0 %v1307
      %1476 = vmatpush.bf16.msra.mxu0 %v1306
      %1477 = vmatpush.bf16.msra.mxu0 %v1305
      %1478 = vmatmul.bf16.gmra.mxu0 %v1175
      %v1479 = vpop.f32.mrf.mxu0
      %v1480 = vadd.f32 %v1391, %v1479
      %v1481 = vpop.f32.mrf.mxu0
      %v1482 = vadd.f32 %v1393, %v1481
      %1483 = vmatmul.bf16.gmra.mxu0 %v1178
      %v1484 = vpop.f32.mrf.mxu0
      %v1485 = vadd.f32 %v1396, %v1484
      %v1486 = vpop.f32.mrf.mxu0
      %v1487 = vadd.f32 %v1398, %v1486
      %1488 = vmatmul.bf16.gmra.mxu0 %v1181
      %v1489 = vpop.f32.mrf.mxu0
      %v1490 = vadd.f32 %v1401, %v1489
      %v1491 = vpop.f32.mrf.mxu0
      %v1492 = vadd.f32 %v1403, %v1491
      %1493 = vmatmul.bf16.gmra.mxu0 %v1184
      %v1494 = vpop.f32.mrf.mxu0
      %v1495 = vadd.f32 %v1406, %v1494
      %v1496 = vpop.f32.mrf.mxu0
      %v1497 = vadd.f32 %v1408, %v1496
      %1498 = vmatmul.bf16.gmra.mxu0 %v1187
      %v1499 = vpop.f32.mrf.mxu0
      %v1500 = vadd.f32 %v1411, %v1499
      %v1501 = vpop.f32.mrf.mxu0
      %v1502 = vadd.f32 %v1413, %v1501
      %1503 = vmatmul.bf16.gmra.mxu0 %v1190
      %v1504 = vpop.f32.mrf.mxu0
      %v1505 = vadd.f32 %v1416, %v1504
      %v1506 = vpop.f32.mrf.mxu0
      %v1507 = vadd.f32 %v1418, %v1506
      %1508 = vmatmul.bf16.gmra.mxu0 %v1193
      %v1509 = vpop.f32.mrf.mxu0
      %v1510 = vadd.f32 %v1421, %v1509
      %v1511 = vpop.f32.mrf.mxu0
      %v1512 = vadd.f32 %v1423, %v1511
      %1513 = vmatmul.bf16.gmra.mxu0 %v1196
      %v1514 = vpop.f32.mrf.mxu0
      %v1515 = vadd.f32 %v1426, %v1514
      %v1516 = vpop.f32.mrf.mxu0
      %v1517 = vadd.f32 %v1428, %v1516
      %1518 = vmatmul.bf16.gmra.mxu0 %v1199
      %v1519 = vpop.f32.mrf.mxu0
      %v1520 = vadd.f32 %v1431, %v1519
      %v1521 = vpop.f32.mrf.mxu0
      %v1522 = vadd.f32 %v1433, %v1521
      %1523 = vmatmul.bf16.gmra.mxu0 %v1202
      %v1524 = vpop.f32.mrf.mxu0
      %v1525 = vadd.f32 %v1436, %v1524
      %v1526 = vpop.f32.mrf.mxu0
      %v1527 = vadd.f32 %v1438, %v1526
      %1528 = vmatmul.bf16.gmra.mxu0 %v1205
      %v1529 = vpop.f32.mrf.mxu0
      %v1530 = vadd.f32 %v1441, %v1529
      %v1531 = vpop.f32.mrf.mxu0
      %v1532 = vadd.f32 %v1443, %v1531
      %1533 = vmatmul.bf16.gmra.mxu0 %v1208
      %v1534 = vpop.f32.mrf.mxu0
      %v1535 = vadd.f32 %v1446, %v1534
      %v1536 = vpop.f32.mrf.mxu0
      %v1537 = vadd.f32 %v1448, %v1536
      %1538 = vmatmul.bf16.gmra.mxu0 %v1211
      %v1539 = vpop.f32.mrf.mxu0
      %v1540 = vadd.f32 %v1451, %v1539
      %v1541 = vpop.f32.mrf.mxu0
      %v1542 = vadd.f32 %v1453, %v1541
      %1543 = vmatmul.bf16.gmra.mxu0 %v1214
      %v1544 = vpop.f32.mrf.mxu0
      %v1545 = vadd.f32 %v1456, %v1544
      %v1546 = vpop.f32.mrf.mxu0
      %v1547 = vadd.f32 %v1458, %v1546
      %1548 = vmatmul.bf16.gmra.mxu0 %v1217
      %v1549 = vpop.f32.mrf.mxu0
      %v1550 = vadd.f32 %v1461, %v1549
      %v1551 = vpop.f32.mrf.mxu0
      %v1552 = vadd.f32 %v1463, %v1551
      %1553 = vmatmul.bf16.gmra.mxu0 %v1220
      %v1554 = vpop.f32.mrf.mxu0
      %v1555 = vadd.f32 %v1466, %v1554
      %v1556 = vpop.f32.mrf.mxu0
      %v1557 = vadd.f32 %v1468, %v1556
      %1558 = vdwg.mxu0
      %1559 = vmatpush.bf16.msra.mxu0 0
      %1560 = vmatpush.bf16.msra.mxu0 0
      %1561 = vmatpush.bf16.msra.mxu0 0
      %1562 = vmatpush.bf16.msra.mxu0 0
      %1563 = vmatpush.bf16.msra.mxu0 0
      %1564 = vmatpush.bf16.msra.mxu0 0
      %1565 = vmatpush.bf16.msra.mxu0 %v1314
      %1566 = vmatpush.bf16.msra.mxu0 %v1313
      %1567 = vmatmul.bf16.gmra.mxu0 %v1334
      %v1568 = vpop.f32.mrf.mxu0
      %v1569 = vadd.f32 %v1480, %v1568
      %v1570 = vpop.f32.mrf.mxu0
      %v1571 = vadd.f32 %v1482, %v1570
      %1572 = vmatmul.bf16.gmra.mxu0 %v1337
      %v1573 = vpop.f32.mrf.mxu0
      %v1574 = vadd.f32 %v1485, %v1573
      %v1575 = vpop.f32.mrf.mxu0
      %v1576 = vadd.f32 %v1487, %v1575
      %1577 = vmatmul.bf16.gmra.mxu0 %v1340
      %v1578 = vpop.f32.mrf.mxu0
      %v1579 = vadd.f32 %v1490, %v1578
      %v1580 = vpop.f32.mrf.mxu0
      %v1581 = vadd.f32 %v1492, %v1580
      %1582 = vmatmul.bf16.gmra.mxu0 %v1343
      %v1583 = vpop.f32.mrf.mxu0
      %v1584 = vadd.f32 %v1495, %v1583
      %v1585 = vpop.f32.mrf.mxu0
      %v1586 = vadd.f32 %v1497, %v1585
      %1587 = vmatmul.bf16.gmra.mxu0 %v1346
      %v1588 = vpop.f32.mrf.mxu0
      %v1589 = vadd.f32 %v1500, %v1588
      %v1590 = vpop.f32.mrf.mxu0
      %v1591 = vadd.f32 %v1502, %v1590
      %1592 = vmatmul.bf16.gmra.mxu0 %v1349
      %v1593 = vpop.f32.mrf.mxu0
      %v1594 = vadd.f32 %v1505, %v1593
      %v1595 = vpop.f32.mrf.mxu0
      %v1596 = vadd.f32 %v1507, %v1595
      %1597 = vmatmul.bf16.gmra.mxu0 %v1352
      %v1598 = vpop.f32.mrf.mxu0
      %v1599 = vadd.f32 %v1510, %v1598
      %v1600 = vpop.f32.mrf.mxu0
      %v1601 = vadd.f32 %v1512, %v1600
      %1602 = vmatmul.bf16.gmra.mxu0 %v1355
      %v1603 = vpop.f32.mrf.mxu0
      %v1604 = vadd.f32 %v1515, %v1603
      %v1605 = vpop.f32.mrf.mxu0
      %v1606 = vadd.f32 %v1517, %v1605
      %1607 = vmatmul.bf16.gmra.mxu0 %v1358
      %v1608 = vpop.f32.mrf.mxu0
      %v1609 = vadd.f32 %v1520, %v1608
      %v1610 = vpop.f32.mrf.mxu0
      %v1611 = vadd.f32 %v1522, %v1610
      %1612 = vmatmul.bf16.gmra.mxu0 %v1361
      %v1613 = vpop.f32.mrf.mxu0
      %v1614 = vadd.f32 %v1525, %v1613
      %v1615 = vpop.f32.mrf.mxu0
      %v1616 = vadd.f32 %v1527, %v1615
      %1617 = vmatmul.bf16.gmra.mxu0 %v1364
      %v1618 = vpop.f32.mrf.mxu0
      %v1619 = vadd.f32 %v1530, %v1618
      %v1620 = vpop.f32.mrf.mxu0
      %v1621 = vadd.f32 %v1532, %v1620
      %1622 = vmatmul.bf16.gmra.mxu0 %v1367
      %v1623 = vpop.f32.mrf.mxu0
      %v1624 = vadd.f32 %v1535, %v1623
      %v1625 = vpop.f32.mrf.mxu0
      %v1626 = vadd.f32 %v1537, %v1625
      %1627 = vmatmul.bf16.gmra.mxu0 %v1370
      %v1628 = vpop.f32.mrf.mxu0
      %v1629 = vadd.f32 %v1540, %v1628
      %v1630 = vpop.f32.mrf.mxu0
      %v1631 = vadd.f32 %v1542, %v1630
      %1632 = vmatmul.bf16.gmra.mxu0 %v1373
      %v1633 = vpop.f32.mrf.mxu0
      %v1634 = vadd.f32 %v1545, %v1633
      %v1635 = vpop.f32.mrf.mxu0
      %v1636 = vadd.f32 %v1547, %v1635
      %1637 = vmatmul.bf16.gmra.mxu0 %v1376
      %v1638 = vpop.f32.mrf.mxu0
      %v1639 = vadd.f32 %v1550, %v1638
      %v1640 = vpop.f32.mrf.mxu0
      %v1641 = vadd.f32 %v1552, %v1640
      %1642 = vmatmul.bf16.gmra.mxu0 %v1379
      %v1643 = vpop.f32.mrf.mxu0
      %v1644 = vadd.f32 %v1555, %v1643
      %v1645 = vpop.f32.mrf.mxu0
      %v1646 = vadd.f32 %v1557, %v1645
      %1647 = vdwg.mxu0
      %v1648 = vmax.f32 %v1569, 0.0
      %v1649 = vmax.f32 %v1571, 0.0
      %v1650 = vmax.f32 %v1574, 0.0
      %v1651 = vmax.f32 %v1576, 0.0
      %v1652 = vmax.f32 %v1579, 0.0
      %v1653 = vmax.f32 %v1581, 0.0
      %v1654 = vmax.f32 %v1584, 0.0
      %v1655 = vmax.f32 %v1586, 0.0
      %v1656 = vmax.f32 %v1589, 0.0
      %v1657 = vmax.f32 %v1591, 0.0
      %v1658 = vmax.f32 %v1594, 0.0
      %v1659 = vmax.f32 %v1596, 0.0
      %v1660 = vmax.f32 %v1599, 0.0
      %v1661 = vmax.f32 %v1601, 0.0
      %v1662 = vmax.f32 %v1604, 0.0
      %v1663 = vmax.f32 %v1606, 0.0
      %v1664 = vmax.f32 %v1609, 0.0
      %v1665 = vmax.f32 %v1611, 0.0
      %v1666 = vmax.f32 %v1614, 0.0
      %v1667 = vmax.f32 %v1616, 0.0
      %v1668 = vmax.f32 %v1619, 0.0
      %v1669 = vmax.f32 %v1621, 0.0
      %v1670 = vmax.f32 %v1624, 0.0
      %v1671 = vmax.f32 %v1626, 0.0
      %v1672 = vmax.f32 %v1629, 0.0
      %v1673 = vmax.f32 %v1631, 0.0
      %v1674 = vmax.f32 %v1634, 0.0
      %v1675 = vmax.f32 %v1636, 0.0
      %v1676 = vmax.f32 %v1639, 0.0
      %v1677 = vmax.f32 %v1641, 0.0
      %v1678 = vmax.f32 %v1644, 0.0
      %v1679 = vmax.f32 %v1646, 0.0
      %p1680 = scmp.eq.s32.totalorder %s16, 0
      // Predicated region
      $region41: #{precoding_resnet_forward.5} parent=39 // pred_check
        %p1681 = pneg %p1680
      $region42: #{precoding_resnet_forward.5} parent=39 // pred_check_branch
        %1683 = sbr.rel (%p1681) target = $region44
      $region43: #{precoding_resnet_forward.5} parent=39 // pred_region
        %vm1684 = vcmask 257024
        %1685 = vst.msk [vmem:[#allocation2] sm:$0xf] %vm1684, 0
        %1686 = vst.msk [vmem:[#allocation2 + $0x4] sm:$0xf] %vm1684, 0
        %vm1687 = vcmask 253952
        %1688 = vst.msk [vmem:[#allocation2 + $0x8] sm:$0x1] %vm1687, 0
        %1689 = vst.msk [vmem:[#allocation2 + $0xc] sm:$0xf] %vm1684, 0
        %1690 = vst.msk [vmem:[#allocation2 + $0x10] sm:$0xf] %vm1684, 0
        %1691 = vst.msk [vmem:[#allocation2 + $0x14] sm:$0x1] %vm1687, 0
        %1692 = vst.msk [vmem:[#allocation2 + $0x18] sm:$0xf] %vm1684, 0
        %1693 = vst.msk [vmem:[#allocation2 + $0x1c] sm:$0xf] %vm1684, 0
        %1694 = vst.msk [vmem:[#allocation2 + $0x20] sm:$0x1] %vm1687, 0
        %1695 = vst.msk [vmem:[#allocation2 + $0x24] sm:$0xf] %vm1684, 0
        %1696 = vst.msk [vmem:[#allocation2 + $0x28] sm:$0xf] %vm1684, 0
        %1697 = vst.msk [vmem:[#allocation2 + $0x2c] sm:$0x1] %vm1687, 0
        %1698 = vst.msk [vmem:[#allocation2 + $0x30] sm:$0xf] %vm1684, 0
        %1699 = vst.msk [vmem:[#allocation2 + $0x34] sm:$0xf] %vm1684, 0
        %1700 = vst.msk [vmem:[#allocation2 + $0x38] sm:$0x1] %vm1687, 0
        %1701 = vst.msk [vmem:[#allocation2 + $0x3c] sm:$0xf] %vm1684, 0
        %1702 = vst.msk [vmem:[#allocation2 + $0x40] sm:$0xf] %vm1684, 0
        %1703 = vst.msk [vmem:[#allocation2 + $0x44] sm:$0x1] %vm1687, 0
        %1704 = vst.msk [vmem:[#allocation2 + $0x48] sm:$0xf] %vm1684, 0
        %1705 = vst.msk [vmem:[#allocation2 + $0x4c] sm:$0xf] %vm1684, 0
        %1706 = vst.msk [vmem:[#allocation2 + $0x50] sm:$0x1] %vm1687, 0
        %1707 = vst.msk [vmem:[#allocation2 + $0x54] sm:$0xf] %vm1684, 0
        %1708 = vst.msk [vmem:[#allocation2 + $0x58] sm:$0xf] %vm1684, 0
        %1709 = vst.msk [vmem:[#allocation2 + $0x5c] sm:$0x1] %vm1687, 0
        %1710 = vst.msk [vmem:[#allocation2 + $0x60] sm:$0xf] %vm1684, 0
        %1711 = vst.msk [vmem:[#allocation2 + $0x64] sm:$0xf] %vm1684, 0
        %1712 = vst.msk [vmem:[#allocation2 + $0x68] sm:$0x1] %vm1687, 0
        %1713 = vst.msk [vmem:[#allocation2 + $0x6c] sm:$0xf] %vm1684, 0
        %1714 = vst.msk [vmem:[#allocation2 + $0x70] sm:$0xf] %vm1684, 0
        %1715 = vst.msk [vmem:[#allocation2 + $0x74] sm:$0x1] %vm1687, 0
        %1716 = vst.msk [vmem:[#allocation2 + $0x78] sm:$0xf] %vm1684, 0
        %1717 = vst.msk [vmem:[#allocation2 + $0x7c] sm:$0xf] %vm1684, 0
        %1718 = vst.msk [vmem:[#allocation2 + $0x80] sm:$0x1] %vm1687, 0
        %1719 = vst.msk [vmem:[#allocation2 + $0x84] sm:$0xf] %vm1684, 0
        %1720 = vst.msk [vmem:[#allocation2 + $0x88] sm:$0xf] %vm1684, 0
        %1721 = vst.msk [vmem:[#allocation2 + $0x8c] sm:$0x1] %vm1687, 0
        %1722 = vst.msk [vmem:[#allocation2 + $0x90] sm:$0xf] %vm1684, 0
        %1723 = vst.msk [vmem:[#allocation2 + $0x94] sm:$0xf] %vm1684, 0
        %1724 = vst.msk [vmem:[#allocation2 + $0x98] sm:$0x1] %vm1687, 0
        %1725 = vst.msk [vmem:[#allocation2 + $0x9c] sm:$0xf] %vm1684, 0
        %1726 = vst.msk [vmem:[#allocation2 + $0xa0] sm:$0xf] %vm1684, 0
        %1727 = vst.msk [vmem:[#allocation2 + $0xa4] sm:$0x1] %vm1687, 0
        %1728 = vst.msk [vmem:[#allocation2 + $0xa8] sm:$0xf] %vm1684, 0
        %1729 = vst.msk [vmem:[#allocation2 + $0xac] sm:$0xf] %vm1684, 0
        %1730 = vst.msk [vmem:[#allocation2 + $0xb0] sm:$0x1] %vm1687, 0
        %1731 = vst.msk [vmem:[#allocation2 + $0xb4] sm:$0xf] %vm1684, 0
        %1732 = vst.msk [vmem:[#allocation2 + $0xb8] sm:$0xf] %vm1684, 0
        %1733 = vst.msk [vmem:[#allocation2 + $0xbc] sm:$0x1] %vm1687, 0
        %1734 = vst.msk [vmem:[#allocation2 + $0xc0] sm:$0xf] %vm1684, 0
        %1735 = vst.msk [vmem:[#allocation2 + $0xc4] sm:$0xf] %vm1684, 0
        %1736 = vst.msk [vmem:[#allocation2 + $0xc8] sm:$0x1] %vm1687, 0
        %1737 = vst.msk [vmem:[#allocation2 + $0xcc] sm:$0xf] %vm1684, 0
        %1738 = vst.msk [vmem:[#allocation2 + $0xd0] sm:$0xf] %vm1684, 0
        %1739 = vst.msk [vmem:[#allocation2 + $0xd4] sm:$0x1] %vm1687, 0
      $region44: #{precoding_resnet_forward.5} parent=39 // pred_fallthru
        _
      %v1740 = vpack.c.bf16 %v1648, %v1648
      %v1741 = vpack.c.bf16 %v1649, %v1649
      %v1742 = vpack.c.bf16 %v1650, %v1650
      %v1743 = vpack.c.bf16 %v1651, %v1651
      %v1744 = vpack.c.bf16 %v1652, %v1652
      %v1745 = vpack.c.bf16 %v1653, %v1653
      %v1746 = vpack.c.bf16 %v1654, %v1654
      %v1747 = vpack.c.bf16 %v1655, %v1655
      %v1748 = vpack.c.bf16 %v1656, %v1656
      %v1749 = vpack.c.bf16 %v1657, %v1657
      %v1750 = vpack.c.bf16 %v1658, %v1658
      %v1751 = vpack.c.bf16 %v1659, %v1659
      %v1752 = vpack.c.bf16 %v1660, %v1660
      %v1753 = vpack.c.bf16 %v1661, %v1661
      %v1754 = vpack.c.bf16 %v1662, %v1662
      %v1755 = vpack.c.bf16 %v1663, %v1663
      %v1756 = vpack.c.bf16 %v1664, %v1664
      %v1757 = vpack.c.bf16 %v1665, %v1665
      %v1758 = vpack.c.bf16 %v1666, %v1666
      %v1759 = vpack.c.bf16 %v1667, %v1667
      %v1760 = vpack.c.bf16 %v1668, %v1668
      %v1761 = vpack.c.bf16 %v1669, %v1669
      %v1762 = vpack.c.bf16 %v1670, %v1670
      %v1763 = vpack.c.bf16 %v1671, %v1671
      %v1764 = vpack.c.bf16 %v1672, %v1672
      %v1765 = vpack.c.bf16 %v1673, %v1673
      %v1766 = vpack.c.bf16 %v1674, %v1674
      %v1767 = vpack.c.bf16 %v1675, %v1675
      %v1768 = vpack.c.bf16 %v1676, %v1676
      %v1769 = vpack.c.bf16 %v1677, %v1677
      %v1770 = vpack.c.bf16 %v1678, %v1678
      %v1771 = vpack.c.bf16 %v1679, %v1679
      %vm1772 = vsmask.f32 256
      %vm1773 = vsmask.f32 4368
      %vm1774 = vmor %vm1772, %vm1773
      %v1776 = vshrl.u32 %v1740, 16
      %v1778 = vrot.slane %v1776, 7
      %v1779 = vshll.u32 %v1740, 16
      %v1781 = vor.u32 %v1778, %v1779
      %v1782 = vrot.slane %v1778, 4
      %v1784 = vshrl.u32 %v1741, 16
      %v1786 = vrot.slane %v1784, 7
      %v1787 = vshll.u32 %v1741, 16
      %v1789 = vor.u32 %v1786, %v1787
      %v1790 = vsel %vm1774, %v1782, %v1789
      %v1791 = vrot.slane %v1786, 4
      %v1793 = vshrl.u32 %v1742, 16
      %v1795 = vrot.slane %v1793, 7
      %v1796 = vshll.u32 %v1742, 16
      %v1798 = vor.u32 %v1795, %v1796
      %v1799 = vrot.slane %v1795, 4
      %v1801 = vshrl.u32 %v1743, 16
      %v1803 = vrot.slane %v1801, 7
      %v1804 = vshll.u32 %v1743, 16
      %v1806 = vor.u32 %v1803, %v1804
      %v1807 = vsel %vm1774, %v1799, %v1806
      %v1808 = vrot.slane %v1803, 4
      %v1810 = vshrl.u32 %v1744, 16
      %v1812 = vrot.slane %v1810, 7
      %v1813 = vshll.u32 %v1744, 16
      %v1815 = vor.u32 %v1812, %v1813
      %v1816 = vrot.slane %v1812, 4
      %v1818 = vshrl.u32 %v1745, 16
      %v1820 = vrot.slane %v1818, 7
      %v1821 = vshll.u32 %v1745, 16
      %v1823 = vor.u32 %v1820, %v1821
      %v1824 = vsel %vm1774, %v1816, %v1823
      %v1825 = vrot.slane %v1820, 4
      %v1827 = vshrl.u32 %v1746, 16
      %v1829 = vrot.slane %v1827, 7
      %v1830 = vshll.u32 %v1746, 16
      %v1832 = vor.u32 %v1829, %v1830
      %v1833 = vrot.slane %v1829, 4
      %v1835 = vshrl.u32 %v1747, 16
      %v1837 = vrot.slane %v1835, 7
      %v1838 = vshll.u32 %v1747, 16
      %v1840 = vor.u32 %v1837, %v1838
      %v1841 = vsel %vm1774, %v1833, %v1840
      %v1842 = vrot.slane %v1837, 4
      %v1844 = vshrl.u32 %v1748, 16
      %v1846 = vrot.slane %v1844, 7
      %v1847 = vshll.u32 %v1748, 16
      %v1849 = vor.u32 %v1846, %v1847
      %v1850 = vrot.slane %v1846, 4
      %v1852 = vshrl.u32 %v1749, 16
      %v1854 = vrot.slane %v1852, 7
      %v1855 = vshll.u32 %v1749, 16
      %v1857 = vor.u32 %v1854, %v1855
      %v1858 = vsel %vm1774, %v1850, %v1857
      %v1859 = vrot.slane %v1854, 4
      %v1861 = vshrl.u32 %v1750, 16
      %v1863 = vrot.slane %v1861, 7
      %v1864 = vshll.u32 %v1750, 16
      %v1866 = vor.u32 %v1863, %v1864
      %v1867 = vrot.slane %v1863, 4
      %v1869 = vshrl.u32 %v1751, 16
      %v1871 = vrot.slane %v1869, 7
      %v1872 = vshll.u32 %v1751, 16
      %v1874 = vor.u32 %v1871, %v1872
      %v1875 = vsel %vm1774, %v1867, %v1874
      %v1876 = vrot.slane %v1871, 4
      %v1878 = vshrl.u32 %v1752, 16
      %v1880 = vrot.slane %v1878, 7
      %v1881 = vshll.u32 %v1752, 16
      %v1883 = vor.u32 %v1880, %v1881
      %v1884 = vrot.slane %v1880, 4
      %v1886 = vshrl.u32 %v1753, 16
      %v1888 = vrot.slane %v1886, 7
      %v1889 = vshll.u32 %v1753, 16
      %v1891 = vor.u32 %v1888, %v1889
      %v1892 = vsel %vm1774, %v1884, %v1891
      %v1893 = vrot.slane %v1888, 4
      %v1895 = vshrl.u32 %v1754, 16
      %v1897 = vrot.slane %v1895, 7
      %v1898 = vshll.u32 %v1754, 16
      %v1900 = vor.u32 %v1897, %v1898
      %v1901 = vrot.slane %v1897, 4
      %v1903 = vshrl.u32 %v1755, 16
      %v1905 = vrot.slane %v1903, 7
      %v1906 = vshll.u32 %v1755, 16
      %v1908 = vor.u32 %v1905, %v1906
      %v1909 = vsel %vm1774, %v1901, %v1908
      %v1910 = vrot.slane %v1905, 4
      %v1912 = vshrl.u32 %v1756, 16
      %v1914 = vrot.slane %v1912, 7
      %v1915 = vshll.u32 %v1756, 16
      %v1917 = vor.u32 %v1914, %v1915
      %v1918 = vrot.slane %v1914, 4
      %v1920 = vshrl.u32 %v1757, 16
      %v1922 = vrot.slane %v1920, 7
      %v1923 = vshll.u32 %v1757, 16
      %v1925 = vor.u32 %v1922, %v1923
      %v1926 = vsel %vm1774, %v1918, %v1925
      %v1927 = vrot.slane %v1922, 4
      %v1929 = vshrl.u32 %v1758, 16
      %v1931 = vrot.slane %v1929, 7
      %v1932 = vshll.u32 %v1758, 16
      %v1934 = vor.u32 %v1931, %v1932
      %v1935 = vrot.slane %v1931, 4
      %v1937 = vshrl.u32 %v1759, 16
      %v1939 = vrot.slane %v1937, 7
      %v1940 = vshll.u32 %v1759, 16
      %v1942 = vor.u32 %v1939, %v1940
      %v1943 = vsel %vm1774, %v1935, %v1942
      %v1944 = vrot.slane %v1939, 4
      %v1946 = vshrl.u32 %v1760, 16
      %v1948 = vrot.slane %v1946, 7
      %v1949 = vshll.u32 %v1760, 16
      %v1951 = vor.u32 %v1948, %v1949
      %v1952 = vrot.slane %v1948, 4
      %v1954 = vshrl.u32 %v1761, 16
      %v1956 = vrot.slane %v1954, 7
      %v1957 = vshll.u32 %v1761, 16
      %v1959 = vor.u32 %v1956, %v1957
      %v1960 = vsel %vm1774, %v1952, %v1959
      %v1961 = vrot.slane %v1956, 4
      %v1963 = vshrl.u32 %v1762, 16
      %v1965 = vrot.slane %v1963, 7
      %v1966 = vshll.u32 %v1762, 16
      %v1968 = vor.u32 %v1965, %v1966
      %v1969 = vrot.slane %v1965, 4
      %v1971 = vshrl.u32 %v1763, 16
      %v1973 = vrot.slane %v1971, 7
      %v1974 = vshll.u32 %v1763, 16
      %v1976 = vor.u32 %v1973, %v1974
      %v1977 = vsel %vm1774, %v1969, %v1976
      %v1978 = vrot.slane %v1973, 4
      %v1980 = vshrl.u32 %v1764, 16
      %v1982 = vrot.slane %v1980, 7
      %v1983 = vshll.u32 %v1764, 16
      %v1985 = vor.u32 %v1982, %v1983
      %v1986 = vrot.slane %v1982, 4
      %v1988 = vshrl.u32 %v1765, 16
      %v1990 = vrot.slane %v1988, 7
      %v1991 = vshll.u32 %v1765, 16
      %v1993 = vor.u32 %v1990, %v1991
      %v1994 = vsel %vm1774, %v1986, %v1993
      %v1995 = vrot.slane %v1990, 4
      %v1997 = vshrl.u32 %v1766, 16
      %v1999 = vrot.slane %v1997, 7
      %v2000 = vshll.u32 %v1766, 16
      %v2002 = vor.u32 %v1999, %v2000
      %v2003 = vrot.slane %v1999, 4
      %v2005 = vshrl.u32 %v1767, 16
      %v2007 = vrot.slane %v2005, 7
      %v2008 = vshll.u32 %v1767, 16
      %v2010 = vor.u32 %v2007, %v2008
      %v2011 = vsel %vm1774, %v2003, %v2010
      %v2012 = vrot.slane %v2007, 4
      %v2014 = vshrl.u32 %v1768, 16
      %v2016 = vrot.slane %v2014, 7
      %v2017 = vshll.u32 %v1768, 16
      %v2019 = vor.u32 %v2016, %v2017
      %v2020 = vrot.slane %v2016, 4
      %v2022 = vshrl.u32 %v1769, 16
      %v2024 = vrot.slane %v2022, 7
      %v2025 = vshll.u32 %v1769, 16
      %v2027 = vor.u32 %v2024, %v2025
      %v2028 = vsel %vm1774, %v2020, %v2027
      %v2029 = vrot.slane %v2024, 4
      %v2031 = vshrl.u32 %v1770, 16
      %v2033 = vrot.slane %v2031, 7
      %v2034 = vshll.u32 %v1770, 16
      %v2036 = vor.u32 %v2033, %v2034
      %v2037 = vrot.slane %v2033, 4
      %v2039 = vshrl.u32 %v1771, 16
      %v2041 = vrot.slane %v2039, 7
      %v2042 = vshll.u32 %v1771, 16
      %v2044 = vor.u32 %v2041, %v2042
      %v2045 = vsel %vm1774, %v2037, %v2044
      %v2046 = vrot.slane %v2041, 4
      %s2095 = scalar_lea.vmem [#allocation2], 12
      %vm2096 = vcmask 257024
      %vm2097 = vsmask.f32 7938
      %vm2098 = vmand %vm2096, %vm2097
      %v2099 = vld [vmem:[%s2095] sm:$0xf]
      %v2100 = vsel %vm2098, %v1781, %v2099
      %2101 = vst [vmem:[%s2095] sm:$0xf] %v2100
      %vm2102 = vcmask 257024
      %2103 = vst.msk [vmem:[%s2095 + $0x4] sm:$0xf] %vm2102, %v1790
      %vm2104 = vcmask 253952
      %vm2105 = vmand %vm2104, %vm1772
      %v2106 = vld [vmem:[%s2095 + $0x8] sm:$0x1]
      %v2107 = vsel %vm2105, %v1791, %v2106
      %2108 = vst [vmem:[%s2095 + $0x8] sm:$0x1] %v2107
      %v2109 = vld [vmem:[%s2095 + $0xc] sm:$0xf]
      %v2110 = vsel %vm2098, %v1798, %v2109
      %2111 = vst [vmem:[%s2095 + $0xc] sm:$0xf] %v2110
      %2112 = vst.msk [vmem:[%s2095 + $0x10] sm:$0xf] %vm2102, %v1807
      %v2113 = vld [vmem:[%s2095 + $0x14] sm:$0x1]
      %v2114 = vsel %vm2105, %v1808, %v2113
      %2115 = vst [vmem:[%s2095 + $0x14] sm:$0x1] %v2114
      %v2116 = vld [vmem:[%s2095 + $0x18] sm:$0xf]
      %v2117 = vsel %vm2098, %v1815, %v2116
      %2118 = vst [vmem:[%s2095 + $0x18] sm:$0xf] %v2117
      %2119 = vst.msk [vmem:[%s2095 + $0x1c] sm:$0xf] %vm2102, %v1824
      %v2120 = vld [vmem:[%s2095 + $0x20] sm:$0x1]
      %v2121 = vsel %vm2105, %v1825, %v2120
      %2122 = vst [vmem:[%s2095 + $0x20] sm:$0x1] %v2121
      %v2123 = vld [vmem:[%s2095 + $0x24] sm:$0xf]
      %v2124 = vsel %vm2098, %v1832, %v2123
      %2125 = vst [vmem:[%s2095 + $0x24] sm:$0xf] %v2124
      %2126 = vst.msk [vmem:[%s2095 + $0x28] sm:$0xf] %vm2102, %v1841
      %v2127 = vld [vmem:[%s2095 + $0x2c] sm:$0x1]
      %v2128 = vsel %vm2105, %v1842, %v2127
      %2129 = vst [vmem:[%s2095 + $0x2c] sm:$0x1] %v2128
      %v2130 = vld [vmem:[%s2095 + $0x30] sm:$0xf]
      %v2131 = vsel %vm2098, %v1849, %v2130
      %2132 = vst [vmem:[%s2095 + $0x30] sm:$0xf] %v2131
      %2133 = vst.msk [vmem:[%s2095 + $0x34] sm:$0xf] %vm2102, %v1858
      %v2134 = vld [vmem:[%s2095 + $0x38] sm:$0x1]
      %v2135 = vsel %vm2105, %v1859, %v2134
      %2136 = vst [vmem:[%s2095 + $0x38] sm:$0x1] %v2135
      %v2137 = vld [vmem:[%s2095 + $0x3c] sm:$0xf]
      %v2138 = vsel %vm2098, %v1866, %v2137
      %2139 = vst [vmem:[%s2095 + $0x3c] sm:$0xf] %v2138
      %2140 = vst.msk [vmem:[%s2095 + $0x40] sm:$0xf] %vm2102, %v1875
      %v2141 = vld [vmem:[%s2095 + $0x44] sm:$0x1]
      %v2142 = vsel %vm2105, %v1876, %v2141
      %2143 = vst [vmem:[%s2095 + $0x44] sm:$0x1] %v2142
      %v2144 = vld [vmem:[%s2095 + $0x48] sm:$0xf]
      %v2145 = vsel %vm2098, %v1883, %v2144
      %2146 = vst [vmem:[%s2095 + $0x48] sm:$0xf] %v2145
      %2147 = vst.msk [vmem:[%s2095 + $0x4c] sm:$0xf] %vm2102, %v1892
      %v2148 = vld [vmem:[%s2095 + $0x50] sm:$0x1]
      %v2149 = vsel %vm2105, %v1893, %v2148
      %2150 = vst [vmem:[%s2095 + $0x50] sm:$0x1] %v2149
      %v2151 = vld [vmem:[%s2095 + $0x54] sm:$0xf]
      %v2152 = vsel %vm2098, %v1900, %v2151
      %2153 = vst [vmem:[%s2095 + $0x54] sm:$0xf] %v2152
      %2154 = vst.msk [vmem:[%s2095 + $0x58] sm:$0xf] %vm2102, %v1909
      %v2155 = vld [vmem:[%s2095 + $0x5c] sm:$0x1]
      %v2156 = vsel %vm2105, %v1910, %v2155
      %2157 = vst [vmem:[%s2095 + $0x5c] sm:$0x1] %v2156
      %v2158 = vld [vmem:[%s2095 + $0x60] sm:$0xf]
      %v2159 = vsel %vm2098, %v1917, %v2158
      %2160 = vst [vmem:[%s2095 + $0x60] sm:$0xf] %v2159
      %2161 = vst.msk [vmem:[%s2095 + $0x64] sm:$0xf] %vm2102, %v1926
      %v2162 = vld [vmem:[%s2095 + $0x68] sm:$0x1]
      %v2163 = vsel %vm2105, %v1927, %v2162
      %2164 = vst [vmem:[%s2095 + $0x68] sm:$0x1] %v2163
      %v2165 = vld [vmem:[%s2095 + $0x6c] sm:$0xf]
      %v2166 = vsel %vm2098, %v1934, %v2165
      %2167 = vst [vmem:[%s2095 + $0x6c] sm:$0xf] %v2166
      %2168 = vst.msk [vmem:[%s2095 + $0x70] sm:$0xf] %vm2102, %v1943
      %v2169 = vld [vmem:[%s2095 + $0x74] sm:$0x1]
      %v2170 = vsel %vm2105, %v1944, %v2169
      %2171 = vst [vmem:[%s2095 + $0x74] sm:$0x1] %v2170
      %v2172 = vld [vmem:[%s2095 + $0x78] sm:$0xf]
      %v2173 = vsel %vm2098, %v1951, %v2172
      %2174 = vst [vmem:[%s2095 + $0x78] sm:$0xf] %v2173
      %2175 = vst.msk [vmem:[%s2095 + $0x7c] sm:$0xf] %vm2102, %v1960
      %v2176 = vld [vmem:[%s2095 + $0x80] sm:$0x1]
      %v2177 = vsel %vm2105, %v1961, %v2176
      %2178 = vst [vmem:[%s2095 + $0x80] sm:$0x1] %v2177
      %v2179 = vld [vmem:[%s2095 + $0x84] sm:$0xf]
      %v2180 = vsel %vm2098, %v1968, %v2179
      %2181 = vst [vmem:[%s2095 + $0x84] sm:$0xf] %v2180
      %2182 = vst.msk [vmem:[%s2095 + $0x88] sm:$0xf] %vm2102, %v1977
      %v2183 = vld [vmem:[%s2095 + $0x8c] sm:$0x1]
      %v2184 = vsel %vm2105, %v1978, %v2183
      %2185 = vst [vmem:[%s2095 + $0x8c] sm:$0x1] %v2184
      %v2186 = vld [vmem:[%s2095 + $0x90] sm:$0xf]
      %v2187 = vsel %vm2098, %v1985, %v2186
      %2188 = vst [vmem:[%s2095 + $0x90] sm:$0xf] %v2187
      %2189 = vst.msk [vmem:[%s2095 + $0x94] sm:$0xf] %vm2102, %v1994
      %v2190 = vld [vmem:[%s2095 + $0x98] sm:$0x1]
      %v2191 = vsel %vm2105, %v1995, %v2190
      %2192 = vst [vmem:[%s2095 + $0x98] sm:$0x1] %v2191
      %v2193 = vld [vmem:[%s2095 + $0x9c] sm:$0xf]
      %v2194 = vsel %vm2098, %v2002, %v2193
      %2195 = vst [vmem:[%s2095 + $0x9c] sm:$0xf] %v2194
      %2196 = vst.msk [vmem:[%s2095 + $0xa0] sm:$0xf] %vm2102, %v2011
      %v2197 = vld [vmem:[%s2095 + $0xa4] sm:$0x1]
      %v2198 = vsel %vm2105, %v2012, %v2197
      %2199 = vst [vmem:[%s2095 + $0xa4] sm:$0x1] %v2198
      %v2200 = vld [vmem:[%s2095 + $0xa8] sm:$0xf]
      %v2201 = vsel %vm2098, %v2019, %v2200
      %2202 = vst [vmem:[%s2095 + $0xa8] sm:$0xf] %v2201
      %2203 = vst.msk [vmem:[%s2095 + $0xac] sm:$0xf] %vm2102, %v2028
      %v2204 = vld [vmem:[%s2095 + $0xb0] sm:$0x1]
      %v2205 = vsel %vm2105, %v2029, %v2204
      %2206 = vst [vmem:[%s2095 + $0xb0] sm:$0x1] %v2205
      %v2207 = vld [vmem:[%s2095 + $0xb4] sm:$0xf]
      %v2208 = vsel %vm2098, %v2036, %v2207
      %2209 = vst [vmem:[%s2095 + $0xb4] sm:$0xf] %v2208
      %2210 = vst.msk [vmem:[%s2095 + $0xb8] sm:$0xf] %vm2102, %v2045
      %v2211 = vld [vmem:[%s2095 + $0xbc] sm:$0x1]
      %v2212 = vsel %vm2105, %v2046, %v2211
      %2213 = vst [vmem:[%s2095 + $0xbc] sm:$0x1] %v2212
      %v2214 = vld [vmem:[#allocation2] sm:$0xf]
      %v2215 = vld [vmem:[#allocation2 + $0x4] sm:$0xf]
      %v2216 = vld [vmem:[#allocation2 + $0x8] sm:$0x1]
      %v2217 = vld [vmem:[#allocation2 + $0xc] sm:$0xf]
      %v2218 = vld [vmem:[#allocation2 + $0x10] sm:$0xf]
      %v2219 = vld [vmem:[#allocation2 + $0x14] sm:$0x1]
      %v2220 = vld [vmem:[#allocation2 + $0x18] sm:$0xf]
      %v2221 = vld [vmem:[#allocation2 + $0x1c] sm:$0xf]
      %v2222 = vld [vmem:[#allocation2 + $0x20] sm:$0x1]
      %v2223 = vld [vmem:[#allocation2 + $0x24] sm:$0xf]
      %v2224 = vld [vmem:[#allocation2 + $0x28] sm:$0xf]
      %v2225 = vld [vmem:[#allocation2 + $0x2c] sm:$0x1]
      %v2226 = vld [vmem:[#allocation2 + $0x30] sm:$0xf]
      %v2227 = vld [vmem:[#allocation2 + $0x34] sm:$0xf]
      %v2228 = vld [vmem:[#allocation2 + $0x38] sm:$0x1]
      %v2229 = vld [vmem:[#allocation2 + $0x3c] sm:$0xf]
      %v2230 = vld [vmem:[#allocation2 + $0x40] sm:$0xf]
      %v2231 = vld [vmem:[#allocation2 + $0x44] sm:$0x1]
      %v2232 = vld [vmem:[#allocation2 + $0x48] sm:$0xf]
      %v2233 = vld [vmem:[#allocation2 + $0x4c] sm:$0xf]
      %v2234 = vld [vmem:[#allocation2 + $0x50] sm:$0x1]
      %v2235 = vld [vmem:[#allocation2 + $0x54] sm:$0xf]
      %v2236 = vld [vmem:[#allocation2 + $0x58] sm:$0xf]
      %v2237 = vld [vmem:[#allocation2 + $0x5c] sm:$0x1]
      %v2238 = vld [vmem:[#allocation2 + $0x60] sm:$0xf]
      %v2239 = vld [vmem:[#allocation2 + $0x64] sm:$0xf]
      %v2240 = vld [vmem:[#allocation2 + $0x68] sm:$0x1]
      %v2241 = vld [vmem:[#allocation2 + $0x6c] sm:$0xf]
      %v2242 = vld [vmem:[#allocation2 + $0x70] sm:$0xf]
      %v2243 = vld [vmem:[#allocation2 + $0x74] sm:$0x1]
      %v2244 = vld [vmem:[#allocation2 + $0x78] sm:$0xf]
      %v2245 = vld [vmem:[#allocation2 + $0x7c] sm:$0xf]
      %v2246 = vld [vmem:[#allocation2 + $0x80] sm:$0x1]
      %v2247 = vld [vmem:[#allocation2 + $0x84] sm:$0xf]
      %v2248 = vld [vmem:[#allocation2 + $0x88] sm:$0xf]
      %v2249 = vld [vmem:[#allocation2 + $0x8c] sm:$0x1]
      %v2250 = vld [vmem:[#allocation2 + $0x90] sm:$0xf]
      %v2251 = vld [vmem:[#allocation2 + $0x94] sm:$0xf]
      %v2252 = vld [vmem:[#allocation2 + $0x98] sm:$0x1]
      %v2253 = vld [vmem:[#allocation2 + $0x9c] sm:$0xf]
      %v2254 = vld [vmem:[#allocation2 + $0xa0] sm:$0xf]
      %v2255 = vld [vmem:[#allocation2 + $0xa4] sm:$0x1]
      %v2256 = vld [vmem:[#allocation2 + $0xa8] sm:$0xf]
      %v2257 = vld [vmem:[#allocation2 + $0xac] sm:$0xf]
      %v2258 = vld [vmem:[#allocation2 + $0xb0] sm:$0x1]
      %v2259 = vld [vmem:[#allocation2 + $0xb4] sm:$0xf]
      %v2260 = vld [vmem:[#allocation2 + $0xb8] sm:$0xf]
      %v2261 = vld [vmem:[#allocation2 + $0xbc] sm:$0x1]
      %v2262 = vld [vmem:[#allocation2 + $0xc0] sm:$0xf]
      %v2263 = vld [vmem:[#allocation2 + $0xc4] sm:$0xf]
      %v2264 = vld [vmem:[#allocation2 + $0xc8] sm:$0x1]
      %v2265 = vld [vmem:[#allocation2 + $0xcc] sm:$0xf]
      %v2266 = vld [vmem:[#allocation2 + $0xd0] sm:$0xf]
      %v2267 = vld [vmem:[#allocation2 + $0xd4] sm:$0x1]
      %v2268 = vld [vmem:[%s3] sm:$0xf]
      %v2269 = vld [vmem:[%s3 + $0x4] sm:$0xf]
      %v2270 = vld [vmem:[%s3 + $0x8] sm:$0xf]
      %v2271 = vld [vmem:[%s3 + $0xc] sm:$0xf]
      %v2272 = vld [vmem:[%s3 + $0x10] sm:$0xf]
      %v2273 = vld [vmem:[%s3 + $0x14] sm:$0xf]
      %v2274 = vld [vmem:[%s3 + $0x18] sm:$0xf]
      %v2275 = vld [vmem:[%s3 + $0x1c] sm:$0xf]
      %v2276 = vld [vmem:[%s3 + $0x20] sm:$0xf]
      %v2277 = vld [vmem:[%s3 + $0x24] sm:$0xf]
      %v2278 = vld [vmem:[%s3 + $0x28] sm:$0xf]
      %v2279 = vld [vmem:[%s3 + $0x2c] sm:$0xf]
      %v2280 = vld [vmem:[%s3 + $0x30] sm:$0xf]
      %v2281 = vld [vmem:[%s3 + $0x34] sm:$0xf]
      %v2282 = vld [vmem:[%s3 + $0x38] sm:$0xf]
      %v2283 = vld [vmem:[%s3 + $0x3c] sm:$0xf]
      %v2284 = vld [vmem:[%s3 + $0x40] sm:$0xf]
      %v2285 = vld [vmem:[%s3 + $0x44] sm:$0xf]
      %v2286 = vld [vmem:[%s3 + $0x48] sm:$0xf]
      %v2287 = vld [vmem:[%s3 + $0x4c] sm:$0xf]
      %v2288 = vld [vmem:[%s3 + $0x50] sm:$0xf]
      %v2289 = vld [vmem:[%s3 + $0x54] sm:$0xf]
      %v2290 = vld [vmem:[%s3 + $0x58] sm:$0xf]
      %v2291 = vld [vmem:[%s3 + $0x5c] sm:$0xf]
      %v2292 = vld [vmem:[%s3 + $0x60] sm:$0xf]
      %v2293 = vld [vmem:[%s3 + $0x64] sm:$0xf]
      %v2294 = vld [vmem:[%s3 + $0x68] sm:$0xf]
      %v2295 = vld [vmem:[%s3 + $0x6c] sm:$0xf]
      %v2296 = vld [vmem:[%s3 + $0x70] sm:$0xf]
      %v2297 = vld [vmem:[%s3 + $0x74] sm:$0xf]
      %v2298 = vld [vmem:[%s3 + $0x78] sm:$0xf]
      %v2299 = vld [vmem:[%s3 + $0x7c] sm:$0xf]
      %v2300 = vld [vmem:[%s3 + $0x80] sm:$0xf]
      %v2301 = vld [vmem:[%s3 + $0x84] sm:$0xf]
      %v2302 = vld [vmem:[%s3 + $0x88] sm:$0xf]
      %v2303 = vld [vmem:[%s3 + $0x8c] sm:$0xf]
      %v2304 = vld [vmem:[%s4] sm:$0x1]
      %v2337 = vunpack.c.l.b16 %v2214
      %v2338 = vunpack.c.l.b16 %v2215
      %v2339 = vunpack.c.l.b16 %v2217
      %v2340 = vunpack.c.l.b16 %v2218
      %v2341 = vunpack.c.l.b16 %v2220
      %v2342 = vunpack.c.l.b16 %v2221
      %v2343 = vunpack.c.l.b16 %v2223
      %v2344 = vunpack.c.l.b16 %v2224
      %v2345 = vunpack.c.l.b16 %v2226
      %v2346 = vunpack.c.l.b16 %v2227
      %v2347 = vunpack.c.l.b16 %v2229
      %v2348 = vunpack.c.l.b16 %v2230
      %v2349 = vunpack.c.l.b16 %v2232
      %v2350 = vunpack.c.l.b16 %v2233
      %v2351 = vunpack.c.l.b16 %v2235
      %v2352 = vunpack.c.l.b16 %v2236
      %v2353 = vunpack.c.l.b16 %v2238
      %v2354 = vunpack.c.l.b16 %v2239
      %v2355 = vunpack.c.l.b16 %v2241
      %v2356 = vunpack.c.l.b16 %v2242
      %v2357 = vunpack.c.l.b16 %v2244
      %v2358 = vunpack.c.l.b16 %v2245
      %v2359 = vunpack.c.l.b16 %v2247
      %v2360 = vunpack.c.l.b16 %v2248
      %v2361 = vunpack.c.l.b16 %v2250
      %v2362 = vunpack.c.l.b16 %v2251
      %v2363 = vunpack.c.l.b16 %v2253
      %v2364 = vunpack.c.l.b16 %v2254
      %v2365 = vunpack.c.l.b16 %v2256
      %v2366 = vunpack.c.l.b16 %v2257
      %v2367 = vunpack.c.l.b16 %v2259
      %v2368 = vunpack.c.l.b16 %v2260
      %v2369 = vpack.c.b16 %v2338, %v2337
      %v2370 = vpack.c.b16 %v2340, %v2339
      %v2371 = vpack.c.b16 %v2342, %v2341
      %v2372 = vpack.c.b16 %v2344, %v2343
      %v2373 = vpack.c.b16 %v2346, %v2345
      %v2374 = vpack.c.b16 %v2348, %v2347
      %v2375 = vpack.c.b16 %v2350, %v2349
      %v2376 = vpack.c.b16 %v2352, %v2351
      %v2377 = vpack.c.b16 %v2354, %v2353
      %v2378 = vpack.c.b16 %v2356, %v2355
      %v2379 = vpack.c.b16 %v2358, %v2357
      %v2380 = vpack.c.b16 %v2360, %v2359
      %v2381 = vpack.c.b16 %v2362, %v2361
      %v2382 = vpack.c.b16 %v2364, %v2363
      %v2383 = vpack.c.b16 %v2366, %v2365
      %v2384 = vpack.c.b16 %v2368, %v2367
      %v2401 = vunpack.c.l.b16 %v2216
      %v2402 = vunpack.c.l.b16 %v2219
      %v2403 = vunpack.c.l.b16 %v2222
      %v2404 = vunpack.c.l.b16 %v2225
      %v2405 = vunpack.c.l.b16 %v2228
      %v2406 = vunpack.c.l.b16 %v2231
      %v2407 = vunpack.c.l.b16 %v2234
      %v2408 = vunpack.c.l.b16 %v2237
      %v2409 = vunpack.c.l.b16 %v2240
      %v2410 = vunpack.c.l.b16 %v2243
      %v2411 = vunpack.c.l.b16 %v2246
      %v2412 = vunpack.c.l.b16 %v2249
      %v2413 = vunpack.c.l.b16 %v2252
      %v2414 = vunpack.c.l.b16 %v2255
      %v2415 = vunpack.c.l.b16 %v2258
      %v2416 = vunpack.c.l.b16 %v2261
      %v2417 = vpack.c.b16 %v2401, %v2401
      %v2418 = vpack.c.b16 %v2402, %v2402
      %v2419 = vpack.c.b16 %v2403, %v2403
      %v2420 = vpack.c.b16 %v2404, %v2404
      %v2421 = vpack.c.b16 %v2405, %v2405
      %v2422 = vpack.c.b16 %v2406, %v2406
      %v2423 = vpack.c.b16 %v2407, %v2407
      %v2424 = vpack.c.b16 %v2408, %v2408
      %v2425 = vpack.c.b16 %v2409, %v2409
      %v2426 = vpack.c.b16 %v2410, %v2410
      %v2427 = vpack.c.b16 %v2411, %v2411
      %v2428 = vpack.c.b16 %v2412, %v2412
      %v2429 = vpack.c.b16 %v2413, %v2413
      %v2430 = vpack.c.b16 %v2414, %v2414
      %v2431 = vpack.c.b16 %v2415, %v2415
      %v2432 = vpack.c.b16 %v2416, %v2416
      %v2434 = vshrl.u32 %v2369, 16
      %v2436 = vshll.u32 %v2369, 16
      %v2438 = vrot.slane %v2436, 1
      %v2439 = vor.u32 %v2434, %v2438
      %v2441 = vshll.u32 %v2417, 16
      %v2443 = vrot.slane %v2441, 1
      %v2444 = vsel %vm499, %v2439, %v2443
      %v2446 = vshrl.u32 %v2370, 16
      %v2448 = vshll.u32 %v2370, 16
      %v2450 = vrot.slane %v2448, 1
      %v2451 = vor.u32 %v2446, %v2450
      %v2453 = vshll.u32 %v2418, 16
      %v2455 = vrot.slane %v2453, 1
      %v2456 = vsel %vm499, %v2451, %v2455
      %v2458 = vshrl.u32 %v2371, 16
      %v2460 = vshll.u32 %v2371, 16
      %v2462 = vrot.slane %v2460, 1
      %v2463 = vor.u32 %v2458, %v2462
      %v2465 = vshll.u32 %v2419, 16
      %v2467 = vrot.slane %v2465, 1
      %v2468 = vsel %vm499, %v2463, %v2467
      %v2470 = vshrl.u32 %v2372, 16
      %v2472 = vshll.u32 %v2372, 16
      %v2474 = vrot.slane %v2472, 1
      %v2475 = vor.u32 %v2470, %v2474
      %v2477 = vshll.u32 %v2420, 16
      %v2479 = vrot.slane %v2477, 1
      %v2480 = vsel %vm499, %v2475, %v2479
      %v2482 = vshrl.u32 %v2373, 16
      %v2484 = vshll.u32 %v2373, 16
      %v2486 = vrot.slane %v2484, 1
      %v2487 = vor.u32 %v2482, %v2486
      %v2489 = vshll.u32 %v2421, 16
      %v2491 = vrot.slane %v2489, 1
      %v2492 = vsel %vm499, %v2487, %v2491
      %v2494 = vshrl.u32 %v2374, 16
      %v2496 = vshll.u32 %v2374, 16
      %v2498 = vrot.slane %v2496, 1
      %v2499 = vor.u32 %v2494, %v2498
      %v2501 = vshll.u32 %v2422, 16
      %v2503 = vrot.slane %v2501, 1
      %v2504 = vsel %vm499, %v2499, %v2503
      %v2506 = vshrl.u32 %v2375, 16
      %v2508 = vshll.u32 %v2375, 16
      %v2510 = vrot.slane %v2508, 1
      %v2511 = vor.u32 %v2506, %v2510
      %v2513 = vshll.u32 %v2423, 16
      %v2515 = vrot.slane %v2513, 1
      %v2516 = vsel %vm499, %v2511, %v2515
      %v2518 = vshrl.u32 %v2376, 16
      %v2520 = vshll.u32 %v2376, 16
      %v2522 = vrot.slane %v2520, 1
      %v2523 = vor.u32 %v2518, %v2522
      %v2525 = vshll.u32 %v2424, 16
      %v2527 = vrot.slane %v2525, 1
      %v2528 = vsel %vm499, %v2523, %v2527
      %v2530 = vshrl.u32 %v2377, 16
      %v2532 = vshll.u32 %v2377, 16
      %v2534 = vrot.slane %v2532, 1
      %v2535 = vor.u32 %v2530, %v2534
      %v2537 = vshll.u32 %v2425, 16
      %v2539 = vrot.slane %v2537, 1
      %v2540 = vsel %vm499, %v2535, %v2539
      %v2542 = vshrl.u32 %v2378, 16
      %v2544 = vshll.u32 %v2378, 16
      %v2546 = vrot.slane %v2544, 1
      %v2547 = vor.u32 %v2542, %v2546
      %v2549 = vshll.u32 %v2426, 16
      %v2551 = vrot.slane %v2549, 1
      %v2552 = vsel %vm499, %v2547, %v2551
      %v2554 = vshrl.u32 %v2379, 16
      %v2556 = vshll.u32 %v2379, 16
      %v2558 = vrot.slane %v2556, 1
      %v2559 = vor.u32 %v2554, %v2558
      %v2561 = vshll.u32 %v2427, 16
      %v2563 = vrot.slane %v2561, 1
      %v2564 = vsel %vm499, %v2559, %v2563
      %v2566 = vshrl.u32 %v2380, 16
      %v2568 = vshll.u32 %v2380, 16
      %v2570 = vrot.slane %v2568, 1
      %v2571 = vor.u32 %v2566, %v2570
      %v2573 = vshll.u32 %v2428, 16
      %v2575 = vrot.slane %v2573, 1
      %v2576 = vsel %vm499, %v2571, %v2575
      %v2578 = vshrl.u32 %v2381, 16
      %v2580 = vshll.u32 %v2381, 16
      %v2582 = vrot.slane %v2580, 1
      %v2583 = vor.u32 %v2578, %v2582
      %v2585 = vshll.u32 %v2429, 16
      %v2587 = vrot.slane %v2585, 1
      %v2588 = vsel %vm499, %v2583, %v2587
      %v2590 = vshrl.u32 %v2382, 16
      %v2592 = vshll.u32 %v2382, 16
      %v2594 = vrot.slane %v2592, 1
      %v2595 = vor.u32 %v2590, %v2594
      %v2597 = vshll.u32 %v2430, 16
      %v2599 = vrot.slane %v2597, 1
      %v2600 = vsel %vm499, %v2595, %v2599
      %v2602 = vshrl.u32 %v2383, 16
      %v2604 = vshll.u32 %v2383, 16
      %v2606 = vrot.slane %v2604, 1
      %v2607 = vor.u32 %v2602, %v2606
      %v2609 = vshll.u32 %v2431, 16
      %v2611 = vrot.slane %v2609, 1
      %v2612 = vsel %vm499, %v2607, %v2611
      %v2614 = vshrl.u32 %v2384, 16
      %v2616 = vshll.u32 %v2384, 16
      %v2618 = vrot.slane %v2616, 1
      %v2619 = vor.u32 %v2614, %v2618
      %v2621 = vshll.u32 %v2432, 16
      %v2623 = vrot.slane %v2621, 1
      %v2624 = vsel %vm499, %v2619, %v2623
      %2625 = vrot.lane.b32.xlu0 %v2444, 32
      %v2626 = vpop.permute.xlu0 %2625
      %2627 = vrot.lane.b32.xlu0 %v2456, 32
      %v2628 = vpop.permute.xlu0 %2627
      %2629 = vrot.lane.b32.xlu0 %v2468, 32
      %v2630 = vpop.permute.xlu0 %2629
      %2631 = vrot.lane.b32.xlu0 %v2480, 32
      %v2632 = vpop.permute.xlu0 %2631
      %2633 = vrot.lane.b32.xlu0 %v2492, 32
      %v2634 = vpop.permute.xlu0 %2633
      %2635 = vrot.lane.b32.xlu0 %v2504, 32
      %v2636 = vpop.permute.xlu0 %2635
      %2637 = vrot.lane.b32.xlu0 %v2516, 32
      %v2638 = vpop.permute.xlu0 %2637
      %2639 = vrot.lane.b32.xlu0 %v2528, 32
      %v2640 = vpop.permute.xlu0 %2639
      %2641 = vrot.lane.b32.xlu0 %v2540, 32
      %v2642 = vpop.permute.xlu0 %2641
      %2643 = vrot.lane.b32.xlu0 %v2552, 32
      %v2644 = vpop.permute.xlu0 %2643
      %2645 = vrot.lane.b32.xlu0 %v2564, 32
      %v2646 = vpop.permute.xlu0 %2645
      %2647 = vrot.lane.b32.xlu0 %v2576, 32
      %v2648 = vpop.permute.xlu0 %2647
      %2649 = vrot.lane.b32.xlu0 %v2588, 32
      %v2650 = vpop.permute.xlu0 %2649
      %2651 = vrot.lane.b32.xlu0 %v2600, 32
      %v2652 = vpop.permute.xlu0 %2651
      %2653 = vrot.lane.b32.xlu0 %v2612, 32
      %v2654 = vpop.permute.xlu0 %2653
      %2655 = vrot.lane.b32.xlu0 %v2624, 32
      %v2656 = vpop.permute.xlu0 %2655
      %v2657 = vrot.slane %v2369, 1
      %v2658 = vrot.slane %v2417, 1
      %v2659 = vsel %vm724, %v2657, %v2658
      %v2660 = vrot.slane %v2370, 1
      %v2661 = vrot.slane %v2418, 1
      %v2662 = vsel %vm724, %v2660, %v2661
      %v2663 = vrot.slane %v2371, 1
      %v2664 = vrot.slane %v2419, 1
      %v2665 = vsel %vm724, %v2663, %v2664
      %v2666 = vrot.slane %v2372, 1
      %v2667 = vrot.slane %v2420, 1
      %v2668 = vsel %vm724, %v2666, %v2667
      %v2669 = vrot.slane %v2373, 1
      %v2670 = vrot.slane %v2421, 1
      %v2671 = vsel %vm724, %v2669, %v2670
      %v2672 = vrot.slane %v2374, 1
      %v2673 = vrot.slane %v2422, 1
      %v2674 = vsel %vm724, %v2672, %v2673
      %v2675 = vrot.slane %v2375, 1
      %v2676 = vrot.slane %v2423, 1
      %v2677 = vsel %vm724, %v2675, %v2676
      %v2678 = vrot.slane %v2376, 1
      %v2679 = vrot.slane %v2424, 1
      %v2680 = vsel %vm724, %v2678, %v2679
      %v2681 = vrot.slane %v2377, 1
      %v2682 = vrot.slane %v2425, 1
      %v2683 = vsel %vm724, %v2681, %v2682
      %v2684 = vrot.slane %v2378, 1
      %v2685 = vrot.slane %v2426, 1
      %v2686 = vsel %vm724, %v2684, %v2685
      %v2687 = vrot.slane %v2379, 1
      %v2688 = vrot.slane %v2427, 1
      %v2689 = vsel %vm724, %v2687, %v2688
      %v2690 = vrot.slane %v2380, 1
      %v2691 = vrot.slane %v2428, 1
      %v2692 = vsel %vm724, %v2690, %v2691
      %v2693 = vrot.slane %v2381, 1
      %v2694 = vrot.slane %v2429, 1
      %v2695 = vsel %vm724, %v2693, %v2694
      %v2696 = vrot.slane %v2382, 1
      %v2697 = vrot.slane %v2430, 1
      %v2698 = vsel %vm724, %v2696, %v2697
      %v2699 = vrot.slane %v2383, 1
      %v2700 = vrot.slane %v2431, 1
      %v2701 = vsel %vm724, %v2699, %v2700
      %v2702 = vrot.slane %v2384, 1
      %v2703 = vrot.slane %v2432, 1
      %v2704 = vsel %vm724, %v2702, %v2703
      %2705 = vrot.lane.b32.xlu0 %v2659, 64
      %v2706 = vpop.permute.xlu0 %2705
      %2707 = vrot.lane.b32.xlu0 %v2662, 64
      %v2708 = vpop.permute.xlu0 %2707
      %2709 = vrot.lane.b32.xlu0 %v2665, 64
      %v2710 = vpop.permute.xlu0 %2709
      %2711 = vrot.lane.b32.xlu0 %v2668, 64
      %v2712 = vpop.permute.xlu0 %2711
      %2713 = vrot.lane.b32.xlu0 %v2671, 64
      %v2714 = vpop.permute.xlu0 %2713
      %2715 = vrot.lane.b32.xlu0 %v2674, 64
      %v2716 = vpop.permute.xlu0 %2715
      %2717 = vrot.lane.b32.xlu0 %v2677, 64
      %v2718 = vpop.permute.xlu0 %2717
      %2719 = vrot.lane.b32.xlu0 %v2680, 64
      %v2720 = vpop.permute.xlu0 %2719
      %2721 = vrot.lane.b32.xlu0 %v2683, 64
      %v2722 = vpop.permute.xlu0 %2721
      %2723 = vrot.lane.b32.xlu0 %v2686, 64
      %v2724 = vpop.permute.xlu0 %2723
      %2725 = vrot.lane.b32.xlu0 %v2689, 64
      %v2726 = vpop.permute.xlu0 %2725
      %2727 = vrot.lane.b32.xlu0 %v2692, 64
      %v2728 = vpop.permute.xlu0 %2727
      %2729 = vrot.lane.b32.xlu0 %v2695, 64
      %v2730 = vpop.permute.xlu0 %2729
      %2731 = vrot.lane.b32.xlu0 %v2698, 64
      %v2732 = vpop.permute.xlu0 %2731
      %2733 = vrot.lane.b32.xlu0 %v2701, 64
      %v2734 = vpop.permute.xlu0 %2733
      %2735 = vrot.lane.b32.xlu0 %v2704, 64
      %v2736 = vpop.permute.xlu0 %2735
      %v2739 = vunpack.c.l.b16 %v2262
      %v2740 = vunpack.c.l.b16 %v2263
      %v2741 = vpack.c.b16 %v2740, %v2739
      %2742 = vrot.lane.b32.xlu0 %v2370, 96
      %v2743 = vpop.permute.xlu0 %2742
      %2744 = vrot.lane.b32.xlu0 %v2371, 96
      %v2745 = vpop.permute.xlu0 %2744
      %2746 = vrot.lane.b32.xlu0 %v2372, 96
      %v2747 = vpop.permute.xlu0 %2746
      %2748 = vrot.lane.b32.xlu0 %v2373, 96
      %v2749 = vpop.permute.xlu0 %2748
      %2750 = vrot.lane.b32.xlu0 %v2374, 96
      %v2751 = vpop.permute.xlu0 %2750
      %2752 = vrot.lane.b32.xlu0 %v2375, 96
      %v2753 = vpop.permute.xlu0 %2752
      %2754 = vrot.lane.b32.xlu0 %v2376, 96
      %v2755 = vpop.permute.xlu0 %2754
      %2756 = vrot.lane.b32.xlu0 %v2377, 96
      %v2757 = vpop.permute.xlu0 %2756
      %2758 = vrot.lane.b32.xlu0 %v2378, 96
      %v2759 = vpop.permute.xlu0 %2758
      %2760 = vrot.lane.b32.xlu0 %v2379, 96
      %v2761 = vpop.permute.xlu0 %2760
      %2762 = vrot.lane.b32.xlu0 %v2380, 96
      %v2763 = vpop.permute.xlu0 %2762
      %2764 = vrot.lane.b32.xlu0 %v2381, 96
      %v2765 = vpop.permute.xlu0 %2764
      %2766 = vrot.lane.b32.xlu0 %v2382, 96
      %v2767 = vpop.permute.xlu0 %2766
      %2768 = vrot.lane.b32.xlu0 %v2383, 96
      %v2769 = vpop.permute.xlu0 %2768
      %2770 = vrot.lane.b32.xlu0 %v2384, 96
      %v2771 = vpop.permute.xlu0 %2770
      %2772 = vrot.lane.b32.xlu0 %v2741, 96
      %v2773 = vpop.permute.xlu0 %2772
      %v2775 = vunpack.c.l.b16 %v2264
      %v2776 = vpack.c.b16 %v2775, %v2775
      %v2778 = vshrl.u32 %v2741, 16
      %v2780 = vshll.u32 %v2741, 16
      %v2782 = vrot.slane %v2780, 1
      %v2783 = vor.u32 %v2778, %v2782
      %v2785 = vshll.u32 %v2776, 16
      %v2787 = vrot.slane %v2785, 1
      %v2788 = vsel %vm499, %v2783, %v2787
      %v2789 = vrot.slane %v2741, 1
      %v2790 = vrot.slane %v2776, 1
      %v2791 = vsel %vm724, %v2789, %v2790
      %2792 = vrot.lane.b32.xlu0 %v2662, 32
      %v2793 = vpop.permute.xlu0 %2792
      %2794 = vrot.lane.b32.xlu0 %v2665, 32
      %v2795 = vpop.permute.xlu0 %2794
      %2796 = vrot.lane.b32.xlu0 %v2668, 32
      %v2797 = vpop.permute.xlu0 %2796
      %2798 = vrot.lane.b32.xlu0 %v2671, 32
      %v2799 = vpop.permute.xlu0 %2798
      %2800 = vrot.lane.b32.xlu0 %v2674, 32
      %v2801 = vpop.permute.xlu0 %2800
      %2802 = vrot.lane.b32.xlu0 %v2677, 32
      %v2803 = vpop.permute.xlu0 %2802
      %2804 = vrot.lane.b32.xlu0 %v2680, 32
      %v2805 = vpop.permute.xlu0 %2804
      %2806 = vrot.lane.b32.xlu0 %v2683, 32
      %v2807 = vpop.permute.xlu0 %2806
      %2808 = vrot.lane.b32.xlu0 %v2686, 32
      %v2809 = vpop.permute.xlu0 %2808
      %2810 = vrot.lane.b32.xlu0 %v2689, 32
      %v2811 = vpop.permute.xlu0 %2810
      %2812 = vrot.lane.b32.xlu0 %v2692, 32
      %v2813 = vpop.permute.xlu0 %2812
      %2814 = vrot.lane.b32.xlu0 %v2695, 32
      %v2815 = vpop.permute.xlu0 %2814
      %2816 = vrot.lane.b32.xlu0 %v2698, 32
      %v2817 = vpop.permute.xlu0 %2816
      %2818 = vrot.lane.b32.xlu0 %v2701, 32
      %v2819 = vpop.permute.xlu0 %2818
      %2820 = vrot.lane.b32.xlu0 %v2704, 32
      %v2821 = vpop.permute.xlu0 %2820
      %2822 = vrot.lane.b32.xlu0 %v2791, 32
      %v2823 = vpop.permute.xlu0 %2822
      %v2826 = vunpack.c.l.b16 %v2265
      %v2827 = vunpack.c.l.b16 %v2266
      %v2828 = vpack.c.b16 %v2827, %v2826
      %2829 = vrot.lane.b32.xlu0 %v2371, 64
      %v2830 = vpop.permute.xlu0 %2829
      %2831 = vrot.lane.b32.xlu0 %v2372, 64
      %v2832 = vpop.permute.xlu0 %2831
      %2833 = vrot.lane.b32.xlu0 %v2373, 64
      %v2834 = vpop.permute.xlu0 %2833
      %2835 = vrot.lane.b32.xlu0 %v2374, 64
      %v2836 = vpop.permute.xlu0 %2835
      %2837 = vrot.lane.b32.xlu0 %v2375, 64
      %v2838 = vpop.permute.xlu0 %2837
      %2839 = vrot.lane.b32.xlu0 %v2376, 64
      %v2840 = vpop.permute.xlu0 %2839
      %2841 = vrot.lane.b32.xlu0 %v2377, 64
      %v2842 = vpop.permute.xlu0 %2841
      %2843 = vrot.lane.b32.xlu0 %v2378, 64
      %v2844 = vpop.permute.xlu0 %2843
      %2845 = vrot.lane.b32.xlu0 %v2379, 64
      %v2846 = vpop.permute.xlu0 %2845
      %2847 = vrot.lane.b32.xlu0 %v2380, 64
      %v2848 = vpop.permute.xlu0 %2847
      %2849 = vrot.lane.b32.xlu0 %v2381, 64
      %v2850 = vpop.permute.xlu0 %2849
      %2851 = vrot.lane.b32.xlu0 %v2382, 64
      %v2852 = vpop.permute.xlu0 %2851
      %2853 = vrot.lane.b32.xlu0 %v2383, 64
      %v2854 = vpop.permute.xlu0 %2853
      %2855 = vrot.lane.b32.xlu0 %v2384, 64
      %v2856 = vpop.permute.xlu0 %2855
      %2857 = vrot.lane.b32.xlu0 %v2741, 64
      %v2858 = vpop.permute.xlu0 %2857
      %2859 = vrot.lane.b32.xlu0 %v2828, 64
      %v2860 = vpop.permute.xlu0 %2859
      %v2862 = vunpack.c.l.b16 %v2267
      %v2863 = vpack.c.b16 %v2862, %v2862
      %v2865 = vshrl.u32 %v2828, 16
      %v2867 = vshll.u32 %v2828, 16
      %v2869 = vrot.slane %v2867, 1
      %v2870 = vor.u32 %v2865, %v2869
      %v2872 = vshll.u32 %v2863, 16
      %v2874 = vrot.slane %v2872, 1
      %v2875 = vsel %vm499, %v2870, %v2874
      %2876 = vrot.lane.b32.xlu0 %v2468, 96
      %v2877 = vpop.permute.xlu0 %2876
      %2878 = vrot.lane.b32.xlu0 %v2480, 96
      %v2879 = vpop.permute.xlu0 %2878
      %2880 = vrot.lane.b32.xlu0 %v2492, 96
      %v2881 = vpop.permute.xlu0 %2880
      %2882 = vrot.lane.b32.xlu0 %v2504, 96
      %v2883 = vpop.permute.xlu0 %2882
      %2884 = vrot.lane.b32.xlu0 %v2516, 96
      %v2885 = vpop.permute.xlu0 %2884
      %2886 = vrot.lane.b32.xlu0 %v2528, 96
      %v2887 = vpop.permute.xlu0 %2886
      %2888 = vrot.lane.b32.xlu0 %v2540, 96
      %v2889 = vpop.permute.xlu0 %2888
      %2890 = vrot.lane.b32.xlu0 %v2552, 96
      %v2891 = vpop.permute.xlu0 %2890
      %2892 = vrot.lane.b32.xlu0 %v2564, 96
      %v2893 = vpop.permute.xlu0 %2892
      %2894 = vrot.lane.b32.xlu0 %v2576, 96
      %v2895 = vpop.permute.xlu0 %2894
      %2896 = vrot.lane.b32.xlu0 %v2588, 96
      %v2897 = vpop.permute.xlu0 %2896
      %2898 = vrot.lane.b32.xlu0 %v2600, 96
      %v2899 = vpop.permute.xlu0 %2898
      %2900 = vrot.lane.b32.xlu0 %v2612, 96
      %v2901 = vpop.permute.xlu0 %2900
      %2902 = vrot.lane.b32.xlu0 %v2624, 96
      %v2903 = vpop.permute.xlu0 %2902
      %2904 = vrot.lane.b32.xlu0 %v2788, 96
      %v2905 = vpop.permute.xlu0 %2904
      %2906 = vrot.lane.b32.xlu0 %v2875, 96
      %v2907 = vpop.permute.xlu0 %2906
      %v2908 = vrot.slane %v2828, 1
      %v2909 = vrot.slane %v2863, 1
      %v2910 = vsel %vm724, %v2908, %v2909
      %v2912 = vsel %vm979, %v2369, %v2626
      %v2914 = vsel %vm979, %v2370, %v2628
      %v2916 = vsel %vm979, %v2371, %v2630
      %v2918 = vsel %vm979, %v2372, %v2632
      %v2920 = vsel %vm979, %v2373, %v2634
      %v2922 = vsel %vm979, %v2374, %v2636
      %v2924 = vsel %vm979, %v2375, %v2638
      %v2926 = vsel %vm979, %v2376, %v2640
      %v2928 = vsel %vm979, %v2377, %v2642
      %v2930 = vsel %vm979, %v2378, %v2644
      %v2932 = vsel %vm979, %v2379, %v2646
      %v2934 = vsel %vm979, %v2380, %v2648
      %v2936 = vsel %vm979, %v2381, %v2650
      %v2938 = vsel %vm979, %v2382, %v2652
      %v2940 = vsel %vm979, %v2383, %v2654
      %v2942 = vsel %vm979, %v2384, %v2656
      %v2944 = vsel %vm1012, %v2912, %v2706
      %v2946 = vsel %vm1012, %v2914, %v2708
      %v2948 = vsel %vm1012, %v2916, %v2710
      %v2950 = vsel %vm1012, %v2918, %v2712
      %v2952 = vsel %vm1012, %v2920, %v2714
      %v2954 = vsel %vm1012, %v2922, %v2716
      %v2956 = vsel %vm1012, %v2924, %v2718
      %v2958 = vsel %vm1012, %v2926, %v2720
      %v2960 = vsel %vm1012, %v2928, %v2722
      %v2962 = vsel %vm1012, %v2930, %v2724
      %v2964 = vsel %vm1012, %v2932, %v2726
      %v2966 = vsel %vm1012, %v2934, %v2728
      %v2968 = vsel %vm1012, %v2936, %v2730
      %v2970 = vsel %vm1012, %v2938, %v2732
      %v2972 = vsel %vm1012, %v2940, %v2734
      %v2974 = vsel %vm1012, %v2942, %v2736
      %v2976 = vsel %vm1045, %v2944, %v2743
      %v2979 = vsel %vm1045, %v2946, %v2745
      %v2982 = vsel %vm1045, %v2948, %v2747
      %v2985 = vsel %vm1045, %v2950, %v2749
      %v2988 = vsel %vm1045, %v2952, %v2751
      %v2991 = vsel %vm1045, %v2954, %v2753
      %v2994 = vsel %vm1045, %v2956, %v2755
      %v2997 = vsel %vm1045, %v2958, %v2757
      %v3000 = vsel %vm1045, %v2960, %v2759
      %v3003 = vsel %vm1045, %v2962, %v2761
      %v3006 = vsel %vm1045, %v2964, %v2763
      %v3009 = vsel %vm1045, %v2966, %v2765
      %v3012 = vsel %vm1045, %v2968, %v2767
      %v3015 = vsel %vm1045, %v2970, %v2769
      %v3018 = vsel %vm1045, %v2972, %v2771
      %v3021 = vsel %vm1045, %v2974, %v2773
      %v3025 = vsel %vm979, %v2456, %v2793
      %v3028 = vsel %vm979, %v2468, %v2795
      %v3031 = vsel %vm979, %v2480, %v2797
      %v3034 = vsel %vm979, %v2492, %v2799
      %v3037 = vsel %vm979, %v2504, %v2801
      %v3040 = vsel %vm979, %v2516, %v2803
      %v3043 = vsel %vm979, %v2528, %v2805
      %v3046 = vsel %vm979, %v2540, %v2807
      %v3049 = vsel %vm979, %v2552, %v2809
      %v3052 = vsel %vm979, %v2564, %v2811
      %v3055 = vsel %vm979, %v2576, %v2813
      %v3058 = vsel %vm979, %v2588, %v2815
      %v3061 = vsel %vm979, %v2600, %v2817
      %v3064 = vsel %vm979, %v2612, %v2819
      %v3067 = vsel %vm979, %v2624, %v2821
      %v3070 = vsel %vm979, %v2788, %v2823
      %v3072 = vsel %vm1012, %v3025, %v2830
      %v3074 = vsel %vm1012, %v3028, %v2832
      %v3076 = vsel %vm1012, %v3031, %v2834
      %v3078 = vsel %vm1012, %v3034, %v2836
      %v3080 = vsel %vm1012, %v3037, %v2838
      %v3082 = vsel %vm1012, %v3040, %v2840
      %v3084 = vsel %vm1012, %v3043, %v2842
      %v3086 = vsel %vm1012, %v3046, %v2844
      %v3088 = vsel %vm1012, %v3049, %v2846
      %v3090 = vsel %vm1012, %v3052, %v2848
      %v3092 = vsel %vm1012, %v3055, %v2850
      %v3094 = vsel %vm1012, %v3058, %v2852
      %v3096 = vsel %vm1012, %v3061, %v2854
      %v3098 = vsel %vm1012, %v3064, %v2856
      %v3100 = vsel %vm1012, %v3067, %v2858
      %v3102 = vsel %vm1012, %v3070, %v2860
      %v3104 = vsel %vm1045, %v3072, %v2877
      %v3107 = vsel %vm1045, %v3074, %v2879
      %v3110 = vsel %vm1045, %v3076, %v2881
      %v3113 = vsel %vm1045, %v3078, %v2883
      %v3116 = vsel %vm1045, %v3080, %v2885
      %v3119 = vsel %vm1045, %v3082, %v2887
      %v3122 = vsel %vm1045, %v3084, %v2889
      %v3125 = vsel %vm1045, %v3086, %v2891
      %v3128 = vsel %vm1045, %v3088, %v2893
      %v3131 = vsel %vm1045, %v3090, %v2895
      %v3134 = vsel %vm1045, %v3092, %v2897
      %v3137 = vsel %vm1045, %v3094, %v2899
      %v3140 = vsel %vm1045, %v3096, %v2901
      %v3143 = vsel %vm1045, %v3098, %v2903
      %v3146 = vsel %vm1045, %v3100, %v2905
      %v3149 = vsel %vm1045, %v3102, %v2907
      %v3152 = vperm.slane %v2304, 0
      %v3190 = vunpack.c.l.b16 %v2268
      %v3191 = vunpack.c.l.b16 %v2269
      %v3192 = vunpack.c.l.b16 %v2270
      %v3193 = vunpack.c.l.b16 %v2271
      %v3194 = vunpack.c.l.b16 %v2272
      %v3195 = vunpack.c.l.b16 %v2273
      %v3196 = vunpack.c.l.b16 %v2274
      %v3197 = vunpack.c.l.b16 %v2275
      %v3198 = vunpack.c.l.b16 %v2276
      %v3199 = vunpack.c.l.b16 %v2277
      %v3200 = vunpack.c.l.b16 %v2278
      %v3201 = vunpack.c.l.b16 %v2279
      %v3202 = vunpack.c.l.b16 %v2280
      %v3203 = vunpack.c.l.b16 %v2281
      %v3204 = vunpack.c.l.b16 %v2282
      %v3205 = vunpack.c.l.b16 %v2283
      %v3206 = vunpack.c.l.b16 %v2284
      %v3207 = vunpack.c.l.b16 %v2285
      %v3208 = vunpack.c.l.b16 %v2286
      %v3209 = vunpack.c.l.b16 %v2287
      %v3210 = vunpack.c.l.b16 %v2288
      %v3211 = vunpack.c.l.b16 %v2289
      %v3212 = vunpack.c.l.b16 %v2290
      %v3213 = vunpack.c.l.b16 %v2291
      %v3214 = vunpack.c.l.b16 %v2292
      %v3215 = vunpack.c.l.b16 %v2293
      %v3216 = vunpack.c.l.b16 %v2294
      %v3217 = vunpack.c.l.b16 %v2295
      %v3218 = vunpack.c.l.b16 %v2296
      %v3219 = vunpack.c.l.b16 %v2297
      %v3220 = vunpack.c.l.b16 %v2298
      %v3221 = vunpack.c.l.b16 %v2299
      %v3222 = vunpack.c.l.b16 %v2300
      %v3223 = vunpack.c.l.b16 %v2301
      %v3224 = vunpack.c.l.b16 %v2302
      %v3225 = vunpack.c.l.b16 %v2303
      %v3226 = vpack.c.b16 %v3191, %v3190
      %v3227 = vpack.c.b16 %v3193, %v3192
      %v3228 = vpack.c.b16 %v3195, %v3194
      %v3229 = vpack.c.b16 %v3197, %v3196
      %v3230 = vpack.c.b16 %v3199, %v3198
      %v3231 = vpack.c.b16 %v3201, %v3200
      %v3232 = vpack.c.b16 %v3203, %v3202
      %v3233 = vpack.c.b16 %v3205, %v3204
      %v3234 = vpack.c.b16 %v3207, %v3206
      %v3235 = vpack.c.b16 %v3209, %v3208
      %v3236 = vpack.c.b16 %v3211, %v3210
      %v3237 = vpack.c.b16 %v3213, %v3212
      %v3238 = vpack.c.b16 %v3215, %v3214
      %v3239 = vpack.c.b16 %v3217, %v3216
      %v3240 = vpack.c.b16 %v3219, %v3218
      %v3241 = vpack.c.b16 %v3221, %v3220
      %v3242 = vpack.c.b16 %v3223, %v3222
      %v3243 = vpack.c.b16 %v3225, %v3224
      %v3263 = vsel %vm979, %v2665, 0
      %v3266 = vsel %vm979, %v2668, 0
      %v3269 = vsel %vm979, %v2671, 0
      %v3272 = vsel %vm979, %v2674, 0
      %v3275 = vsel %vm979, %v2677, 0
      %v3278 = vsel %vm979, %v2680, 0
      %v3281 = vsel %vm979, %v2683, 0
      %v3284 = vsel %vm979, %v2686, 0
      %v3287 = vsel %vm979, %v2689, 0
      %v3290 = vsel %vm979, %v2692, 0
      %v3293 = vsel %vm979, %v2695, 0
      %v3296 = vsel %vm979, %v2698, 0
      %v3299 = vsel %vm979, %v2701, 0
      %v3302 = vsel %vm979, %v2704, 0
      %v3305 = vsel %vm979, %v2791, 0
      %v3308 = vsel %vm979, %v2910, 0
      %3310 = vmatpush.bf16.msra.mxu0 %v3233
      %3311 = vmatpush.bf16.msra.mxu0 %v3232
      %3312 = vmatpush.bf16.msra.mxu0 %v3231
      %3313 = vmatpush.bf16.msra.mxu0 %v3230
      %3314 = vmatpush.bf16.msra.mxu0 %v3229
      %3315 = vmatpush.bf16.msra.mxu0 %v3228
      %3316 = vmatpush.bf16.msra.mxu0 %v3227
      %3317 = vmatpush.bf16.msra.mxu0 %v3226
      %3318 = vmatmul.bf16.gmra.mxu0 %v2976
      %v3319 = vpop.f32.mrf.mxu0
      %v3320 = vadd.f32 %v3152, %v3319
      %v3321 = vpop.f32.mrf.mxu0
      %v3322 = vadd.f32 %v3152, %v3321
      %3323 = vmatmul.bf16.gmra.mxu0 %v2979
      %v3324 = vpop.f32.mrf.mxu0
      %v3325 = vadd.f32 %v3152, %v3324
      %v3326 = vpop.f32.mrf.mxu0
      %v3327 = vadd.f32 %v3152, %v3326
      %3328 = vmatmul.bf16.gmra.mxu0 %v2982
      %v3329 = vpop.f32.mrf.mxu0
      %v3330 = vadd.f32 %v3152, %v3329
      %v3331 = vpop.f32.mrf.mxu0
      %v3332 = vadd.f32 %v3152, %v3331
      %3333 = vmatmul.bf16.gmra.mxu0 %v2985
      %v3334 = vpop.f32.mrf.mxu0
      %v3335 = vadd.f32 %v3152, %v3334
      %v3336 = vpop.f32.mrf.mxu0
      %v3337 = vadd.f32 %v3152, %v3336
      %3338 = vmatmul.bf16.gmra.mxu0 %v2988
      %v3339 = vpop.f32.mrf.mxu0
      %v3340 = vadd.f32 %v3152, %v3339
      %v3341 = vpop.f32.mrf.mxu0
      %v3342 = vadd.f32 %v3152, %v3341
      %3343 = vmatmul.bf16.gmra.mxu0 %v2991
      %v3344 = vpop.f32.mrf.mxu0
      %v3345 = vadd.f32 %v3152, %v3344
      %v3346 = vpop.f32.mrf.mxu0
      %v3347 = vadd.f32 %v3152, %v3346
      %3348 = vmatmul.bf16.gmra.mxu0 %v2994
      %v3349 = vpop.f32.mrf.mxu0
      %v3350 = vadd.f32 %v3152, %v3349
      %v3351 = vpop.f32.mrf.mxu0
      %v3352 = vadd.f32 %v3152, %v3351
      %3353 = vmatmul.bf16.gmra.mxu0 %v2997
      %v3354 = vpop.f32.mrf.mxu0
      %v3355 = vadd.f32 %v3152, %v3354
      %v3356 = vpop.f32.mrf.mxu0
      %v3357 = vadd.f32 %v3152, %v3356
      %3358 = vmatmul.bf16.gmra.mxu0 %v3000
      %v3359 = vpop.f32.mrf.mxu0
      %v3360 = vadd.f32 %v3152, %v3359
      %v3361 = vpop.f32.mrf.mxu0
      %v3362 = vadd.f32 %v3152, %v3361
      %3363 = vmatmul.bf16.gmra.mxu0 %v3003
      %v3364 = vpop.f32.mrf.mxu0
      %v3365 = vadd.f32 %v3152, %v3364
      %v3366 = vpop.f32.mrf.mxu0
      %v3367 = vadd.f32 %v3152, %v3366
      %3368 = vmatmul.bf16.gmra.mxu0 %v3006
      %v3369 = vpop.f32.mrf.mxu0
      %v3370 = vadd.f32 %v3152, %v3369
      %v3371 = vpop.f32.mrf.mxu0
      %v3372 = vadd.f32 %v3152, %v3371
      %3373 = vmatmul.bf16.gmra.mxu0 %v3009
      %v3374 = vpop.f32.mrf.mxu0
      %v3375 = vadd.f32 %v3152, %v3374
      %v3376 = vpop.f32.mrf.mxu0
      %v3377 = vadd.f32 %v3152, %v3376
      %3378 = vmatmul.bf16.gmra.mxu0 %v3012
      %v3379 = vpop.f32.mrf.mxu0
      %v3380 = vadd.f32 %v3152, %v3379
      %v3381 = vpop.f32.mrf.mxu0
      %v3382 = vadd.f32 %v3152, %v3381
      %3383 = vmatmul.bf16.gmra.mxu0 %v3015
      %v3384 = vpop.f32.mrf.mxu0
      %v3385 = vadd.f32 %v3152, %v3384
      %v3386 = vpop.f32.mrf.mxu0
      %v3387 = vadd.f32 %v3152, %v3386
      %3388 = vmatmul.bf16.gmra.mxu0 %v3018
      %v3389 = vpop.f32.mrf.mxu0
      %v3390 = vadd.f32 %v3152, %v3389
      %v3391 = vpop.f32.mrf.mxu0
      %v3392 = vadd.f32 %v3152, %v3391
      %3393 = vmatmul.bf16.gmra.mxu0 %v3021
      %v3394 = vpop.f32.mrf.mxu0
      %v3395 = vadd.f32 %v3152, %v3394
      %v3396 = vpop.f32.mrf.mxu0
      %v3397 = vadd.f32 %v3152, %v3396
      %3398 = vdwg.mxu0
      %3399 = vmatpush.bf16.msra.mxu0 %v3241
      %3400 = vmatpush.bf16.msra.mxu0 %v3240
      %3401 = vmatpush.bf16.msra.mxu0 %v3239
      %3402 = vmatpush.bf16.msra.mxu0 %v3238
      %3403 = vmatpush.bf16.msra.mxu0 %v3237
      %3404 = vmatpush.bf16.msra.mxu0 %v3236
      %3405 = vmatpush.bf16.msra.mxu0 %v3235
      %3406 = vmatpush.bf16.msra.mxu0 %v3234
      %3407 = vmatmul.bf16.gmra.mxu0 %v3104
      %v3408 = vpop.f32.mrf.mxu0
      %v3409 = vadd.f32 %v3320, %v3408
      %v3410 = vpop.f32.mrf.mxu0
      %v3411 = vadd.f32 %v3322, %v3410
      %3412 = vmatmul.bf16.gmra.mxu0 %v3107
      %v3413 = vpop.f32.mrf.mxu0
      %v3414 = vadd.f32 %v3325, %v3413
      %v3415 = vpop.f32.mrf.mxu0
      %v3416 = vadd.f32 %v3327, %v3415
      %3417 = vmatmul.bf16.gmra.mxu0 %v3110
      %v3418 = vpop.f32.mrf.mxu0
      %v3419 = vadd.f32 %v3330, %v3418
      %v3420 = vpop.f32.mrf.mxu0
      %v3421 = vadd.f32 %v3332, %v3420
      %3422 = vmatmul.bf16.gmra.mxu0 %v3113
      %v3423 = vpop.f32.mrf.mxu0
      %v3424 = vadd.f32 %v3335, %v3423
      %v3425 = vpop.f32.mrf.mxu0
      %v3426 = vadd.f32 %v3337, %v3425
      %3427 = vmatmul.bf16.gmra.mxu0 %v3116
      %v3428 = vpop.f32.mrf.mxu0
      %v3429 = vadd.f32 %v3340, %v3428
      %v3430 = vpop.f32.mrf.mxu0
      %v3431 = vadd.f32 %v3342, %v3430
      %3432 = vmatmul.bf16.gmra.mxu0 %v3119
      %v3433 = vpop.f32.mrf.mxu0
      %v3434 = vadd.f32 %v3345, %v3433
      %v3435 = vpop.f32.mrf.mxu0
      %v3436 = vadd.f32 %v3347, %v3435
      %3437 = vmatmul.bf16.gmra.mxu0 %v3122
      %v3438 = vpop.f32.mrf.mxu0
      %v3439 = vadd.f32 %v3350, %v3438
      %v3440 = vpop.f32.mrf.mxu0
      %v3441 = vadd.f32 %v3352, %v3440
      %3442 = vmatmul.bf16.gmra.mxu0 %v3125
      %v3443 = vpop.f32.mrf.mxu0
      %v3444 = vadd.f32 %v3355, %v3443
      %v3445 = vpop.f32.mrf.mxu0
      %v3446 = vadd.f32 %v3357, %v3445
      %3447 = vmatmul.bf16.gmra.mxu0 %v3128
      %v3448 = vpop.f32.mrf.mxu0
      %v3449 = vadd.f32 %v3360, %v3448
      %v3450 = vpop.f32.mrf.mxu0
      %v3451 = vadd.f32 %v3362, %v3450
      %3452 = vmatmul.bf16.gmra.mxu0 %v3131
      %v3453 = vpop.f32.mrf.mxu0
      %v3454 = vadd.f32 %v3365, %v3453
      %v3455 = vpop.f32.mrf.mxu0
      %v3456 = vadd.f32 %v3367, %v3455
      %3457 = vmatmul.bf16.gmra.mxu0 %v3134
      %v3458 = vpop.f32.mrf.mxu0
      %v3459 = vadd.f32 %v3370, %v3458
      %v3460 = vpop.f32.mrf.mxu0
      %v3461 = vadd.f32 %v3372, %v3460
      %3462 = vmatmul.bf16.gmra.mxu0 %v3137
      %v3463 = vpop.f32.mrf.mxu0
      %v3464 = vadd.f32 %v3375, %v3463
      %v3465 = vpop.f32.mrf.mxu0
      %v3466 = vadd.f32 %v3377, %v3465
      %3467 = vmatmul.bf16.gmra.mxu0 %v3140
      %v3468 = vpop.f32.mrf.mxu0
      %v3469 = vadd.f32 %v3380, %v3468
      %v3470 = vpop.f32.mrf.mxu0
      %v3471 = vadd.f32 %v3382, %v3470
      %3472 = vmatmul.bf16.gmra.mxu0 %v3143
      %v3473 = vpop.f32.mrf.mxu0
      %v3474 = vadd.f32 %v3385, %v3473
      %v3475 = vpop.f32.mrf.mxu0
      %v3476 = vadd.f32 %v3387, %v3475
      %3477 = vmatmul.bf16.gmra.mxu0 %v3146
      %v3478 = vpop.f32.mrf.mxu0
      %v3479 = vadd.f32 %v3390, %v3478
      %v3480 = vpop.f32.mrf.mxu0
      %v3481 = vadd.f32 %v3392, %v3480
      %3482 = vmatmul.bf16.gmra.mxu0 %v3149
      %v3483 = vpop.f32.mrf.mxu0
      %v3484 = vadd.f32 %v3395, %v3483
      %v3485 = vpop.f32.mrf.mxu0
      %v3486 = vadd.f32 %v3397, %v3485
      %3487 = vdwg.mxu0
      %3488 = vmatpush.bf16.msra.mxu0 0
      %3489 = vmatpush.bf16.msra.mxu0 0
      %3490 = vmatpush.bf16.msra.mxu0 0
      %3491 = vmatpush.bf16.msra.mxu0 0
      %3492 = vmatpush.bf16.msra.mxu0 0
      %3493 = vmatpush.bf16.msra.mxu0 0
      %3494 = vmatpush.bf16.msra.mxu0 %v3243
      %3495 = vmatpush.bf16.msra.mxu0 %v3242
      %3496 = vmatmul.bf16.gmra.mxu0 %v3263
      %v3497 = vpop.f32.mrf.mxu0
      %v3498 = vadd.f32 %v3409, %v3497
      %v3499 = vpop.f32.mrf.mxu0
      %v3500 = vadd.f32 %v3411, %v3499
      %3501 = vmatmul.bf16.gmra.mxu0 %v3266
      %v3502 = vpop.f32.mrf.mxu0
      %v3503 = vadd.f32 %v3414, %v3502
      %v3504 = vpop.f32.mrf.mxu0
      %v3505 = vadd.f32 %v3416, %v3504
      %3506 = vmatmul.bf16.gmra.mxu0 %v3269
      %v3507 = vpop.f32.mrf.mxu0
      %v3508 = vadd.f32 %v3419, %v3507
      %v3509 = vpop.f32.mrf.mxu0
      %v3510 = vadd.f32 %v3421, %v3509
      %3511 = vmatmul.bf16.gmra.mxu0 %v3272
      %v3512 = vpop.f32.mrf.mxu0
      %v3513 = vadd.f32 %v3424, %v3512
      %v3514 = vpop.f32.mrf.mxu0
      %v3515 = vadd.f32 %v3426, %v3514
      %3516 = vmatmul.bf16.gmra.mxu0 %v3275
      %v3517 = vpop.f32.mrf.mxu0
      %v3518 = vadd.f32 %v3429, %v3517
      %v3519 = vpop.f32.mrf.mxu0
      %v3520 = vadd.f32 %v3431, %v3519
      %3521 = vmatmul.bf16.gmra.mxu0 %v3278
      %v3522 = vpop.f32.mrf.mxu0
      %v3523 = vadd.f32 %v3434, %v3522
      %v3524 = vpop.f32.mrf.mxu0
      %v3525 = vadd.f32 %v3436, %v3524
      %3526 = vmatmul.bf16.gmra.mxu0 %v3281
      %v3527 = vpop.f32.mrf.mxu0
      %v3528 = vadd.f32 %v3439, %v3527
      %v3529 = vpop.f32.mrf.mxu0
      %v3530 = vadd.f32 %v3441, %v3529
      %3531 = vmatmul.bf16.gmra.mxu0 %v3284
      %v3532 = vpop.f32.mrf.mxu0
      %v3533 = vadd.f32 %v3444, %v3532
      %v3534 = vpop.f32.mrf.mxu0
      %v3535 = vadd.f32 %v3446, %v3534
      %3536 = vmatmul.bf16.gmra.mxu0 %v3287
      %v3537 = vpop.f32.mrf.mxu0
      %v3538 = vadd.f32 %v3449, %v3537
      %v3539 = vpop.f32.mrf.mxu0
      %v3540 = vadd.f32 %v3451, %v3539
      %3541 = vmatmul.bf16.gmra.mxu0 %v3290
      %v3542 = vpop.f32.mrf.mxu0
      %v3543 = vadd.f32 %v3454, %v3542
      %v3544 = vpop.f32.mrf.mxu0
      %v3545 = vadd.f32 %v3456, %v3544
      %3546 = vmatmul.bf16.gmra.mxu0 %v3293
      %v3547 = vpop.f32.mrf.mxu0
      %v3548 = vadd.f32 %v3459, %v3547
      %v3549 = vpop.f32.mrf.mxu0
      %v3550 = vadd.f32 %v3461, %v3549
      %3551 = vmatmul.bf16.gmra.mxu0 %v3296
      %v3552 = vpop.f32.mrf.mxu0
      %v3553 = vadd.f32 %v3464, %v3552
      %v3554 = vpop.f32.mrf.mxu0
      %v3555 = vadd.f32 %v3466, %v3554
      %3556 = vmatmul.bf16.gmra.mxu0 %v3299
      %v3557 = vpop.f32.mrf.mxu0
      %v3558 = vadd.f32 %v3469, %v3557
      %v3559 = vpop.f32.mrf.mxu0
      %v3560 = vadd.f32 %v3471, %v3559
      %3561 = vmatmul.bf16.gmra.mxu0 %v3302
      %v3562 = vpop.f32.mrf.mxu0
      %v3563 = vadd.f32 %v3474, %v3562
      %v3564 = vpop.f32.mrf.mxu0
      %v3565 = vadd.f32 %v3476, %v3564
      %3566 = vmatmul.bf16.gmra.mxu0 %v3305
      %v3567 = vpop.f32.mrf.mxu0
      %v3568 = vadd.f32 %v3479, %v3567
      %v3569 = vpop.f32.mrf.mxu0
      %v3570 = vadd.f32 %v3481, %v3569
      %3571 = vmatmul.bf16.gmra.mxu0 %v3308
      %v3572 = vpop.f32.mrf.mxu0
      %v3573 = vadd.f32 %v3484, %v3572
      %v3574 = vpop.f32.mrf.mxu0
      %v3575 = vadd.f32 %v3486, %v3574
      %3576 = vdwg.mxu0
      %vm3625 = vcmask 1046528
      %v3626 = vrot.slane %v229, 1
      %v3627 = vrot.slane %v230, 1
      %v3628 = vsel %vm3625, %v3626, %v3627
      %v3629 = vrot.slane %v231, 1
      %v3630 = vsel %vm3625, %v3627, %v3629
      %v3631 = vrot.slane %v232, 1
      %v3632 = vrot.slane %v233, 1
      %v3633 = vsel %vm3625, %v3631, %v3632
      %v3634 = vrot.slane %v234, 1
      %v3635 = vsel %vm3625, %v3632, %v3634
      %v3636 = vrot.slane %v235, 1
      %v3637 = vrot.slane %v236, 1
      %v3638 = vsel %vm3625, %v3636, %v3637
      %v3639 = vrot.slane %v237, 1
      %v3640 = vsel %vm3625, %v3637, %v3639
      %v3641 = vrot.slane %v238, 1
      %v3642 = vrot.slane %v239, 1
      %v3643 = vsel %vm3625, %v3641, %v3642
      %v3644 = vrot.slane %v240, 1
      %v3645 = vsel %vm3625, %v3642, %v3644
      %v3646 = vrot.slane %v241, 1
      %v3647 = vrot.slane %v242, 1
      %v3648 = vsel %vm3625, %v3646, %v3647
      %v3649 = vrot.slane %v243, 1
      %v3650 = vsel %vm3625, %v3647, %v3649
      %v3651 = vrot.slane %v244, 1
      %v3652 = vrot.slane %v245, 1
      %v3653 = vsel %vm3625, %v3651, %v3652
      %v3654 = vrot.slane %v246, 1
      %v3655 = vsel %vm3625, %v3652, %v3654
      %v3656 = vrot.slane %v247, 1
      %v3657 = vrot.slane %v248, 1
      %v3658 = vsel %vm3625, %v3656, %v3657
      %v3659 = vrot.slane %v249, 1
      %v3660 = vsel %vm3625, %v3657, %v3659
      %v3661 = vrot.slane %v250, 1
      %v3662 = vrot.slane %v251, 1
      %v3663 = vsel %vm3625, %v3661, %v3662
      %v3664 = vrot.slane %v252, 1
      %v3665 = vsel %vm3625, %v3662, %v3664
      %v3666 = vrot.slane %v253, 1
      %v3667 = vrot.slane %v254, 1
      %v3668 = vsel %vm3625, %v3666, %v3667
      %v3669 = vrot.slane %v255, 1
      %v3670 = vsel %vm3625, %v3667, %v3669
      %v3671 = vrot.slane %v256, 1
      %v3672 = vrot.slane %v257, 1
      %v3673 = vsel %vm3625, %v3671, %v3672
      %v3674 = vrot.slane %v258, 1
      %v3675 = vsel %vm3625, %v3672, %v3674
      %v3676 = vrot.slane %v259, 1
      %v3677 = vrot.slane %v260, 1
      %v3678 = vsel %vm3625, %v3676, %v3677
      %v3679 = vrot.slane %v261, 1
      %v3680 = vsel %vm3625, %v3677, %v3679
      %v3681 = vrot.slane %v262, 1
      %v3682 = vrot.slane %v263, 1
      %v3683 = vsel %vm3625, %v3681, %v3682
      %v3684 = vrot.slane %v264, 1
      %v3685 = vsel %vm3625, %v3682, %v3684
      %v3686 = vrot.slane %v265, 1
      %v3687 = vrot.slane %v266, 1
      %v3688 = vsel %vm3625, %v3686, %v3687
      %v3689 = vrot.slane %v267, 1
      %v3690 = vsel %vm3625, %v3687, %v3689
      %v3691 = vrot.slane %v268, 1
      %v3692 = vrot.slane %v269, 1
      %v3693 = vsel %vm3625, %v3691, %v3692
      %v3694 = vrot.slane %v270, 1
      %v3695 = vsel %vm3625, %v3692, %v3694
      %v3696 = vrot.slane %v271, 1
      %v3697 = vrot.slane %v272, 1
      %v3698 = vsel %vm3625, %v3696, %v3697
      %v3699 = vrot.slane %v273, 1
      %v3700 = vsel %vm3625, %v3697, %v3699
      %v3701 = vrot.slane %v274, 1
      %v3702 = vrot.slane %v275, 1
      %v3703 = vsel %vm3625, %v3701, %v3702
      %v3704 = vrot.slane %v276, 1
      %v3705 = vsel %vm3625, %v3702, %v3704
      %v3738 = vadd.f32 %v3498, %v3628
      %v3739 = vadd.f32 %v3500, %v3630
      %v3740 = vadd.f32 %v3503, %v3633
      %v3741 = vadd.f32 %v3505, %v3635
      %v3742 = vadd.f32 %v3508, %v3638
      %v3743 = vadd.f32 %v3510, %v3640
      %v3744 = vadd.f32 %v3513, %v3643
      %v3745 = vadd.f32 %v3515, %v3645
      %v3746 = vadd.f32 %v3518, %v3648
      %v3747 = vadd.f32 %v3520, %v3650
      %v3748 = vadd.f32 %v3523, %v3653
      %v3749 = vadd.f32 %v3525, %v3655
      %v3750 = vadd.f32 %v3528, %v3658
      %v3751 = vadd.f32 %v3530, %v3660
      %v3752 = vadd.f32 %v3533, %v3663
      %v3753 = vadd.f32 %v3535, %v3665
      %v3754 = vadd.f32 %v3538, %v3668
      %v3755 = vadd.f32 %v3540, %v3670
      %v3756 = vadd.f32 %v3543, %v3673
      %v3757 = vadd.f32 %v3545, %v3675
      %v3758 = vadd.f32 %v3548, %v3678
      %v3759 = vadd.f32 %v3550, %v3680
      %v3760 = vadd.f32 %v3553, %v3683
      %v3761 = vadd.f32 %v3555, %v3685
      %v3762 = vadd.f32 %v3558, %v3688
      %v3763 = vadd.f32 %v3560, %v3690
      %v3764 = vadd.f32 %v3563, %v3693
      %v3765 = vadd.f32 %v3565, %v3695
      %v3766 = vadd.f32 %v3568, %v3698
      %v3767 = vadd.f32 %v3570, %v3700
      %v3768 = vadd.f32 %v3573, %v3703
      %v3769 = vadd.f32 %v3575, %v3705
      %3770 = vst.msk [vmem:[%s224] sm:$0xff] %vm979, 0.0
      %3771 = vst.msk [vmem:[%s224 + $0x8] sm:$0xff] %vm979, 0.0
      %vm3772 = vcmask 254976
      %3773 = vst.msk [vmem:[%s224 + $0x10] sm:$0x3] %vm3772, 0.0
      %3774 = vst.msk [vmem:[%s224 + $0x18] sm:$0xff] %vm979, 0.0
      %3775 = vst.msk [vmem:[%s224 + $0x20] sm:$0xff] %vm979, 0.0
      %3776 = vst.msk [vmem:[%s224 + $0x28] sm:$0x3] %vm3772, 0.0
      %3777 = vst.msk [vmem:[%s224 + $0x30] sm:$0xff] %vm979, 0.0
      %3778 = vst.msk [vmem:[%s224 + $0x38] sm:$0xff] %vm979, 0.0
      %3779 = vst.msk [vmem:[%s224 + $0x40] sm:$0x3] %vm3772, 0.0
      %3780 = vst.msk [vmem:[%s224 + $0x48] sm:$0xff] %vm979, 0.0
      %3781 = vst.msk [vmem:[%s224 + $0x50] sm:$0xff] %vm979, 0.0
      %3782 = vst.msk [vmem:[%s224 + $0x58] sm:$0x3] %vm3772, 0.0
      %3783 = vst.msk [vmem:[%s224 + $0x60] sm:$0xff] %vm979, 0.0
      %3784 = vst.msk [vmem:[%s224 + $0x68] sm:$0xff] %vm979, 0.0
      %3785 = vst.msk [vmem:[%s224 + $0x70] sm:$0x3] %vm3772, 0.0
      %3786 = vst.msk [vmem:[%s224 + $0x78] sm:$0xff] %vm979, 0.0
      %3787 = vst.msk [vmem:[%s224 + $0x80] sm:$0xff] %vm979, 0.0
      %3788 = vst.msk [vmem:[%s224 + $0x88] sm:$0x3] %vm3772, 0.0
      %3789 = vst.msk [vmem:[%s224 + $0x90] sm:$0xff] %vm979, 0.0
      %3790 = vst.msk [vmem:[%s224 + $0x98] sm:$0xff] %vm979, 0.0
      %3791 = vst.msk [vmem:[%s224 + $0xa0] sm:$0x3] %vm3772, 0.0
      %3792 = vst.msk [vmem:[%s224 + $0xa8] sm:$0xff] %vm979, 0.0
      %3793 = vst.msk [vmem:[%s224 + $0xb0] sm:$0xff] %vm979, 0.0
      %3794 = vst.msk [vmem:[%s224 + $0xb8] sm:$0x3] %vm3772, 0.0
      %3795 = vst.msk [vmem:[%s224 + $0xc0] sm:$0xff] %vm979, 0.0
      %3796 = vst.msk [vmem:[%s224 + $0xc8] sm:$0xff] %vm979, 0.0
      %3797 = vst.msk [vmem:[%s224 + $0xd0] sm:$0x3] %vm3772, 0.0
      %3798 = vst.msk [vmem:[%s224 + $0xd8] sm:$0xff] %vm979, 0.0
      %3799 = vst.msk [vmem:[%s224 + $0xe0] sm:$0xff] %vm979, 0.0
      %3800 = vst.msk [vmem:[%s224 + $0xe8] sm:$0x3] %vm3772, 0.0
      %3801 = vst.msk [vmem:[%s224 + $0xf0] sm:$0xff] %vm979, 0.0
      %3802 = vst.msk [vmem:[%s224 + $0xf8] sm:$0xff] %vm979, 0.0
      %3803 = vst.msk [vmem:[%s224 + $0x100] sm:$0x3] %vm3772, 0.0
      %3804 = vst.msk [vmem:[%s224 + $0x108] sm:$0xff] %vm979, 0.0
      %3805 = vst.msk [vmem:[%s224 + $0x110] sm:$0xff] %vm979, 0.0
      %3806 = vst.msk [vmem:[%s224 + $0x118] sm:$0x3] %vm3772, 0.0
      %3807 = vst.msk [vmem:[%s224 + $0x120] sm:$0xff] %vm979, 0.0
      %3808 = vst.msk [vmem:[%s224 + $0x128] sm:$0xff] %vm979, 0.0
      %3809 = vst.msk [vmem:[%s224 + $0x130] sm:$0x3] %vm3772, 0.0
      %3810 = vst.msk [vmem:[%s224 + $0x138] sm:$0xff] %vm979, 0.0
      %3811 = vst.msk [vmem:[%s224 + $0x140] sm:$0xff] %vm979, 0.0
      %3812 = vst.msk [vmem:[%s224 + $0x148] sm:$0x3] %vm3772, 0.0
      %3813 = vst.msk [vmem:[%s224 + $0x150] sm:$0xff] %vm979, 0.0
      %3814 = vst.msk [vmem:[%s224 + $0x158] sm:$0xff] %vm979, 0.0
      %3815 = vst.msk [vmem:[%s224 + $0x160] sm:$0x3] %vm3772, 0.0
      %3816 = vst.msk [vmem:[%s224 + $0x168] sm:$0xff] %vm979, 0.0
      %3817 = vst.msk [vmem:[%s224 + $0x170] sm:$0xff] %vm979, 0.0
      %3818 = vst.msk [vmem:[%s224 + $0x178] sm:$0x3] %vm3772, 0.0
      %3819 = vst.msk [vmem:[%s224 + $0x180] sm:$0xff] %vm979, 0.0
      %3820 = vst.msk [vmem:[%s224 + $0x188] sm:$0xff] %vm979, 0.0
      %3821 = vst.msk [vmem:[%s224 + $0x190] sm:$0x3] %vm3772, 0.0
      %3822 = vst.msk [vmem:[%s224 + $0x198] sm:$0xff] %vm979, 0.0
      %3823 = vst.msk [vmem:[%s224 + $0x1a0] sm:$0xff] %vm979, 0.0
      %3824 = vst.msk [vmem:[%s224 + $0x1a8] sm:$0x3] %vm3772, 0.0
      %s3825 = scalar_lea.vmem %s224, 24
      %3826 = vst.msk [vmem:[%s3825 + $0x1] sm:$0xff] %vm979, %v3738
      %3827 = vst.msk [vmem:[%s3825 + $0x9] sm:$0xff] %vm979, %v3739
      %3828 = vst.msk [vmem:[%s3825 + $0x19] sm:$0xff] %vm979, %v3740
      %3829 = vst.msk [vmem:[%s3825 + $0x21] sm:$0xff] %vm979, %v3741
      %3830 = vst.msk [vmem:[%s3825 + $0x31] sm:$0xff] %vm979, %v3742
      %3831 = vst.msk [vmem:[%s3825 + $0x39] sm:$0xff] %vm979, %v3743
      %3832 = vst.msk [vmem:[%s3825 + $0x49] sm:$0xff] %vm979, %v3744
      %3833 = vst.msk [vmem:[%s3825 + $0x51] sm:$0xff] %vm979, %v3745
      %3834 = vst.msk [vmem:[%s3825 + $0x61] sm:$0xff] %vm979, %v3746
      %3835 = vst.msk [vmem:[%s3825 + $0x69] sm:$0xff] %vm979, %v3747
      %3836 = vst.msk [vmem:[%s3825 + $0x79] sm:$0xff] %vm979, %v3748
      %3837 = vst.msk [vmem:[%s3825 + $0x81] sm:$0xff] %vm979, %v3749
      %3838 = vst.msk [vmem:[%s3825 + $0x91] sm:$0xff] %vm979, %v3750
      %3839 = vst.msk [vmem:[%s3825 + $0x99] sm:$0xff] %vm979, %v3751
      %3840 = vst.msk [vmem:[%s3825 + $0xa9] sm:$0xff] %vm979, %v3752
      %3841 = vst.msk [vmem:[%s3825 + $0xb1] sm:$0xff] %vm979, %v3753
      %3842 = vst.msk [vmem:[%s3825 + $0xc1] sm:$0xff] %vm979, %v3754
      %3843 = vst.msk [vmem:[%s3825 + $0xc9] sm:$0xff] %vm979, %v3755
      %3844 = vst.msk [vmem:[%s3825 + $0xd9] sm:$0xff] %vm979, %v3756
      %3845 = vst.msk [vmem:[%s3825 + $0xe1] sm:$0xff] %vm979, %v3757
      %3846 = vst.msk [vmem:[%s3825 + $0xf1] sm:$0xff] %vm979, %v3758
      %3847 = vst.msk [vmem:[%s3825 + $0xf9] sm:$0xff] %vm979, %v3759
      %3848 = vst.msk [vmem:[%s3825 + $0x109] sm:$0xff] %vm979, %v3760
      %3849 = vst.msk [vmem:[%s3825 + $0x111] sm:$0xff] %vm979, %v3761
      %3850 = vst.msk [vmem:[%s3825 + $0x121] sm:$0xff] %vm979, %v3762
      %3851 = vst.msk [vmem:[%s3825 + $0x129] sm:$0xff] %vm979, %v3763
      %3852 = vst.msk [vmem:[%s3825 + $0x139] sm:$0xff] %vm979, %v3764
      %3853 = vst.msk [vmem:[%s3825 + $0x141] sm:$0xff] %vm979, %v3765
      %3854 = vst.msk [vmem:[%s3825 + $0x151] sm:$0xff] %vm979, %v3766
      %3855 = vst.msk [vmem:[%s3825 + $0x159] sm:$0xff] %vm979, %v3767
      %3856 = vst.msk [vmem:[%s3825 + $0x169] sm:$0xff] %vm979, %v3768
      %3857 = vst.msk [vmem:[%s3825 + $0x171] sm:$0xff] %vm979, %v3769
      %p3858 = scmp.lt.s32.totalorder %s16, 1
      %s3859 = scalar_select %p3858, %s16, 1
      %s3860 = smul.addr %s3859, 54
      %s3861 = smul.addr %s3860, 8
      %s3862 = scalar_lea.vmem %s5, %s3861
      // Predicated region
      $region45: #{precoding_resnet_forward.5} parent=39 // pred_check
        %p3863 = pneg %p144
      $region46: #{precoding_resnet_forward.5} parent=39 // pred_check_branch
        %3865 = sbr.rel (%p3863) target = $region48
      $region47: #{precoding_resnet_forward.5} parent=39 // pred_region
        _
      $region48: #{precoding_resnet_forward.5} parent=39 // pred_fallthru
        _
    $region40: #{precoding_resnet_forward.5} parent=5 // pred_fallthru
      _
    %p3866 = scmp.le.s32.totalorder 2, %s11
    // Predicated region
    $region49: #{precoding_resnet_forward.5} parent=5 // pred_check
      %p3867 = pneg %p3866
    $region50: #{precoding_resnet_forward.5} parent=5 // pred_check_branch
      %3869 = sbr.rel (%p3867) target = $region52
    $region51: #{precoding_resnet_forward.5} parent=5 // pred_region
      %s3870 = ssub.s32 %s11, 2
      // Predicated region
      $region53: #{precoding_resnet_forward.5} parent=51 // pred_check
        %p3871 = pneg %p150
      $region54: #{precoding_resnet_forward.5} parent=51 // pred_check_branch
        %3873 = sbr.rel (%p3871) target = $region56
      $region55: #{precoding_resnet_forward.5} parent=51 // pred_region
        %p3874 = scmp.lt.s32.totalorder %s17, 1
        %s3875 = scalar_select %p3874, %s17, 1
        %s3876 = smul.addr %s3875, 54
        %s3877 = smul.addr %s3876, 8
        %s3878 = scalar_lea.vmem %s5, %s3877
      $region56: #{precoding_resnet_forward.5} parent=51 // pred_fallthru
        _
    $region52: #{precoding_resnet_forward.5} parent=5 // pred_fallthru
      _
  $region6: #{precoding_resnet_forward.5} parent=0 // loop_footer
    %s15 = sadd.s32 1, %s11
  $region7: #{precoding_resnet_forward.5} parent=0 // loop_footer_branch
    %10 = sbr.rel target = $region3
  $region8: #{precoding_resnet_forward.5} parent=0 // loop_exit
    _

</llo_original>
